<compile_context>
chip_gen: v7x
topology: tpu7x:2x2x1
jax: 0.10.0
libtpu: 0.0.40
codegen_flags: <defaults>
</compile_context>

<pallas_src>
import functools
import math

import numpy as np

import jax
import jax.numpy as jnp
from jax.experimental import pallas as pl
from jax.experimental.pallas import tpu as pltpu


def _round_up(x, m):
    return (x + m - 1) // m * m


def _sigmoid(x):
    # One EUP op (tanh) + VPU mul/add instead of a possible exp + reciprocal.
    return 0.5 * jnp.tanh(0.5 * x) + 0.5


def _mxu_dot(a, w):
    # Keep f32 accumulation; if weights are stored bf16, feed the MXU bf16
    # operands (native rate on v5e/v6e/v7x), gate math stays f32.
    if w.dtype != jnp.float32:
        a = a.astype(w.dtype)
    return jnp.dot(a, w, preferred_element_type=jnp.float32)


def _vmem_physical_bytes():
    try:
        return int(pltpu.get_tpu_info().vmem_capacity_bytes)
    except Exception:
        return 64 * 1024 * 1024          # conservative default (v7x-sized)


def _choose_num_shards(bp):
    """v7x/v4/v5p have 2 TensorCores: shard the batch across a leading
    'parallel' grid axis when each shard keeps >= 8 rows.  On 1-core chips
    (v5e/v6e) a second shard only adds grid steps, so keep 1."""
    if bp < 16:
        return 1
    try:
        kind = jax.devices()[0].device_kind.lower()
    except Exception:
        return 1
    if any(tag in kind for tag in ("v4", "v5p", "v7")):
        return 2
    return 1


def _plan_chunks(T, Bsh, Dp, Hp, L, Lr, w_itemsize, t_tile=None):
    """Generation-aware planning: largest time tile whose VMEM residency
    (weights + double-buffered x/y chunks + gate scratch + states) fits in
    ~3/4 of this chip's VMEM; vmem_limit_bytes follows the actual estimate."""
    G = 4 * Hp
    physical = _vmem_physical_bytes()
    budget = physical * 3 // 4
    w_bytes = (Dp * G + Lr * Hp * G + L * Hp * G) * w_itemsize + L * G * 4
    state_bytes = 4 * (L * Bsh * Hp * 4) * 2            # h0/c0/hn/cn, ~2 bufs
    fixed = 2 * w_bytes + state_bytes + (2 << 20)        # pessimistic buffering
    per_t = Bsh * (2 * Dp + 2 * Hp + G) * 4              # x(x2) + y(x2) + gx
    if t_tile is None:
        cap = (budget - fixed) // per_t if budget > fixed else 8
        cap = int(max(1, min(cap, 64, T)))               # 64 bounds the unroll
        n_chunks = -(-T // cap)
        t_tile = -(-T // n_chunks)                       # minimal time padding
    else:
        t_tile = int(max(1, min(t_tile, T)))
        n_chunks = -(-T // t_tile)
    est = fixed + per_t * t_tile
    vmem_limit = int(min(max(est + (8 << 20), 32 << 20), physical * 7 // 8))
    single_buffer_weights = (2 * w_bytes > budget // 4)  # only when it matters
    return t_tile, n_chunks, vmem_limit, single_buffer_weights


def _encoder_lstm_kernel(x_ref, h0_ref, c0_ref, wih0_ref, wihr_ref, whh_ref,
                         b_ref, y_ref, hn_ref, cn_ref, gx_scr,
                         *, t_tile, t_true, n_chunks):
    """All LSTM layers over one (batch-shard, time-chunk) grid cell.

    x_ref  : (Tt*Bsh, Dp)   padded input rows (row = t*Bsh + b)
    h0/c0  : (L, Bsh, Hp)   initial states for this batch shard
    wih0   : (Dp, 4Hp)      layer-0 W_ih^T (per-gate blocks of width Hp)
    wihr   : (Lr, Hp, 4Hp)  W_ih^T for layers > 0
    whh    : (L, Hp, 4Hp)   W_hh^T
    b      : (L, 1, 4Hp)    b_ih + b_hh
    y_ref  : (Tt*Bsh, Hp)   last-layer hidden states for this chunk
    hn/cn  : (L, Bsh, Hp)   output blocks, doubling as the cross-chunk carry
    gx_scr : (Tt*Bsh, 4Hp)  hoisted layer-0 input projection
    """
    L, Bsh, Hp = h0_ref.shape
    Tt = t_tile
    chunk = pl.program_id(1)

    @pl.when(chunk == 0)
    def _init():
        hn_ref[...] = h0_ref[...]
        cn_ref[...] = c0_ref[...]

    # Hoisted layer-0 input projection + bias for the whole chunk: one big
    # lane-dense MXU matmul instead of Tt small ones.
    gx_scr[...] = _mxu_dot(x_ref[...], wih0_ref[...]) + b_ref[0]

    # Per-layer weights loaded once per chunk; h/c carries live in vregs.
    whh_l = [whh_ref[l] for l in range(L)]
    wxr_l = [wihr_ref[l] for l in range(L - 1)]
    bias_l = [b_ref[l] for l in range(L)]
    h_carry = [hn_ref[l] for l in range(L)]
    c_carry = [cn_ref[l] for l in range(L)]

    # First padded (masked) local time index; == Tt when there is no padding.
    tail_start = t_true - (n_chunks - 1) * Tt

    # Layer-time wavefront: at step s, layer l handles t = s - l, so up to L
    # independent (small matmul -> EUP -> VPU) chains are in flight per step.
    for s in range(Tt + L - 1):
        h_prev = list(h_carry)
        c_prev = list(c_carry)
        for l in range(L):
            t = s - l
            if t < 0 or t >= Tt:
                continue
            row = pl.ds(t * Bsh, Bsh)
            if l == 0:
                gates = gx_scr[row, :] + _mxu_dot(h_prev[0], whh_l[0])
            else:
                gates = (_mxu_dot(h_prev[l - 1], wxr_l[l - 1])
                         + _mxu_dot(h_prev[l], whh_l[l])
                         + bias_l[l])
            i_g = _sigmoid(gates[:, 0 * Hp:1 * Hp])
            f_g = _sigmoid(gates[:, 1 * Hp:2 * Hp])
            g_g = jnp.tanh(gates[:, 2 * Hp:3 * Hp])
            o_g = _sigmoid(gates[:, 3 * Hp:4 * Hp])
            c_new = f_g * c_prev[l] + i_g * g_g
            h_new = o_g * jnp.tanh(c_new)
            if t >= tail_start:
                # Only the padded tail of the last chunk can be invalid.
                valid = (chunk * Tt + t) < t_true
                h_new = jnp.where(valid, h_new, h_prev[l])
                c_new = jnp.where(valid, c_new, c_prev[l])
            h_carry[l] = h_new
            c_carry[l] = c_new
            if l == L - 1:
                y_ref[row, :] = h_new        # lane-dense (Hp multiple of 128)

    # Store the carries once per chunk (no per-step scratch round trip).
    for l in range(L):
        hn_ref[l] = h_carry[l]
        cn_ref[l] = c_carry[l]


def _encoder_fused(x2d, h0_p, c0_p, wih0, wihr, whh, b, *,
                   n_shards, t_tile, n_chunks, t_true, vmem_limit,
                   single_buffer_weights):
    L, Bp, Hp = h0_p.shape
    Bsh = Bp // n_shards
    Dp = wih0.shape[0]
    G = 4 * Hp
    Lr = wihr.shape[0]
    rows = t_tile * Bsh
    total_rows = x2d.shape[0]

    def inv_spec(shape, idx):
        # Grid-invariant operands: single-buffer so large weight sets are
        # resident once (not twice) in VMEM — key for v7x's 64 MiB.
        if single_buffer_weights:
            return pl.BlockSpec(shape, idx,
                                pipeline_mode=pl.Buffered(buffer_count=1))
        return pl.BlockSpec(shape, idx)

    x_idx = lambda s, k: (s * n_chunks + k, 0)
    st_idx = lambda s, k: (0, s, 0)

    grid_spec = pltpu.PrefetchScalarGridSpec(
        num_scalar_prefetch=0,
        grid=(n_shards, n_chunks),
        in_specs=[
            pl.BlockSpec((rows, Dp), x_idx),                 # x chunk
            pl.BlockSpec((L, Bsh, Hp), st_idx),              # h0
            pl.BlockSpec((L, Bsh, Hp), st_idx),              # c0
            inv_spec((Dp, G), lambda s, k: (0, 0)),          # W_ih^T layer 0
            inv_spec((Lr, Hp, G), lambda s, k: (0, 0, 0)),   # W_ih^T layers>0
            inv_spec((L, Hp, G), lambda s, k: (0, 0, 0)),    # W_hh^T
            inv_spec((L, 1, G), lambda s, k: (0, 0, 0)),     # bias
        ],
        out_specs=(
            pl.BlockSpec((rows, Hp), x_idx),                 # y chunk
            pl.BlockSpec((L, Bsh, Hp), st_idx),              # h_n (carry)
            pl.BlockSpec((L, Bsh, Hp), st_idx),              # c_n (carry)
        ),
        scratch_shapes=[
            pltpu.VMEM((rows, G), jnp.float32),              # hoisted x-proj
        ],
    )

    kernel = functools.partial(_encoder_lstm_kernel, t_tile=t_tile,
                               t_true=t_true, n_chunks=n_chunks)
    return pl.pallas_call(
        kernel,
        out_shape=(jax.ShapeDtypeStruct((total_rows, Hp), jnp.float32),
                   jax.ShapeDtypeStruct((L, Bp, Hp), jnp.float32),
                   jax.ShapeDtypeStruct((L, Bp, Hp), jnp.float32)),
        grid_spec=grid_spec,
        compiler_params=pltpu.CompilerParams(
            dimension_semantics=("parallel", "arbitrary"),
            vmem_limit_bytes=vmem_limit),
    )(x2d, h0_p, c0_p, wih0, wihr, whh, b)


def init_encoder_params(key, input_size, hidden_size, num_layers):
    """Deterministic init matching nn.LSTM parameter shapes (uniform(-k, k))."""
    k = 1.0 / math.sqrt(hidden_size)
    params = []
    for l in range(num_layers):
        in_sz = input_size if l == 0 else hidden_size
        key, k1, k2, k3, k4 = jax.random.split(key, 5)
        w_ih = jax.random.uniform(k1, (4 * hidden_size, in_sz), jnp.float32, -k, k)
        w_hh = jax.random.uniform(k2, (4 * hidden_size, hidden_size), jnp.float32, -k, k)
        b_ih = jax.random.uniform(k3, (4 * hidden_size,), jnp.float32, -k, k)
        b_hh = jax.random.uniform(k4, (4 * hidden_size,), jnp.float32, -k, k)
        params.append((w_ih, w_hh, b_ih, b_hh))
    return params


def prepare_encoder_params(raw_params, input_size, hidden_size,
                           param_dtype=jnp.float32):
    """One-time preprocessing: transpose, pad to (8,128)-aligned tiles, place
    gates on 128-lane boundaries.  Layer-0 W_ih kept at width Dp; layers>0
    contract over Hp only.  param_dtype=jnp.bfloat16 halves weight VMEM and
    runs the MXU at native bf16 rate (bias / gate math stay f32)."""
    L = len(raw_params)
    H = hidden_size
    Hp = _round_up(H, 128)
    Dp = _round_up(input_size, 128)
    G = 4 * Hp
    Lr = max(L - 1, 1)

    wih0 = np.zeros((Dp, G), np.float32)
    wihr = np.zeros((Lr, Hp, G), np.float32)
    whh = np.zeros((L, Hp, G), np.float32)
    b = np.zeros((L, 1, G), np.float32)
    for l, (w_ih, w_hh, b_ih, b_hh) in enumerate(raw_params):
        w_ih = np.asarray(w_ih, np.float32)
        w_hh = np.asarray(w_hh, np.float32)
        bias = np.asarray(b_ih, np.float32) + np.asarray(b_hh, np.float32)
        in_sz = w_ih.shape[1]
        for g in range(4):                       # PyTorch gate order i, f, g, o
            wg = w_ih[g * H:(g + 1) * H, :].T    # (in_sz, H)
            if l == 0:
                wih0[:in_sz, g * Hp:g * Hp + H] = wg
            else:
                wihr[l - 1, :in_sz, g * Hp:g * Hp + H] = wg
            whh[l, :H, g * Hp:g * Hp + H] = w_hh[g * H:(g + 1) * H, :].T
            b[l, 0, g * Hp:g * Hp + H] = bias[g * H:(g + 1) * H]

    return {
        "wih0": jnp.asarray(wih0, dtype=param_dtype),
        "wihr": jnp.asarray(wihr, dtype=param_dtype),
        "whh": jnp.asarray(whh, dtype=param_dtype),
        "b": jnp.asarray(b, dtype=jnp.float32),
        "num_layers": L,
        "input_size": input_size,
        "hidden_size": H,
        "Hp": Hp,
        "Dp": Dp,
    }


def encoder_forward(prepared, x, h, c, *, t_tile=None, batch_shards=None):
    """Equivalent of Encoder.forward: returns (output, (h_n, c_n)).

    x : (B, T, input_size)   batch_first, like the PyTorch module
    h : (num_layers, B, H)
    c : (num_layers, B, H)
    """
    B, T, D = x.shape
    L = prepared["num_layers"]
    H = prepared["hidden_size"]
    Hp, Dp = prepared["Hp"], prepared["Dp"]
    assert D == prepared["input_size"]

    shards = (batch_shards if batch_shards is not None
              else _choose_num_shards(_round_up(B, 8)))
    shards = max(1, int(shards))
    Bp = _round_up(B, 8 * shards)
    Bsh = Bp // shards

    Lr = prepared["wihr"].shape[0]
    w_itemsize = prepared["whh"].dtype.itemsize
    tt, n_chunks, vmem_limit, sbw = _plan_chunks(
        T, Bsh, Dp, Hp, L, Lr, w_itemsize, t_tile=t_tile)
    T_pad = tt * n_chunks

    # Pad batch/time/feature once, go (shard, time, batch, feature)-major and
    # flatten into rows so the kernel needs no in-kernel reshapes.
    x_f = jnp.pad(x.astype(jnp.float32),
                  ((0, Bp - B), (0, T_pad - T), (0, Dp - D)))
    x_f = x_f.reshape(shards, Bsh, T_pad, Dp)
    x_f = jnp.transpose(x_f, (0, 2, 1, 3))
    x2d = x_f.reshape(shards * T_pad * Bsh, Dp)

    h0_p = jnp.pad(h.astype(jnp.float32), ((0, 0), (0, Bp - B), (0, Hp - H)))
    c0_p = jnp.pad(c.astype(jnp.float32), ((0, 0), (0, Bp - B), (0, Hp - H)))

    kwargs = dict(n_shards=shards, t_tile=tt, n_chunks=n_chunks, t_true=T,
                  vmem_limit=vmem_limit)
    args = (x2d, h0_p, c0_p, prepared["wih0"], prepared["wihr"],
            prepared["whh"], prepared["b"])
    if sbw:
        try:
            y2d, hn, cn = _encoder_fused(*args, single_buffer_weights=True,
                                         **kwargs)
        except Exception:
            # pipeline_mode=pl.Buffered(1) unavailable -> default buffering.
            y2d, hn, cn = _encoder_fused(*args, single_buffer_weights=False,
                                         **kwargs)
    else:
        y2d, hn, cn = _encoder_fused(*args, single_buffer_weights=False,
                                     **kwargs)

    y = y2d.reshape(shards, T_pad, Bsh, Hp)
    y = jnp.transpose(y, (0, 2, 1, 3)).reshape(Bp, T_pad, Hp)
    output = y[:B, :T, :H]
    return output, (hn[:, :B, :H], cn[:, :B, :H])


def encoder_forward_ref(params, x, h, c):
    """Pure-JAX reference (same math as torch.nn.LSTM), for verification."""
    B, T, _ = x.shape
    H = h.shape[-1]
    layer_in = x
    hs, cs = [], []
    for l, (w_ih, w_hh, b_ih, b_hh) in enumerate(params):
        ht, ct = h[l], c[l]
        outs = []
        for t in range(T):
            g = layer_in[:, t, :] @ w_ih.T + ht @ w_hh.T + b_ih + b_hh
            i = jax.nn.sigmoid(g[:, :H])
            f = jax.nn.sigmoid(g[:, H:2 * H])
            gg = jnp.tanh(g[:, 2 * H:3 * H])
            o = jax.nn.sigmoid(g[:, 3 * H:])
            ct = f * ct + i * gg
            ht = o * jnp.tanh(ct)
            outs.append(ht)
        layer_in = jnp.stack(outs, axis=1)
        hs.append(ht)
        cs.append(ct)
    return layer_in, (jnp.stack(hs, axis=0), jnp.stack(cs, axis=0))


def _check(prepared, raw_params, x, h, c, **fw_kwargs):
    out, (h_n, c_n) = encoder_forward(prepared, x, h, c, **fw_kwargs)
    jax.block_until_ready((out, h_n, c_n))
    out_r, (h_r, c_r) = encoder_forward_ref(raw_params, x, h, c)
    np.testing.assert_allclose(np.asarray(out), np.asarray(out_r),
                               rtol=1e-3, atol=1e-3)
    np.testing.assert_allclose(np.asarray(h_n), np.asarray(h_r),
                               rtol=1e-3, atol=1e-3)
    np.testing.assert_allclose(np.asarray(c_n), np.asarray(c_r),
                               rtol=1e-3, atol=1e-3)
    return out, h_n, c_n


if __name__ == "__main__":
    input_size, hidden_size, num_layers = 16, 32, 2

    key = jax.random.PRNGKey(0)
    kp, kx, kh, kc, kx2, kx3, kh3, kc3 = jax.random.split(key, 8)

    raw_params = init_encoder_params(kp, input_size, hidden_size, num_layers)
    prepared = prepare_encoder_params(raw_params, input_size, hidden_size)

    # 1) Base case: B=2, T=8 (single chunk, single shard).
    B, T = 2, 8
    x = jax.random.normal(kx, (B, T, input_size), jnp.float32)
    h = jax.random.normal(kh, (num_layers, B, hidden_size), jnp.float32)
    c = jax.random.normal(kc, (num_layers, B, hidden_size), jnp.float32)
    out, h_n, c_n = _check(prepared, raw_params, x, h, c)
    assert out.shape == (B, T, hidden_size)
    assert h_n.shape == (num_layers, B, hidden_size)
    assert c_n.shape == (num_layers, B, hidden_size)

    # 2) Multi-chunk + padded/masked time tail: T=5 with a forced t_tile=2.
    x2 = jax.random.normal(kx2, (B, 5, input_size), jnp.float32)
    _check(prepared, raw_params, x2, h, c, t_tile=2)

    # 3) Batch-shard ('parallel') grid axis path: B=16 split into 2 shards.
    B3, T3 = 16, 6
    x3 = jax.random.normal(kx3, (B3, T3, input_size), jnp.float32)
    h3 = jax.random.normal(kh3, (num_layers, B3, hidden_size), jnp.float32)
    c3 = jax.random.normal(kc3, (num_layers, B3, hidden_size), jnp.float32)
    _check(prepared, raw_params, x3, h3, c3, t_tile=3, batch_shards=2)

    print("KERNEL_OK")
</pallas_src>

<mosaic_0001>
module attributes {stable_mosaic.version = 11 : i64} {
  func.func @_encoder_lstm_kernel(%arg0: i32, %arg1: i32, %arg2: memref<64x128xf32, #tpu.memory_space<vmem>>, %arg3: memref<2x8x128xf32, #tpu.memory_space<vmem>>, %arg4: memref<2x8x128xf32, #tpu.memory_space<vmem>>, %arg5: memref<128x512xf32, #tpu.memory_space<vmem>>, %arg6: memref<1x128x512xf32, #tpu.memory_space<vmem>>, %arg7: memref<2x128x512xf32, #tpu.memory_space<vmem>>, %arg8: memref<2x1x512xf32, #tpu.memory_space<vmem>>, %arg9: memref<64x128xf32, #tpu.memory_space<vmem>>, %arg10: memref<2x8x128xf32, #tpu.memory_space<vmem>>, %arg11: memref<2x8x128xf32, #tpu.memory_space<vmem>>, %arg12: memref<64x512xf32, #tpu.memory_space<vmem>>) attributes {dimension_semantics = [#tpu.dimension_semantics<parallel>, #tpu.dimension_semantics<arbitrary>], iteration_bounds = array<i64: 1, 1>, scalar_prefetch = 0 : i64, scratch_operands = 1 : i64, tpu.core_type = #tpu.core_type<tc>, window_params = [{transform_indices = @transform_0, window_bounds = array<i64: 64, 128>}, {transform_indices = @transform_1, window_bounds = array<i64: 2, 8, 128>}, {transform_indices = @transform_2, window_bounds = array<i64: 2, 8, 128>}, {pipeline_mode = #tpu.pipeline_mode<synchronous>, transform_indices = @transform_3, window_bounds = array<i64: 128, 512>}, {pipeline_mode = #tpu.pipeline_mode<synchronous>, transform_indices = @transform_4, window_bounds = array<i64: 1, 128, 512>}, {pipeline_mode = #tpu.pipeline_mode<synchronous>, transform_indices = @transform_5, window_bounds = array<i64: 2, 128, 512>}, {pipeline_mode = #tpu.pipeline_mode<synchronous>, transform_indices = @transform_6, window_bounds = array<i64: 2, 1, 512>}, {transform_indices = @transform_7, window_bounds = array<i64: 64, 128>}, {transform_indices = @transform_8, window_bounds = array<i64: 2, 8, 128>}, {transform_indices = @transform_9, window_bounds = array<i64: 2, 8, 128>}]} {
    %c0_i32 = arith.constant 0 : i32
    %0 = arith.cmpi eq, %arg1, %c0_i32 : i32
    %1 = arith.extui %0 : i1 to i32
    %c0_i32_0 = arith.constant 0 : i32
    %2 = arith.cmpi ne, %1, %c0_i32_0 : i32
    scf.if %2 {
      %c0_237 = arith.constant 0 : index
      %c0_238 = arith.constant 0 : index
      %c0_239 = arith.constant 0 : index
      %607 = vector.load %arg3[%c0_237, %c0_238, %c0_239] : memref<2x8x128xf32, #tpu.memory_space<vmem>>, vector<2x8x128xf32>
      %c0_240 = arith.constant 0 : index
      %c0_241 = arith.constant 0 : index
      %c0_242 = arith.constant 0 : index
      %608 = vector.load %arg10[%c0_240, %c0_241, %c0_242] : memref<2x8x128xf32, #tpu.memory_space<vmem>>, vector<2x8x128xf32>
      tpu.vector_store %arg10[%c0_240, %c0_241, %c0_242], %607 {strides = array<i32>} : memref<2x8x128xf32, #tpu.memory_space<vmem>>, vector<2x8x128xf32>,
      %c0_243 = arith.constant 0 : index
      %c0_244 = arith.constant 0 : index
      %c0_245 = arith.constant 0 : index
      %609 = vector.load %arg4[%c0_243, %c0_244, %c0_245] : memref<2x8x128xf32, #tpu.memory_space<vmem>>, vector<2x8x128xf32>
      %c0_246 = arith.constant 0 : index
      %c0_247 = arith.constant 0 : index
      %c0_248 = arith.constant 0 : index
      %610 = vector.load %arg11[%c0_246, %c0_247, %c0_248] : memref<2x8x128xf32, #tpu.memory_space<vmem>>, vector<2x8x128xf32>
      tpu.vector_store %arg11[%c0_246, %c0_247, %c0_248], %609 {strides = array<i32>} : memref<2x8x128xf32, #tpu.memory_space<vmem>>, vector<2x8x128xf32>,
    } else {
    }
    %c0 = arith.constant 0 : index
    %c0_1 = arith.constant 0 : index
    %3 = vector.load %arg2[%c0, %c0_1] : memref<64x128xf32, #tpu.memory_space<vmem>>, vector<64x128xf32>
    %c0_2 = arith.constant 0 : index
    %c0_3 = arith.constant 0 : index
    %4 = vector.load %arg5[%c0_2, %c0_3] : memref<128x512xf32, #tpu.memory_space<vmem>>, vector<128x512xf32>
    %cst = arith.constant dense<0.000000e+00> : vector<64x512xf32>
    %5 = tpu.matmul %3, %4, %cst {dimension_numbers = #tpu.dot_dimension_numbers<[1], [0], [0], [1], [0, 0, 1, 1], [], []>} : vector<64x128xf32>, vector<128x512xf32>, vector<64x512xf32> -> vector<64x512xf32>
    %c0_4 = arith.constant 0 : index
    %c0_5 = arith.constant 0 : index
    %c0_6 = arith.constant 0 : index
    %6 = vector.load %arg8[%c0_4, %c0_5, %c0_6] : memref<2x1x512xf32, #tpu.memory_space<vmem>>, vector<1x1x512xf32>
    %7 = vector.shape_cast %6 : vector<1x1x512xf32> to vector<1x512xf32>
    %8 = vector.broadcast %7 : vector<1x512xf32> to vector<64x512xf32>
    %9 = arith.addf %5, %8 : vector<64x512xf32>
    %c0_7 = arith.constant 0 : index
    %c0_8 = arith.constant 0 : index
    %10 = vector.load %arg12[%c0_7, %c0_8] : memref<64x512xf32, #tpu.memory_space<vmem>>, vector<64x512xf32>
    tpu.vector_store %arg12[%c0_7, %c0_8], %9 {strides = array<i32>} : memref<64x512xf32, #tpu.memory_space<vmem>>, vector<64x512xf32>,
    %c0_9 = arith.constant 0 : index
    %c0_10 = arith.constant 0 : index
    %c0_11 = arith.constant 0 : index
    %11 = vector.load %arg7[%c0_9, %c0_10, %c0_11] : memref<2x128x512xf32, #tpu.memory_space<vmem>>, vector<1x128x512xf32>
    %12 = vector.shape_cast %11 : vector<1x128x512xf32> to vector<128x512xf32>
    %c1 = arith.constant 1 : index
    %c0_12 = arith.constant 0 : index
    %c0_13 = arith.constant 0 : index
    %13 = vector.load %arg7[%c1, %c0_12, %c0_13] : memref<2x128x512xf32, #tpu.memory_space<vmem>>, vector<1x128x512xf32>
    %14 = vector.shape_cast %13 : vector<1x128x512xf32> to vector<128x512xf32>
    %c0_14 = arith.constant 0 : index
    %c0_15 = arith.constant 0 : index
    %c0_16 = arith.constant 0 : index
    %15 = vector.load %arg6[%c0_14, %c0_15, %c0_16] : memref<1x128x512xf32, #tpu.memory_space<vmem>>, vector<1x128x512xf32>
    %16 = vector.shape_cast %15 : vector<1x128x512xf32> to vector<128x512xf32>
    %c1_17 = arith.constant 1 : index
    %c0_18 = arith.constant 0 : index
    %c0_19 = arith.constant 0 : index
    %17 = vector.load %arg8[%c1_17, %c0_18, %c0_19] : memref<2x1x512xf32, #tpu.memory_space<vmem>>, vector<1x1x512xf32>
    %18 = vector.shape_cast %17 : vector<1x1x512xf32> to vector<1x512xf32>
    %c0_20 = arith.constant 0 : index
    %c0_21 = arith.constant 0 : index
    %c0_22 = arith.constant 0 : index
    %19 = vector.load %arg10[%c0_20, %c0_21, %c0_22] : memref<2x8x128xf32, #tpu.memory_space<vmem>>, vector<1x8x128xf32>
    %20 = vector.shape_cast %19 : vector<1x8x128xf32> to vector<8x128xf32>
    %c1_23 = arith.constant 1 : index
    %c0_24 = arith.constant 0 : index
    %c0_25 = arith.constant 0 : index
    %21 = vector.load %arg10[%c1_23, %c0_24, %c0_25] : memref<2x8x128xf32, #tpu.memory_space<vmem>>, vector<1x8x128xf32>
    %22 = vector.shape_cast %21 : vector<1x8x128xf32> to vector<8x128xf32>
    %c0_26 = arith.constant 0 : index
    %c0_27 = arith.constant 0 : index
    %c0_28 = arith.constant 0 : index
    %23 = vector.load %arg11[%c0_26, %c0_27, %c0_28] : memref<2x8x128xf32, #tpu.memory_space<vmem>>, vector<1x8x128xf32>
    %24 = vector.shape_cast %23 : vector<1x8x128xf32> to vector<8x128xf32>
    %c1_29 = arith.constant 1 : index
    %c0_30 = arith.constant 0 : index
    %c0_31 = arith.constant 0 : index
    %25 = vector.load %arg11[%c1_29, %c0_30, %c0_31] : memref<2x8x128xf32, #tpu.memory_space<vmem>>, vector<1x8x128xf32>
    %26 = vector.shape_cast %25 : vector<1x8x128xf32> to vector<8x128xf32>
    %c0_32 = arith.constant 0 : index
    %c0_33 = arith.constant 0 : index
    %27 = vector.load %arg12[%c0_32, %c0_33] : memref<64x512xf32, #tpu.memory_space<vmem>>, vector<8x512xf32>
    %cst_34 = arith.constant dense<0.000000e+00> : vector<8x512xf32>
    %28 = tpu.matmul %20, %12, %cst_34 {dimension_numbers = #tpu.dot_dimension_numbers<[1], [0], [0], [1], [0, 0, 1, 1], [], []>} : vector<8x128xf32>, vector<128x512xf32>, vector<8x512xf32> -> vector<8x512xf32>
    %29 = arith.addf %27, %28 : vector<8x512xf32>
    %30 = vector.extract_strided_slice %29 {offsets = [0, 0], sizes = [8, 128], strides = [1, 1]} : vector<8x512xf32> to vector<8x128xf32>
    %cst_35 = arith.constant 5.000000e-01 : f32
    %31 = vector.broadcast %cst_35 : f32 to vector<8x128xf32>
    %32 = arith.mulf %31, %30 : vector<8x128xf32>
    %33 = math.tanh %32 : vector<8x128xf32>
    %cst_36 = arith.constant 5.000000e-01 : f32
    %34 = vector.broadcast %cst_36 : f32 to vector<8x128xf32>
    %35 = arith.mulf %34, %33 : vector<8x128xf32>
    %cst_37 = arith.constant 5.000000e-01 : f32
    %36 = vector.broadcast %cst_37 : f32 to vector<8x128xf32>
    %37 = arith.addf %35, %36 : vector<8x128xf32>
    %38 = vector.extract_strided_slice %29 {offsets = [0, 128], sizes = [8, 128], strides = [1, 1]} : vector<8x512xf32> to vector<8x128xf32>
    %cst_38 = arith.constant 5.000000e-01 : f32
    %39 = vector.broadcast %cst_38 : f32 to vector<8x128xf32>
    %40 = arith.mulf %39, %38 : vector<8x128xf32>
    %41 = math.tanh %40 : vector<8x128xf32>
    %cst_39 = arith.constant 5.000000e-01 : f32
    %42 = vector.broadcast %cst_39 : f32 to vector<8x128xf32>
    %43 = arith.mulf %42, %41 : vector<8x128xf32>
    %cst_40 = arith.constant 5.000000e-01 : f32
    %44 = vector.broadcast %cst_40 : f32 to vector<8x128xf32>
    %45 = arith.addf %43, %44 : vector<8x128xf32>
    %46 = vector.extract_strided_slice %29 {offsets = [0, 256], sizes = [8, 128], strides = [1, 1]} : vector<8x512xf32> to vector<8x128xf32>
    %47 = math.tanh %46 : vector<8x128xf32>
    %48 = vector.extract_strided_slice %29 {offsets = [0, 384], sizes = [8, 128], strides = [1, 1]} : vector<8x512xf32> to vector<8x128xf32>
    %cst_41 = arith.constant 5.000000e-01 : f32
    %49 = vector.broadcast %cst_41 : f32 to vector<8x128xf32>
    %50 = arith.mulf %49, %48 : vector<8x128xf32>
    %51 = math.tanh %50 : vector<8x128xf32>
    %cst_42 = arith.constant 5.000000e-01 : f32
    %52 = vector.broadcast %cst_42 : f32 to vector<8x128xf32>
    %53 = arith.mulf %52, %51 : vector<8x128xf32>
    %cst_43 = arith.constant 5.000000e-01 : f32
    %54 = vector.broadcast %cst_43 : f32 to vector<8x128xf32>
    %55 = arith.addf %53, %54 : vector<8x128xf32>
    %56 = arith.mulf %45, %24 : vector<8x128xf32>
    %57 = arith.mulf %37, %47 : vector<8x128xf32>
    %58 = arith.addf %56, %57 : vector<8x128xf32>
    %59 = math.tanh %58 : vector<8x128xf32>
    %60 = arith.mulf %55, %59 : vector<8x128xf32>
    %c8 = arith.constant 8 : index
    %c0_44 = arith.constant 0 : index
    %61 = vector.load %arg12[%c8, %c0_44] : memref<64x512xf32, #tpu.memory_space<vmem>>, vector<8x512xf32>
    %cst_45 = arith.constant dense<0.000000e+00> : vector<8x512xf32>
    %62 = tpu.matmul %60, %12, %cst_45 {dimension_numbers = #tpu.dot_dimension_numbers<[1], [0], [0], [1], [0, 0, 1, 1], [], []>} : vector<8x128xf32>, vector<128x512xf32>, vector<8x512xf32> -> vector<8x512xf32>
    %63 = arith.addf %61, %62 : vector<8x512xf32>
    %64 = vector.extract_strided_slice %63 {offsets = [0, 0], sizes = [8, 128], strides = [1, 1]} : vector<8x512xf32> to vector<8x128xf32>
    %cst_46 = arith.constant 5.000000e-01 : f32
    %65 = vector.broadcast %cst_46 : f32 to vector<8x128xf32>
    %66 = arith.mulf %65, %64 : vector<8x128xf32>
    %67 = math.tanh %66 : vector<8x128xf32>
    %cst_47 = arith.constant 5.000000e-01 : f32
    %68 = vector.broadcast %cst_47 : f32 to vector<8x128xf32>
    %69 = arith.mulf %68, %67 : vector<8x128xf32>
    %cst_48 = arith.constant 5.000000e-01 : f32
    %70 = vector.broadcast %cst_48 : f32 to vector<8x128xf32>
    %71 = arith.addf %69, %70 : vector<8x128xf32>
    %72 = vector.extract_strided_slice %63 {offsets = [0, 128], sizes = [8, 128], strides = [1, 1]} : vector<8x512xf32> to vector<8x128xf32>
    %cst_49 = arith.constant 5.000000e-01 : f32
    %73 = vector.broadcast %cst_49 : f32 to vector<8x128xf32>
    %74 = arith.mulf %73, %72 : vector<8x128xf32>
    %75 = math.tanh %74 : vector<8x128xf32>
    %cst_50 = arith.constant 5.000000e-01 : f32
    %76 = vector.broadcast %cst_50 : f32 to vector<8x128xf32>
    %77 = arith.mulf %76, %75 : vector<8x128xf32>
    %cst_51 = arith.constant 5.000000e-01 : f32
    %78 = vector.broadcast %cst_51 : f32 to vector<8x128xf32>
    %79 = arith.addf %77, %78 : vector<8x128xf32>
    %80 = vector.extract_strided_slice %63 {offsets = [0, 256], sizes = [8, 128], strides = [1, 1]} : vector<8x512xf32> to vector<8x128xf32>
    %81 = math.tanh %80 : vector<8x128xf32>
    %82 = vector.extract_strided_slice %63 {offsets = [0, 384], sizes = [8, 128], strides = [1, 1]} : vector<8x512xf32> to vector<8x128xf32>
    %cst_52 = arith.constant 5.000000e-01 : f32
    %83 = vector.broadcast %cst_52 : f32 to vector<8x128xf32>
    %84 = arith.mulf %83, %82 : vector<8x128xf32>
    %85 = math.tanh %84 : vector<8x128xf32>
    %cst_53 = arith.constant 5.000000e-01 : f32
    %86 = vector.broadcast %cst_53 : f32 to vector<8x128xf32>
    %87 = arith.mulf %86, %85 : vector<8x128xf32>
    %cst_54 = arith.constant 5.000000e-01 : f32
    %88 = vector.broadcast %cst_54 : f32 to vector<8x128xf32>
    %89 = arith.addf %87, %88 : vector<8x128xf32>
    %90 = arith.mulf %79, %58 : vector<8x128xf32>
    %91 = arith.mulf %71, %81 : vector<8x128xf32>
    %92 = arith.addf %90, %91 : vector<8x128xf32>
    %93 = math.tanh %92 : vector<8x128xf32>
    %94 = arith.mulf %89, %93 : vector<8x128xf32>
    %cst_55 = arith.constant dense<0.000000e+00> : vector<8x512xf32>
    %95 = tpu.matmul %60, %16, %cst_55 {dimension_numbers = #tpu.dot_dimension_numbers<[1], [0], [0], [1], [0, 0, 1, 1], [], []>} : vector<8x128xf32>, vector<128x512xf32>, vector<8x512xf32> -> vector<8x512xf32>
    %cst_56 = arith.constant dense<0.000000e+00> : vector<8x512xf32>
    %96 = tpu.matmul %22, %14, %cst_56 {dimension_numbers = #tpu.dot_dimension_numbers<[1], [0], [0], [1], [0, 0, 1, 1], [], []>} : vector<8x128xf32>, vector<128x512xf32>, vector<8x512xf32> -> vector<8x512xf32>
    %97 = arith.addf %95, %96 : vector<8x512xf32>
    %98 = vector.broadcast %18 : vector<1x512xf32> to vector<8x512xf32>
    %99 = arith.addf %97, %98 : vector<8x512xf32>
    %100 = vector.extract_strided_slice %99 {offsets = [0, 0], sizes = [8, 128], strides = [1, 1]} : vector<8x512xf32> to vector<8x128xf32>
    %cst_57 = arith.constant 5.000000e-01 : f32
    %101 = vector.broadcast %cst_57 : f32 to vector<8x128xf32>
    %102 = arith.mulf %101, %100 : vector<8x128xf32>
    %103 = math.tanh %102 : vector<8x128xf32>
    %cst_58 = arith.constant 5.000000e-01 : f32
    %104 = vector.broadcast %cst_58 : f32 to vector<8x128xf32>
    %105 = arith.mulf %104, %103 : vector<8x128xf32>
    %cst_59 = arith.constant 5.000000e-01 : f32
    %106 = vector.broadcast %cst_59 : f32 to vector<8x128xf32>
    %107 = arith.addf %105, %106 : vector<8x128xf32>
    %108 = vector.extract_strided_slice %99 {offsets = [0, 128], sizes = [8, 128], strides = [1, 1]} : vector<8x512xf32> to vector<8x128xf32>
    %cst_60 = arith.constant 5.000000e-01 : f32
    %109 = vector.broadcast %cst_60 : f32 to vector<8x128xf32>
    %110 = arith.mulf %109, %108 : vector<8x128xf32>
    %111 = math.tanh %110 : vector<8x128xf32>
    %cst_61 = arith.constant 5.000000e-01 : f32
    %112 = vector.broadcast %cst_61 : f32 to vector<8x128xf32>
    %113 = arith.mulf %112, %111 : vector<8x128xf32>
    %cst_62 = arith.constant 5.000000e-01 : f32
    %114 = vector.broadcast %cst_62 : f32 to vector<8x128xf32>
    %115 = arith.addf %113, %114 : vector<8x128xf32>
    %116 = vector.extract_strided_slice %99 {offsets = [0, 256], sizes = [8, 128], strides = [1, 1]} : vector<8x512xf32> to vector<8x128xf32>
    %117 = math.tanh %116 : vector<8x128xf32>
    %118 = vector.extract_strided_slice %99 {offsets = [0, 384], sizes = [8, 128], strides = [1, 1]} : vector<8x512xf32> to vector<8x128xf32>
    %cst_63 = arith.constant 5.000000e-01 : f32
    %119 = vector.broadcast %cst_63 : f32 to vector<8x128xf32>
    %120 = arith.mulf %119, %118 : vector<8x128xf32>
    %121 = math.tanh %120 : vector<8x128xf32>
    %cst_64 = arith.constant 5.000000e-01 : f32
    %122 = vector.broadcast %cst_64 : f32 to vector<8x128xf32>
    %123 = arith.mulf %122, %121 : vector<8x128xf32>
    %cst_65 = arith.constant 5.000000e-01 : f32
    %124 = vector.broadcast %cst_65 : f32 to vector<8x128xf32>
    %125 = arith.addf %123, %124 : vector<8x128xf32>
    %126 = arith.mulf %115, %26 : vector<8x128xf32>
    %127 = arith.mulf %107, %117 : vector<8x128xf32>
    %128 = arith.addf %126, %127 : vector<8x128xf32>
    %129 = math.tanh %128 : vector<8x128xf32>
    %130 = arith.mulf %125, %129 : vector<8x128xf32>
    %c0_66 = arith.constant 0 : index
    %c0_67 = arith.constant 0 : index
    %131 = vector.load %arg9[%c0_66, %c0_67] : memref<64x128xf32, #tpu.memory_space<vmem>>, vector<8x128xf32>
    tpu.vector_store %arg9[%c0_66, %c0_67], %130 {strides = array<i32>} : memref<64x128xf32, #tpu.memory_space<vmem>>, vector<8x128xf32>,
    %c16 = arith.constant 16 : index
    %c0_68 = arith.constant 0 : index
    %132 = vector.load %arg12[%c16, %c0_68] : memref<64x512xf32, #tpu.memory_space<vmem>>, vector<8x512xf32>
    %cst_69 = arith.constant dense<0.000000e+00> : vector<8x512xf32>
    %133 = tpu.matmul %94, %12, %cst_69 {dimension_numbers = #tpu.dot_dimension_numbers<[1], [0], [0], [1], [0, 0, 1, 1], [], []>} : vector<8x128xf32>, vector<128x512xf32>, vector<8x512xf32> -> vector<8x512xf32>
    %134 = arith.addf %132, %133 : vector<8x512xf32>
    %135 = vector.extract_strided_slice %134 {offsets = [0, 0], sizes = [8, 128], strides = [1, 1]} : vector<8x512xf32> to vector<8x128xf32>
    %cst_70 = arith.constant 5.000000e-01 : f32
    %136 = vector.broadcast %cst_70 : f32 to vector<8x128xf32>
    %137 = arith.mulf %136, %135 : vector<8x128xf32>
    %138 = math.tanh %137 : vector<8x128xf32>
    %cst_71 = arith.constant 5.000000e-01 : f32
    %139 = vector.broadcast %cst_71 : f32 to vector<8x128xf32>
    %140 = arith.mulf %139, %138 : vector<8x128xf32>
    %cst_72 = arith.constant 5.000000e-01 : f32
    %141 = vector.broadcast %cst_72 : f32 to vector<8x128xf32>
    %142 = arith.addf %140, %141 : vector<8x128xf32>
    %143 = vector.extract_strided_slice %134 {offsets = [0, 128], sizes = [8, 128], strides = [1, 1]} : vector<8x512xf32> to vector<8x128xf32>
    %cst_73 = arith.constant 5.000000e-01 : f32
    %144 = vector.broadcast %cst_73 : f32 to vector<8x128xf32>
    %145 = arith.mulf %144, %143 : vector<8x128xf32>
    %146 = math.tanh %145 : vector<8x128xf32>
    %cst_74 = arith.constant 5.000000e-01 : f32
    %147 = vector.broadcast %cst_74 : f32 to vector<8x128xf32>
    %148 = arith.mulf %147, %146 : vector<8x128xf32>
    %cst_75 = arith.constant 5.000000e-01 : f32
    %149 = vector.broadcast %cst_75 : f32 to vector<8x128xf32>
    %150 = arith.addf %148, %149 : vector<8x128xf32>
    %151 = vector.extract_strided_slice %134 {offsets = [0, 256], sizes = [8, 128], strides = [1, 1]} : vector<8x512xf32> to vector<8x128xf32>
    %152 = math.tanh %151 : vector<8x128xf32>
    %153 = vector.extract_strided_slice %134 {offsets = [0, 384], sizes = [8, 128], strides = [1, 1]} : vector<8x512xf32> to vector<8x128xf32>
    %cst_76 = arith.constant 5.000000e-01 : f32
    %154 = vector.broadcast %cst_76 : f32 to vector<8x128xf32>
    %155 = arith.mulf %154, %153 : vector<8x128xf32>
    %156 = math.tanh %155 : vector<8x128xf32>
    %cst_77 = arith.constant 5.000000e-01 : f32
    %157 = vector.broadcast %cst_77 : f32 to vector<8x128xf32>
    %158 = arith.mulf %157, %156 : vector<8x128xf32>
    %cst_78 = arith.constant 5.000000e-01 : f32
    %159 = vector.broadcast %cst_78 : f32 to vector<8x128xf32>
    %160 = arith.addf %158, %159 : vector<8x128xf32>
    %161 = arith.mulf %150, %92 : vector<8x128xf32>
    %162 = arith.mulf %142, %152 : vector<8x128xf32>
    %163 = arith.addf %161, %162 : vector<8x128xf32>
    %164 = math.tanh %163 : vector<8x128xf32>
    %165 = arith.mulf %160, %164 : vector<8x128xf32>
    %cst_79 = arith.constant dense<0.000000e+00> : vector<8x512xf32>
    %166 = tpu.matmul %94, %16, %cst_79 {dimension_numbers = #tpu.dot_dimension_numbers<[1], [0], [0], [1], [0, 0, 1, 1], [], []>} : vector<8x128xf32>, vector<128x512xf32>, vector<8x512xf32> -> vector<8x512xf32>
    %cst_80 = arith.constant dense<0.000000e+00> : vector<8x512xf32>
    %167 = tpu.matmul %130, %14, %cst_80 {dimension_numbers = #tpu.dot_dimension_numbers<[1], [0], [0], [1], [0, 0, 1, 1], [], []>} : vector<8x128xf32>, vector<128x512xf32>, vector<8x512xf32> -> vector<8x512xf32>
    %168 = arith.addf %166, %167 : vector<8x512xf32>
    %169 = vector.broadcast %18 : vector<1x512xf32> to vector<8x512xf32>
    %170 = arith.addf %168, %169 : vector<8x512xf32>
    %171 = vector.extract_strided_slice %170 {offsets = [0, 0], sizes = [8, 128], strides = [1, 1]} : vector<8x512xf32> to vector<8x128xf32>
    %cst_81 = arith.constant 5.000000e-01 : f32
    %172 = vector.broadcast %cst_81 : f32 to vector<8x128xf32>
    %173 = arith.mulf %172, %171 : vector<8x128xf32>
    %174 = math.tanh %173 : vector<8x128xf32>
    %cst_82 = arith.constant 5.000000e-01 : f32
    %175 = vector.broadcast %cst_82 : f32 to vector<8x128xf32>
    %176 = arith.mulf %175, %174 : vector<8x128xf32>
    %cst_83 = arith.constant 5.000000e-01 : f32
    %177 = vector.broadcast %cst_83 : f32 to vector<8x128xf32>
    %178 = arith.addf %176, %177 : vector<8x128xf32>
    %179 = vector.extract_strided_slice %170 {offsets = [0, 128], sizes = [8, 128], strides = [1, 1]} : vector<8x512xf32> to vector<8x128xf32>
    %cst_84 = arith.constant 5.000000e-01 : f32
    %180 = vector.broadcast %cst_84 : f32 to vector<8x128xf32>
    %181 = arith.mulf %180, %179 : vector<8x128xf32>
    %182 = math.tanh %181 : vector<8x128xf32>
    %cst_85 = arith.constant 5.000000e-01 : f32
    %183 = vector.broadcast %cst_85 : f32 to vector<8x128xf32>
    %184 = arith.mulf %183, %182 : vector<8x128xf32>
    %cst_86 = arith.constant 5.000000e-01 : f32
    %185 = vector.broadcast %cst_86 : f32 to vector<8x128xf32>
    %186 = arith.addf %184, %185 : vector<8x128xf32>
    %187 = vector.extract_strided_slice %170 {offsets = [0, 256], sizes = [8, 128], strides = [1, 1]} : vector<8x512xf32> to vector<8x128xf32>
    %188 = math.tanh %187 : vector<8x128xf32>
    %189 = vector.extract_strided_slice %170 {offsets = [0, 384], sizes = [8, 128], strides = [1, 1]} : vector<8x512xf32> to vector<8x128xf32>
    %cst_87 = arith.constant 5.000000e-01 : f32
    %190 = vector.broadcast %cst_87 : f32 to vector<8x128xf32>
    %191 = arith.mulf %190, %189 : vector<8x128xf32>
    %192 = math.tanh %191 : vector<8x128xf32>
    %cst_88 = arith.constant 5.000000e-01 : f32
    %193 = vector.broadcast %cst_88 : f32 to vector<8x128xf32>
    %194 = arith.mulf %193, %192 : vector<8x128xf32>
    %cst_89 = arith.constant 5.000000e-01 : f32
    %195 = vector.broadcast %cst_89 : f32 to vector<8x128xf32>
    %196 = arith.addf %194, %195 : vector<8x128xf32>
    %197 = arith.mulf %186, %128 : vector<8x128xf32>
    %198 = arith.mulf %178, %188 : vector<8x128xf32>
    %199 = arith.addf %197, %198 : vector<8x128xf32>
    %200 = math.tanh %199 : vector<8x128xf32>
    %201 = arith.mulf %196, %200 : vector<8x128xf32>
    %c8_90 = arith.constant 8 : index
    %c0_91 = arith.constant 0 : index
    %202 = vector.load %arg9[%c8_90, %c0_91] : memref<64x128xf32, #tpu.memory_space<vmem>>, vector<8x128xf32>
    tpu.vector_store %arg9[%c8_90, %c0_91], %201 {strides = array<i32>} : memref<64x128xf32, #tpu.memory_space<vmem>>, vector<8x128xf32>,
    %c24 = arith.constant 24 : index
    %c0_92 = arith.constant 0 : index
    %203 = vector.load %arg12[%c24, %c0_92] : memref<64x512xf32, #tpu.memory_space<vmem>>, vector<8x512xf32>
    %cst_93 = arith.constant dense<0.000000e+00> : vector<8x512xf32>
    %204 = tpu.matmul %165, %12, %cst_93 {dimension_numbers = #tpu.dot_dimension_numbers<[1], [0], [0], [1], [0, 0, 1, 1], [], []>} : vector<8x128xf32>, vector<128x512xf32>, vector<8x512xf32> -> vector<8x512xf32>
    %205 = arith.addf %203, %204 : vector<8x512xf32>
    %206 = vector.extract_strided_slice %205 {offsets = [0, 0], sizes = [8, 128], strides = [1, 1]} : vector<8x512xf32> to vector<8x128xf32>
    %cst_94 = arith.constant 5.000000e-01 : f32
    %207 = vector.broadcast %cst_94 : f32 to vector<8x128xf32>
    %208 = arith.mulf %207, %206 : vector<8x128xf32>
    %209 = math.tanh %208 : vector<8x128xf32>
    %cst_95 = arith.constant 5.000000e-01 : f32
    %210 = vector.broadcast %cst_95 : f32 to vector<8x128xf32>
    %211 = arith.mulf %210, %209 : vector<8x128xf32>
    %cst_96 = arith.constant 5.000000e-01 : f32
    %212 = vector.broadcast %cst_96 : f32 to vector<8x128xf32>
    %213 = arith.addf %211, %212 : vector<8x128xf32>
    %214 = vector.extract_strided_slice %205 {offsets = [0, 128], sizes = [8, 128], strides = [1, 1]} : vector<8x512xf32> to vector<8x128xf32>
    %cst_97 = arith.constant 5.000000e-01 : f32
    %215 = vector.broadcast %cst_97 : f32 to vector<8x128xf32>
    %216 = arith.mulf %215, %214 : vector<8x128xf32>
    %217 = math.tanh %216 : vector<8x128xf32>
    %cst_98 = arith.constant 5.000000e-01 : f32
    %218 = vector.broadcast %cst_98 : f32 to vector<8x128xf32>
    %219 = arith.mulf %218, %217 : vector<8x128xf32>
    %cst_99 = arith.constant 5.000000e-01 : f32
    %220 = vector.broadcast %cst_99 : f32 to vector<8x128xf32>
    %221 = arith.addf %219, %220 : vector<8x128xf32>
    %222 = vector.extract_strided_slice %205 {offsets = [0, 256], sizes = [8, 128], strides = [1, 1]} : vector<8x512xf32> to vector<8x128xf32>
    %223 = math.tanh %222 : vector<8x128xf32>
    %224 = vector.extract_strided_slice %205 {offsets = [0, 384], sizes = [8, 128], strides = [1, 1]} : vector<8x512xf32> to vector<8x128xf32>
    %cst_100 = arith.constant 5.000000e-01 : f32
    %225 = vector.broadcast %cst_100 : f32 to vector<8x128xf32>
    %226 = arith.mulf %225, %224 : vector<8x128xf32>
    %227 = math.tanh %226 : vector<8x128xf32>
    %cst_101 = arith.constant 5.000000e-01 : f32
    %228 = vector.broadcast %cst_101 : f32 to vector<8x128xf32>
    %229 = arith.mulf %228, %227 : vector<8x128xf32>
    %cst_102 = arith.constant 5.000000e-01 : f32
    %230 = vector.broadcast %cst_102 : f32 to vector<8x128xf32>
    %231 = arith.addf %229, %230 : vector<8x128xf32>
    %232 = arith.mulf %221, %163 : vector<8x128xf32>
    %233 = arith.mulf %213, %223 : vector<8x128xf32>
    %234 = arith.addf %232, %233 : vector<8x128xf32>
    %235 = math.tanh %234 : vector<8x128xf32>
    %236 = arith.mulf %231, %235 : vector<8x128xf32>
    %cst_103 = arith.constant dense<0.000000e+00> : vector<8x512xf32>
    %237 = tpu.matmul %165, %16, %cst_103 {dimension_numbers = #tpu.dot_dimension_numbers<[1], [0], [0], [1], [0, 0, 1, 1], [], []>} : vector<8x128xf32>, vector<128x512xf32>, vector<8x512xf32> -> vector<8x512xf32>
    %cst_104 = arith.constant dense<0.000000e+00> : vector<8x512xf32>
    %238 = tpu.matmul %201, %14, %cst_104 {dimension_numbers = #tpu.dot_dimension_numbers<[1], [0], [0], [1], [0, 0, 1, 1], [], []>} : vector<8x128xf32>, vector<128x512xf32>, vector<8x512xf32> -> vector<8x512xf32>
    %239 = arith.addf %237, %238 : vector<8x512xf32>
    %240 = vector.broadcast %18 : vector<1x512xf32> to vector<8x512xf32>
    %241 = arith.addf %239, %240 : vector<8x512xf32>
    %242 = vector.extract_strided_slice %241 {offsets = [0, 0], sizes = [8, 128], strides = [1, 1]} : vector<8x512xf32> to vector<8x128xf32>
    %cst_105 = arith.constant 5.000000e-01 : f32
    %243 = vector.broadcast %cst_105 : f32 to vector<8x128xf32>
    %244 = arith.mulf %243, %242 : vector<8x128xf32>
    %245 = math.tanh %244 : vector<8x128xf32>
    %cst_106 = arith.constant 5.000000e-01 : f32
    %246 = vector.broadcast %cst_106 : f32 to vector<8x128xf32>
    %247 = arith.mulf %246, %245 : vector<8x128xf32>
    %cst_107 = arith.constant 5.000000e-01 : f32
    %248 = vector.broadcast %cst_107 : f32 to vector<8x128xf32>
    %249 = arith.addf %247, %248 : vector<8x128xf32>
    %250 = vector.extract_strided_slice %241 {offsets = [0, 128], sizes = [8, 128], strides = [1, 1]} : vector<8x512xf32> to vector<8x128xf32>
    %cst_108 = arith.constant 5.000000e-01 : f32
    %251 = vector.broadcast %cst_108 : f32 to vector<8x128xf32>
    %252 = arith.mulf %251, %250 : vector<8x128xf32>
    %253 = math.tanh %252 : vector<8x128xf32>
    %cst_109 = arith.constant 5.000000e-01 : f32
    %254 = vector.broadcast %cst_109 : f32 to vector<8x128xf32>
    %255 = arith.mulf %254, %253 : vector<8x128xf32>
    %cst_110 = arith.constant 5.000000e-01 : f32
    %256 = vector.broadcast %cst_110 : f32 to vector<8x128xf32>
    %257 = arith.addf %255, %256 : vector<8x128xf32>
    %258 = vector.extract_strided_slice %241 {offsets = [0, 256], sizes = [8, 128], strides = [1, 1]} : vector<8x512xf32> to vector<8x128xf32>
    %259 = math.tanh %258 : vector<8x128xf32>
    %260 = vector.extract_strided_slice %241 {offsets = [0, 384], sizes = [8, 128], strides = [1, 1]} : vector<8x512xf32> to vector<8x128xf32>
    %cst_111 = arith.constant 5.000000e-01 : f32
    %261 = vector.broadcast %cst_111 : f32 to vector<8x128xf32>
    %262 = arith.mulf %261, %260 : vector<8x128xf32>
    %263 = math.tanh %262 : vector<8x128xf32>
    %cst_112 = arith.constant 5.000000e-01 : f32
    %264 = vector.broadcast %cst_112 : f32 to vector<8x128xf32>
    %265 = arith.mulf %264, %263 : vector<8x128xf32>
    %cst_113 = arith.constant 5.000000e-01 : f32
    %266 = vector.broadcast %cst_113 : f32 to vector<8x128xf32>
    %267 = arith.addf %265, %266 : vector<8x128xf32>
    %268 = arith.mulf %257, %199 : vector<8x128xf32>
    %269 = arith.mulf %249, %259 : vector<8x128xf32>
    %270 = arith.addf %268, %269 : vector<8x128xf32>
    %271 = math.tanh %270 : vector<8x128xf32>
    %272 = arith.mulf %267, %271 : vector<8x128xf32>
    %c16_114 = arith.constant 16 : index
    %c0_115 = arith.constant 0 : index
    %273 = vector.load %arg9[%c16_114, %c0_115] : memref<64x128xf32, #tpu.memory_space<vmem>>, vector<8x128xf32>
    tpu.vector_store %arg9[%c16_114, %c0_115], %272 {strides = array<i32>} : memref<64x128xf32, #tpu.memory_space<vmem>>, vector<8x128xf32>,
    %c32 = arith.constant 32 : index
    %c0_116 = arith.constant 0 : index
    %274 = vector.load %arg12[%c32, %c0_116] : memref<64x512xf32, #tpu.memory_space<vmem>>, vector<8x512xf32>
    %cst_117 = arith.constant dense<0.000000e+00> : vector<8x512xf32>
    %275 = tpu.matmul %236, %12, %cst_117 {dimension_numbers = #tpu.dot_dimension_numbers<[1], [0], [0], [1], [0, 0, 1, 1], [], []>} : vector<8x128xf32>, vector<128x512xf32>, vector<8x512xf32> -> vector<8x512xf32>
    %276 = arith.addf %274, %275 : vector<8x512xf32>
    %277 = vector.extract_strided_slice %276 {offsets = [0, 0], sizes = [8, 128], strides = [1, 1]} : vector<8x512xf32> to vector<8x128xf32>
    %cst_118 = arith.constant 5.000000e-01 : f32
    %278 = vector.broadcast %cst_118 : f32 to vector<8x128xf32>
    %279 = arith.mulf %278, %277 : vector<8x128xf32>
    %280 = math.tanh %279 : vector<8x128xf32>
    %cst_119 = arith.constant 5.000000e-01 : f32
    %281 = vector.broadcast %cst_119 : f32 to vector<8x128xf32>
    %282 = arith.mulf %281, %280 : vector<8x128xf32>
    %cst_120 = arith.constant 5.000000e-01 : f32
    %283 = vector.broadcast %cst_120 : f32 to vector<8x128xf32>
    %284 = arith.addf %282, %283 : vector<8x128xf32>
    %285 = vector.extract_strided_slice %276 {offsets = [0, 128], sizes = [8, 128], strides = [1, 1]} : vector<8x512xf32> to vector<8x128xf32>
    %cst_121 = arith.constant 5.000000e-01 : f32
    %286 = vector.broadcast %cst_121 : f32 to vector<8x128xf32>
    %287 = arith.mulf %286, %285 : vector<8x128xf32>
    %288 = math.tanh %287 : vector<8x128xf32>
    %cst_122 = arith.constant 5.000000e-01 : f32
    %289 = vector.broadcast %cst_122 : f32 to vector<8x128xf32>
    %290 = arith.mulf %289, %288 : vector<8x128xf32>
    %cst_123 = arith.constant 5.000000e-01 : f32
    %291 = vector.broadcast %cst_123 : f32 to vector<8x128xf32>
    %292 = arith.addf %290, %291 : vector<8x128xf32>
    %293 = vector.extract_strided_slice %276 {offsets = [0, 256], sizes = [8, 128], strides = [1, 1]} : vector<8x512xf32> to vector<8x128xf32>
    %294 = math.tanh %293 : vector<8x128xf32>
    %295 = vector.extract_strided_slice %276 {offsets = [0, 384], sizes = [8, 128], strides = [1, 1]} : vector<8x512xf32> to vector<8x128xf32>
    %cst_124 = arith.constant 5.000000e-01 : f32
    %296 = vector.broadcast %cst_124 : f32 to vector<8x128xf32>
    %297 = arith.mulf %296, %295 : vector<8x128xf32>
    %298 = math.tanh %297 : vector<8x128xf32>
    %cst_125 = arith.constant 5.000000e-01 : f32
    %299 = vector.broadcast %cst_125 : f32 to vector<8x128xf32>
    %300 = arith.mulf %299, %298 : vector<8x128xf32>
    %cst_126 = arith.constant 5.000000e-01 : f32
    %301 = vector.broadcast %cst_126 : f32 to vector<8x128xf32>
    %302 = arith.addf %300, %301 : vector<8x128xf32>
    %303 = arith.mulf %292, %234 : vector<8x128xf32>
    %304 = arith.mulf %284, %294 : vector<8x128xf32>
    %305 = arith.addf %303, %304 : vector<8x128xf32>
    %306 = math.tanh %305 : vector<8x128xf32>
    %307 = arith.mulf %302, %306 : vector<8x128xf32>
    %cst_127 = arith.constant dense<0.000000e+00> : vector<8x512xf32>
    %308 = tpu.matmul %236, %16, %cst_127 {dimension_numbers = #tpu.dot_dimension_numbers<[1], [0], [0], [1], [0, 0, 1, 1], [], []>} : vector<8x128xf32>, vector<128x512xf32>, vector<8x512xf32> -> vector<8x512xf32>
    %cst_128 = arith.constant dense<0.000000e+00> : vector<8x512xf32>
    %309 = tpu.matmul %272, %14, %cst_128 {dimension_numbers = #tpu.dot_dimension_numbers<[1], [0], [0], [1], [0, 0, 1, 1], [], []>} : vector<8x128xf32>, vector<128x512xf32>, vector<8x512xf32> -> vector<8x512xf32>
    %310 = arith.addf %308, %309 : vector<8x512xf32>
    %311 = vector.broadcast %18 : vector<1x512xf32> to vector<8x512xf32>
    %312 = arith.addf %310, %311 : vector<8x512xf32>
    %313 = vector.extract_strided_slice %312 {offsets = [0, 0], sizes = [8, 128], strides = [1, 1]} : vector<8x512xf32> to vector<8x128xf32>
    %cst_129 = arith.constant 5.000000e-01 : f32
    %314 = vector.broadcast %cst_129 : f32 to vector<8x128xf32>
    %315 = arith.mulf %314, %313 : vector<8x128xf32>
    %316 = math.tanh %315 : vector<8x128xf32>
    %cst_130 = arith.constant 5.000000e-01 : f32
    %317 = vector.broadcast %cst_130 : f32 to vector<8x128xf32>
    %318 = arith.mulf %317, %316 : vector<8x128xf32>
    %cst_131 = arith.constant 5.000000e-01 : f32
    %319 = vector.broadcast %cst_131 : f32 to vector<8x128xf32>
    %320 = arith.addf %318, %319 : vector<8x128xf32>
    %321 = vector.extract_strided_slice %312 {offsets = [0, 128], sizes = [8, 128], strides = [1, 1]} : vector<8x512xf32> to vector<8x128xf32>
    %cst_132 = arith.constant 5.000000e-01 : f32
    %322 = vector.broadcast %cst_132 : f32 to vector<8x128xf32>
    %323 = arith.mulf %322, %321 : vector<8x128xf32>
    %324 = math.tanh %323 : vector<8x128xf32>
    %cst_133 = arith.constant 5.000000e-01 : f32
    %325 = vector.broadcast %cst_133 : f32 to vector<8x128xf32>
    %326 = arith.mulf %325, %324 : vector<8x128xf32>
    %cst_134 = arith.constant 5.000000e-01 : f32
    %327 = vector.broadcast %cst_134 : f32 to vector<8x128xf32>
    %328 = arith.addf %326, %327 : vector<8x128xf32>
    %329 = vector.extract_strided_slice %312 {offsets = [0, 256], sizes = [8, 128], strides = [1, 1]} : vector<8x512xf32> to vector<8x128xf32>
    %330 = math.tanh %329 : vector<8x128xf32>
    %331 = vector.extract_strided_slice %312 {offsets = [0, 384], sizes = [8, 128], strides = [1, 1]} : vector<8x512xf32> to vector<8x128xf32>
    %cst_135 = arith.constant 5.000000e-01 : f32
    %332 = vector.broadcast %cst_135 : f32 to vector<8x128xf32>
    %333 = arith.mulf %332, %331 : vector<8x128xf32>
    %334 = math.tanh %333 : vector<8x128xf32>
    %cst_136 = arith.constant 5.000000e-01 : f32
    %335 = vector.broadcast %cst_136 : f32 to vector<8x128xf32>
    %336 = arith.mulf %335, %334 : vector<8x128xf32>
    %cst_137 = arith.constant 5.000000e-01 : f32
    %337 = vector.broadcast %cst_137 : f32 to vector<8x128xf32>
    %338 = arith.addf %336, %337 : vector<8x128xf32>
    %339 = arith.mulf %328, %270 : vector<8x128xf32>
    %340 = arith.mulf %320, %330 : vector<8x128xf32>
    %341 = arith.addf %339, %340 : vector<8x128xf32>
    %342 = math.tanh %341 : vector<8x128xf32>
    %343 = arith.mulf %338, %342 : vector<8x128xf32>
    %c24_138 = arith.constant 24 : index
    %c0_139 = arith.constant 0 : index
    %344 = vector.load %arg9[%c24_138, %c0_139] : memref<64x128xf32, #tpu.memory_space<vmem>>, vector<8x128xf32>
    tpu.vector_store %arg9[%c24_138, %c0_139], %343 {strides = array<i32>} : memref<64x128xf32, #tpu.memory_space<vmem>>, vector<8x128xf32>,
    %c40 = arith.constant 40 : index
    %c0_140 = arith.constant 0 : index
    %345 = vector.load %arg12[%c40, %c0_140] : memref<64x512xf32, #tpu.memory_space<vmem>>, vector<8x512xf32>
    %cst_141 = arith.constant dense<0.000000e+00> : vector<8x512xf32>
    %346 = tpu.matmul %307, %12, %cst_141 {dimension_numbers = #tpu.dot_dimension_numbers<[1], [0], [0], [1], [0, 0, 1, 1], [], []>} : vector<8x128xf32>, vector<128x512xf32>, vector<8x512xf32> -> vector<8x512xf32>
    %347 = arith.addf %345, %346 : vector<8x512xf32>
    %348 = vector.extract_strided_slice %347 {offsets = [0, 0], sizes = [8, 128], strides = [1, 1]} : vector<8x512xf32> to vector<8x128xf32>
    %cst_142 = arith.constant 5.000000e-01 : f32
    %349 = vector.broadcast %cst_142 : f32 to vector<8x128xf32>
    %350 = arith.mulf %349, %348 : vector<8x128xf32>
    %351 = math.tanh %350 : vector<8x128xf32>
    %cst_143 = arith.constant 5.000000e-01 : f32
    %352 = vector.broadcast %cst_143 : f32 to vector<8x128xf32>
    %353 = arith.mulf %352, %351 : vector<8x128xf32>
    %cst_144 = arith.constant 5.000000e-01 : f32
    %354 = vector.broadcast %cst_144 : f32 to vector<8x128xf32>
    %355 = arith.addf %353, %354 : vector<8x128xf32>
    %356 = vector.extract_strided_slice %347 {offsets = [0, 128], sizes = [8, 128], strides = [1, 1]} : vector<8x512xf32> to vector<8x128xf32>
    %cst_145 = arith.constant 5.000000e-01 : f32
    %357 = vector.broadcast %cst_145 : f32 to vector<8x128xf32>
    %358 = arith.mulf %357, %356 : vector<8x128xf32>
    %359 = math.tanh %358 : vector<8x128xf32>
    %cst_146 = arith.constant 5.000000e-01 : f32
    %360 = vector.broadcast %cst_146 : f32 to vector<8x128xf32>
    %361 = arith.mulf %360, %359 : vector<8x128xf32>
    %cst_147 = arith.constant 5.000000e-01 : f32
    %362 = vector.broadcast %cst_147 : f32 to vector<8x128xf32>
    %363 = arith.addf %361, %362 : vector<8x128xf32>
    %364 = vector.extract_strided_slice %347 {offsets = [0, 256], sizes = [8, 128], strides = [1, 1]} : vector<8x512xf32> to vector<8x128xf32>
    %365 = math.tanh %364 : vector<8x128xf32>
    %366 = vector.extract_strided_slice %347 {offsets = [0, 384], sizes = [8, 128], strides = [1, 1]} : vector<8x512xf32> to vector<8x128xf32>
    %cst_148 = arith.constant 5.000000e-01 : f32
    %367 = vector.broadcast %cst_148 : f32 to vector<8x128xf32>
    %368 = arith.mulf %367, %366 : vector<8x128xf32>
    %369 = math.tanh %368 : vector<8x128xf32>
    %cst_149 = arith.constant 5.000000e-01 : f32
    %370 = vector.broadcast %cst_149 : f32 to vector<8x128xf32>
    %371 = arith.mulf %370, %369 : vector<8x128xf32>
    %cst_150 = arith.constant 5.000000e-01 : f32
    %372 = vector.broadcast %cst_150 : f32 to vector<8x128xf32>
    %373 = arith.addf %371, %372 : vector<8x128xf32>
    %374 = arith.mulf %363, %305 : vector<8x128xf32>
    %375 = arith.mulf %355, %365 : vector<8x128xf32>
    %376 = arith.addf %374, %375 : vector<8x128xf32>
    %377 = math.tanh %376 : vector<8x128xf32>
    %378 = arith.mulf %373, %377 : vector<8x128xf32>
    %cst_151 = arith.constant dense<0.000000e+00> : vector<8x512xf32>
    %379 = tpu.matmul %307, %16, %cst_151 {dimension_numbers = #tpu.dot_dimension_numbers<[1], [0], [0], [1], [0, 0, 1, 1], [], []>} : vector<8x128xf32>, vector<128x512xf32>, vector<8x512xf32> -> vector<8x512xf32>
    %cst_152 = arith.constant dense<0.000000e+00> : vector<8x512xf32>
    %380 = tpu.matmul %343, %14, %cst_152 {dimension_numbers = #tpu.dot_dimension_numbers<[1], [0], [0], [1], [0, 0, 1, 1], [], []>} : vector<8x128xf32>, vector<128x512xf32>, vector<8x512xf32> -> vector<8x512xf32>
    %381 = arith.addf %379, %380 : vector<8x512xf32>
    %382 = vector.broadcast %18 : vector<1x512xf32> to vector<8x512xf32>
    %383 = arith.addf %381, %382 : vector<8x512xf32>
    %384 = vector.extract_strided_slice %383 {offsets = [0, 0], sizes = [8, 128], strides = [1, 1]} : vector<8x512xf32> to vector<8x128xf32>
    %cst_153 = arith.constant 5.000000e-01 : f32
    %385 = vector.broadcast %cst_153 : f32 to vector<8x128xf32>
    %386 = arith.mulf %385, %384 : vector<8x128xf32>
    %387 = math.tanh %386 : vector<8x128xf32>
    %cst_154 = arith.constant 5.000000e-01 : f32
    %388 = vector.broadcast %cst_154 : f32 to vector<8x128xf32>
    %389 = arith.mulf %388, %387 : vector<8x128xf32>
    %cst_155 = arith.constant 5.000000e-01 : f32
    %390 = vector.broadcast %cst_155 : f32 to vector<8x128xf32>
    %391 = arith.addf %389, %390 : vector<8x128xf32>
    %392 = vector.extract_strided_slice %383 {offsets = [0, 128], sizes = [8, 128], strides = [1, 1]} : vector<8x512xf32> to vector<8x128xf32>
    %cst_156 = arith.constant 5.000000e-01 : f32
    %393 = vector.broadcast %cst_156 : f32 to vector<8x128xf32>
    %394 = arith.mulf %393, %392 : vector<8x128xf32>
    %395 = math.tanh %394 : vector<8x128xf32>
    %cst_157 = arith.constant 5.000000e-01 : f32
    %396 = vector.broadcast %cst_157 : f32 to vector<8x128xf32>
    %397 = arith.mulf %396, %395 : vector<8x128xf32>
    %cst_158 = arith.constant 5.000000e-01 : f32
    %398 = vector.broadcast %cst_158 : f32 to vector<8x128xf32>
    %399 = arith.addf %397, %398 : vector<8x128xf32>
    %400 = vector.extract_strided_slice %383 {offsets = [0, 256], sizes = [8, 128], strides = [1, 1]} : vector<8x512xf32> to vector<8x128xf32>
    %401 = math.tanh %400 : vector<8x128xf32>
    %402 = vector.extract_strided_slice %383 {offsets = [0, 384], sizes = [8, 128], strides = [1, 1]} : vector<8x512xf32> to vector<8x128xf32>
    %cst_159 = arith.constant 5.000000e-01 : f32
    %403 = vector.broadcast %cst_159 : f32 to vector<8x128xf32>
    %404 = arith.mulf %403, %402 : vector<8x128xf32>
    %405 = math.tanh %404 : vector<8x128xf32>
    %cst_160 = arith.constant 5.000000e-01 : f32
    %406 = vector.broadcast %cst_160 : f32 to vector<8x128xf32>
    %407 = arith.mulf %406, %405 : vector<8x128xf32>
    %cst_161 = arith.constant 5.000000e-01 : f32
    %408 = vector.broadcast %cst_161 : f32 to vector<8x128xf32>
    %409 = arith.addf %407, %408 : vector<8x128xf32>
    %410 = arith.mulf %399, %341 : vector<8x128xf32>
    %411 = arith.mulf %391, %401 : vector<8x128xf32>
    %412 = arith.addf %410, %411 : vector<8x128xf32>
    %413 = math.tanh %412 : vector<8x128xf32>
    %414 = arith.mulf %409, %413 : vector<8x128xf32>
    %c32_162 = arith.constant 32 : index
    %c0_163 = arith.constant 0 : index
    %415 = vector.load %arg9[%c32_162, %c0_163] : memref<64x128xf32, #tpu.memory_space<vmem>>, vector<8x128xf32>
    tpu.vector_store %arg9[%c32_162, %c0_163], %414 {strides = array<i32>} : memref<64x128xf32, #tpu.memory_space<vmem>>, vector<8x128xf32>,
    %c48 = arith.constant 48 : index
    %c0_164 = arith.constant 0 : index
    %416 = vector.load %arg12[%c48, %c0_164] : memref<64x512xf32, #tpu.memory_space<vmem>>, vector<8x512xf32>
    %cst_165 = arith.constant dense<0.000000e+00> : vector<8x512xf32>
    %417 = tpu.matmul %378, %12, %cst_165 {dimension_numbers = #tpu.dot_dimension_numbers<[1], [0], [0], [1], [0, 0, 1, 1], [], []>} : vector<8x128xf32>, vector<128x512xf32>, vector<8x512xf32> -> vector<8x512xf32>
    %418 = arith.addf %416, %417 : vector<8x512xf32>
    %419 = vector.extract_strided_slice %418 {offsets = [0, 0], sizes = [8, 128], strides = [1, 1]} : vector<8x512xf32> to vector<8x128xf32>
    %cst_166 = arith.constant 5.000000e-01 : f32
    %420 = vector.broadcast %cst_166 : f32 to vector<8x128xf32>
    %421 = arith.mulf %420, %419 : vector<8x128xf32>
    %422 = math.tanh %421 : vector<8x128xf32>
    %cst_167 = arith.constant 5.000000e-01 : f32
    %423 = vector.broadcast %cst_167 : f32 to vector<8x128xf32>
    %424 = arith.mulf %423, %422 : vector<8x128xf32>
    %cst_168 = arith.constant 5.000000e-01 : f32
    %425 = vector.broadcast %cst_168 : f32 to vector<8x128xf32>
    %426 = arith.addf %424, %425 : vector<8x128xf32>
    %427 = vector.extract_strided_slice %418 {offsets = [0, 128], sizes = [8, 128], strides = [1, 1]} : vector<8x512xf32> to vector<8x128xf32>
    %cst_169 = arith.constant 5.000000e-01 : f32
    %428 = vector.broadcast %cst_169 : f32 to vector<8x128xf32>
    %429 = arith.mulf %428, %427 : vector<8x128xf32>
    %430 = math.tanh %429 : vector<8x128xf32>
    %cst_170 = arith.constant 5.000000e-01 : f32
    %431 = vector.broadcast %cst_170 : f32 to vector<8x128xf32>
    %432 = arith.mulf %431, %430 : vector<8x128xf32>
    %cst_171 = arith.constant 5.000000e-01 : f32
    %433 = vector.broadcast %cst_171 : f32 to vector<8x128xf32>
    %434 = arith.addf %432, %433 : vector<8x128xf32>
    %435 = vector.extract_strided_slice %418 {offsets = [0, 256], sizes = [8, 128], strides = [1, 1]} : vector<8x512xf32> to vector<8x128xf32>
    %436 = math.tanh %435 : vector<8x128xf32>
    %437 = vector.extract_strided_slice %418 {offsets = [0, 384], sizes = [8, 128], strides = [1, 1]} : vector<8x512xf32> to vector<8x128xf32>
    %cst_172 = arith.constant 5.000000e-01 : f32
    %438 = vector.broadcast %cst_172 : f32 to vector<8x128xf32>
    %439 = arith.mulf %438, %437 : vector<8x128xf32>
    %440 = math.tanh %439 : vector<8x128xf32>
    %cst_173 = arith.constant 5.000000e-01 : f32
    %441 = vector.broadcast %cst_173 : f32 to vector<8x128xf32>
    %442 = arith.mulf %441, %440 : vector<8x128xf32>
    %cst_174 = arith.constant 5.000000e-01 : f32
    %443 = vector.broadcast %cst_174 : f32 to vector<8x128xf32>
    %444 = arith.addf %442, %443 : vector<8x128xf32>
    %445 = arith.mulf %434, %376 : vector<8x128xf32>
    %446 = arith.mulf %426, %436 : vector<8x128xf32>
    %447 = arith.addf %445, %446 : vector<8x128xf32>
    %448 = math.tanh %447 : vector<8x128xf32>
    %449 = arith.mulf %444, %448 : vector<8x128xf32>
    %cst_175 = arith.constant dense<0.000000e+00> : vector<8x512xf32>
    %450 = tpu.matmul %378, %16, %cst_175 {dimension_numbers = #tpu.dot_dimension_numbers<[1], [0], [0], [1], [0, 0, 1, 1], [], []>} : vector<8x128xf32>, vector<128x512xf32>, vector<8x512xf32> -> vector<8x512xf32>
    %cst_176 = arith.constant dense<0.000000e+00> : vector<8x512xf32>
    %451 = tpu.matmul %414, %14, %cst_176 {dimension_numbers = #tpu.dot_dimension_numbers<[1], [0], [0], [1], [0, 0, 1, 1], [], []>} : vector<8x128xf32>, vector<128x512xf32>, vector<8x512xf32> -> vector<8x512xf32>
    %452 = arith.addf %450, %451 : vector<8x512xf32>
    %453 = vector.broadcast %18 : vector<1x512xf32> to vector<8x512xf32>
    %454 = arith.addf %452, %453 : vector<8x512xf32>
    %455 = vector.extract_strided_slice %454 {offsets = [0, 0], sizes = [8, 128], strides = [1, 1]} : vector<8x512xf32> to vector<8x128xf32>
    %cst_177 = arith.constant 5.000000e-01 : f32
    %456 = vector.broadcast %cst_177 : f32 to vector<8x128xf32>
    %457 = arith.mulf %456, %455 : vector<8x128xf32>
    %458 = math.tanh %457 : vector<8x128xf32>
    %cst_178 = arith.constant 5.000000e-01 : f32
    %459 = vector.broadcast %cst_178 : f32 to vector<8x128xf32>
    %460 = arith.mulf %459, %458 : vector<8x128xf32>
    %cst_179 = arith.constant 5.000000e-01 : f32
    %461 = vector.broadcast %cst_179 : f32 to vector<8x128xf32>
    %462 = arith.addf %460, %461 : vector<8x128xf32>
    %463 = vector.extract_strided_slice %454 {offsets = [0, 128], sizes = [8, 128], strides = [1, 1]} : vector<8x512xf32> to vector<8x128xf32>
    %cst_180 = arith.constant 5.000000e-01 : f32
    %464 = vector.broadcast %cst_180 : f32 to vector<8x128xf32>
    %465 = arith.mulf %464, %463 : vector<8x128xf32>
    %466 = math.tanh %465 : vector<8x128xf32>
    %cst_181 = arith.constant 5.000000e-01 : f32
    %467 = vector.broadcast %cst_181 : f32 to vector<8x128xf32>
    %468 = arith.mulf %467, %466 : vector<8x128xf32>
    %cst_182 = arith.constant 5.000000e-01 : f32
    %469 = vector.broadcast %cst_182 : f32 to vector<8x128xf32>
    %470 = arith.addf %468, %469 : vector<8x128xf32>
    %471 = vector.extract_strided_slice %454 {offsets = [0, 256], sizes = [8, 128], strides = [1, 1]} : vector<8x512xf32> to vector<8x128xf32>
    %472 = math.tanh %471 : vector<8x128xf32>
    %473 = vector.extract_strided_slice %454 {offsets = [0, 384], sizes = [8, 128], strides = [1, 1]} : vector<8x512xf32> to vector<8x128xf32>
    %cst_183 = arith.constant 5.000000e-01 : f32
    %474 = vector.broadcast %cst_183 : f32 to vector<8x128xf32>
    %475 = arith.mulf %474, %473 : vector<8x128xf32>
    %476 = math.tanh %475 : vector<8x128xf32>
    %cst_184 = arith.constant 5.000000e-01 : f32
    %477 = vector.broadcast %cst_184 : f32 to vector<8x128xf32>
    %478 = arith.mulf %477, %476 : vector<8x128xf32>
    %cst_185 = arith.constant 5.000000e-01 : f32
    %479 = vector.broadcast %cst_185 : f32 to vector<8x128xf32>
    %480 = arith.addf %478, %479 : vector<8x128xf32>
    %481 = arith.mulf %470, %412 : vector<8x128xf32>
    %482 = arith.mulf %462, %472 : vector<8x128xf32>
    %483 = arith.addf %481, %482 : vector<8x128xf32>
    %484 = math.tanh %483 : vector<8x128xf32>
    %485 = arith.mulf %480, %484 : vector<8x128xf32>
    %c40_186 = arith.constant 40 : index
    %c0_187 = arith.constant 0 : index
    %486 = vector.load %arg9[%c40_186, %c0_187] : memref<64x128xf32, #tpu.memory_space<vmem>>, vector<8x128xf32>
    tpu.vector_store %arg9[%c40_186, %c0_187], %485 {strides = array<i32>} : memref<64x128xf32, #tpu.memory_space<vmem>>, vector<8x128xf32>,
    %c56 = arith.constant 56 : index
    %c0_188 = arith.constant 0 : index
    %487 = vector.load %arg12[%c56, %c0_188] : memref<64x512xf32, #tpu.memory_space<vmem>>, vector<8x512xf32>
    %cst_189 = arith.constant dense<0.000000e+00> : vector<8x512xf32>
    %488 = tpu.matmul %449, %12, %cst_189 {dimension_numbers = #tpu.dot_dimension_numbers<[1], [0], [0], [1], [0, 0, 1, 1], [], []>} : vector<8x128xf32>, vector<128x512xf32>, vector<8x512xf32> -> vector<8x512xf32>
    %489 = arith.addf %487, %488 : vector<8x512xf32>
    %490 = vector.extract_strided_slice %489 {offsets = [0, 0], sizes = [8, 128], strides = [1, 1]} : vector<8x512xf32> to vector<8x128xf32>
    %cst_190 = arith.constant 5.000000e-01 : f32
    %491 = vector.broadcast %cst_190 : f32 to vector<8x128xf32>
    %492 = arith.mulf %491, %490 : vector<8x128xf32>
    %493 = math.tanh %492 : vector<8x128xf32>
    %cst_191 = arith.constant 5.000000e-01 : f32
    %494 = vector.broadcast %cst_191 : f32 to vector<8x128xf32>
    %495 = arith.mulf %494, %493 : vector<8x128xf32>
    %cst_192 = arith.constant 5.000000e-01 : f32
    %496 = vector.broadcast %cst_192 : f32 to vector<8x128xf32>
    %497 = arith.addf %495, %496 : vector<8x128xf32>
    %498 = vector.extract_strided_slice %489 {offsets = [0, 128], sizes = [8, 128], strides = [1, 1]} : vector<8x512xf32> to vector<8x128xf32>
    %cst_193 = arith.constant 5.000000e-01 : f32
    %499 = vector.broadcast %cst_193 : f32 to vector<8x128xf32>
    %500 = arith.mulf %499, %498 : vector<8x128xf32>
    %501 = math.tanh %500 : vector<8x128xf32>
    %cst_194 = arith.constant 5.000000e-01 : f32
    %502 = vector.broadcast %cst_194 : f32 to vector<8x128xf32>
    %503 = arith.mulf %502, %501 : vector<8x128xf32>
    %cst_195 = arith.constant 5.000000e-01 : f32
    %504 = vector.broadcast %cst_195 : f32 to vector<8x128xf32>
    %505 = arith.addf %503, %504 : vector<8x128xf32>
    %506 = vector.extract_strided_slice %489 {offsets = [0, 256], sizes = [8, 128], strides = [1, 1]} : vector<8x512xf32> to vector<8x128xf32>
    %507 = math.tanh %506 : vector<8x128xf32>
    %508 = vector.extract_strided_slice %489 {offsets = [0, 384], sizes = [8, 128], strides = [1, 1]} : vector<8x512xf32> to vector<8x128xf32>
    %cst_196 = arith.constant 5.000000e-01 : f32
    %509 = vector.broadcast %cst_196 : f32 to vector<8x128xf32>
    %510 = arith.mulf %509, %508 : vector<8x128xf32>
    %511 = math.tanh %510 : vector<8x128xf32>
    %cst_197 = arith.constant 5.000000e-01 : f32
    %512 = vector.broadcast %cst_197 : f32 to vector<8x128xf32>
    %513 = arith.mulf %512, %511 : vector<8x128xf32>
    %cst_198 = arith.constant 5.000000e-01 : f32
    %514 = vector.broadcast %cst_198 : f32 to vector<8x128xf32>
    %515 = arith.addf %513, %514 : vector<8x128xf32>
    %516 = arith.mulf %505, %447 : vector<8x128xf32>
    %517 = arith.mulf %497, %507 : vector<8x128xf32>
    %518 = arith.addf %516, %517 : vector<8x128xf32>
    %519 = math.tanh %518 : vector<8x128xf32>
    %520 = arith.mulf %515, %519 : vector<8x128xf32>
    %cst_199 = arith.constant dense<0.000000e+00> : vector<8x512xf32>
    %521 = tpu.matmul %449, %16, %cst_199 {dimension_numbers = #tpu.dot_dimension_numbers<[1], [0], [0], [1], [0, 0, 1, 1], [], []>} : vector<8x128xf32>, vector<128x512xf32>, vector<8x512xf32> -> vector<8x512xf32>
    %cst_200 = arith.constant dense<0.000000e+00> : vector<8x512xf32>
    %522 = tpu.matmul %485, %14, %cst_200 {dimension_numbers = #tpu.dot_dimension_numbers<[1], [0], [0], [1], [0, 0, 1, 1], [], []>} : vector<8x128xf32>, vector<128x512xf32>, vector<8x512xf32> -> vector<8x512xf32>
    %523 = arith.addf %521, %522 : vector<8x512xf32>
    %524 = vector.broadcast %18 : vector<1x512xf32> to vector<8x512xf32>
    %525 = arith.addf %523, %524 : vector<8x512xf32>
    %526 = vector.extract_strided_slice %525 {offsets = [0, 0], sizes = [8, 128], strides = [1, 1]} : vector<8x512xf32> to vector<8x128xf32>
    %cst_201 = arith.constant 5.000000e-01 : f32
    %527 = vector.broadcast %cst_201 : f32 to vector<8x128xf32>
    %528 = arith.mulf %527, %526 : vector<8x128xf32>
    %529 = math.tanh %528 : vector<8x128xf32>
    %cst_202 = arith.constant 5.000000e-01 : f32
    %530 = vector.broadcast %cst_202 : f32 to vector<8x128xf32>
    %531 = arith.mulf %530, %529 : vector<8x128xf32>
    %cst_203 = arith.constant 5.000000e-01 : f32
    %532 = vector.broadcast %cst_203 : f32 to vector<8x128xf32>
    %533 = arith.addf %531, %532 : vector<8x128xf32>
    %534 = vector.extract_strided_slice %525 {offsets = [0, 128], sizes = [8, 128], strides = [1, 1]} : vector<8x512xf32> to vector<8x128xf32>
    %cst_204 = arith.constant 5.000000e-01 : f32
    %535 = vector.broadcast %cst_204 : f32 to vector<8x128xf32>
    %536 = arith.mulf %535, %534 : vector<8x128xf32>
    %537 = math.tanh %536 : vector<8x128xf32>
    %cst_205 = arith.constant 5.000000e-01 : f32
    %538 = vector.broadcast %cst_205 : f32 to vector<8x128xf32>
    %539 = arith.mulf %538, %537 : vector<8x128xf32>
    %cst_206 = arith.constant 5.000000e-01 : f32
    %540 = vector.broadcast %cst_206 : f32 to vector<8x128xf32>
    %541 = arith.addf %539, %540 : vector<8x128xf32>
    %542 = vector.extract_strided_slice %525 {offsets = [0, 256], sizes = [8, 128], strides = [1, 1]} : vector<8x512xf32> to vector<8x128xf32>
    %543 = math.tanh %542 : vector<8x128xf32>
    %544 = vector.extract_strided_slice %525 {offsets = [0, 384], sizes = [8, 128], strides = [1, 1]} : vector<8x512xf32> to vector<8x128xf32>
    %cst_207 = arith.constant 5.000000e-01 : f32
    %545 = vector.broadcast %cst_207 : f32 to vector<8x128xf32>
    %546 = arith.mulf %545, %544 : vector<8x128xf32>
    %547 = math.tanh %546 : vector<8x128xf32>
    %cst_208 = arith.constant 5.000000e-01 : f32
    %548 = vector.broadcast %cst_208 : f32 to vector<8x128xf32>
    %549 = arith.mulf %548, %547 : vector<8x128xf32>
    %cst_209 = arith.constant 5.000000e-01 : f32
    %550 = vector.broadcast %cst_209 : f32 to vector<8x128xf32>
    %551 = arith.addf %549, %550 : vector<8x128xf32>
    %552 = arith.mulf %541, %483 : vector<8x128xf32>
    %553 = arith.mulf %533, %543 : vector<8x128xf32>
    %554 = arith.addf %552, %553 : vector<8x128xf32>
    %555 = math.tanh %554 : vector<8x128xf32>
    %556 = arith.mulf %551, %555 : vector<8x128xf32>
    %c48_210 = arith.constant 48 : index
    %c0_211 = arith.constant 0 : index
    %557 = vector.load %arg9[%c48_210, %c0_211] : memref<64x128xf32, #tpu.memory_space<vmem>>, vector<8x128xf32>
    tpu.vector_store %arg9[%c48_210, %c0_211], %556 {strides = array<i32>} : memref<64x128xf32, #tpu.memory_space<vmem>>, vector<8x128xf32>,
    %cst_212 = arith.constant dense<0.000000e+00> : vector<8x512xf32>
    %558 = tpu.matmul %520, %16, %cst_212 {dimension_numbers = #tpu.dot_dimension_numbers<[1], [0], [0], [1], [0, 0, 1, 1], [], []>} : vector<8x128xf32>, vector<128x512xf32>, vector<8x512xf32> -> vector<8x512xf32>
    %cst_213 = arith.constant dense<0.000000e+00> : vector<8x512xf32>
    %559 = tpu.matmul %556, %14, %cst_213 {dimension_numbers = #tpu.dot_dimension_numbers<[1], [0], [0], [1], [0, 0, 1, 1], [], []>} : vector<8x128xf32>, vector<128x512xf32>, vector<8x512xf32> -> vector<8x512xf32>
    %560 = arith.addf %558, %559 : vector<8x512xf32>
    %561 = vector.broadcast %18 : vector<1x512xf32> to vector<8x512xf32>
    %562 = arith.addf %560, %561 : vector<8x512xf32>
    %563 = vector.extract_strided_slice %562 {offsets = [0, 0], sizes = [8, 128], strides = [1, 1]} : vector<8x512xf32> to vector<8x128xf32>
    %cst_214 = arith.constant 5.000000e-01 : f32
    %564 = vector.broadcast %cst_214 : f32 to vector<8x128xf32>
    %565 = arith.mulf %564, %563 : vector<8x128xf32>
    %566 = math.tanh %565 : vector<8x128xf32>
    %cst_215 = arith.constant 5.000000e-01 : f32
    %567 = vector.broadcast %cst_215 : f32 to vector<8x128xf32>
    %568 = arith.mulf %567, %566 : vector<8x128xf32>
    %cst_216 = arith.constant 5.000000e-01 : f32
    %569 = vector.broadcast %cst_216 : f32 to vector<8x128xf32>
    %570 = arith.addf %568, %569 : vector<8x128xf32>
    %571 = vector.extract_strided_slice %562 {offsets = [0, 128], sizes = [8, 128], strides = [1, 1]} : vector<8x512xf32> to vector<8x128xf32>
    %cst_217 = arith.constant 5.000000e-01 : f32
    %572 = vector.broadcast %cst_217 : f32 to vector<8x128xf32>
    %573 = arith.mulf %572, %571 : vector<8x128xf32>
    %574 = math.tanh %573 : vector<8x128xf32>
    %cst_218 = arith.constant 5.000000e-01 : f32
    %575 = vector.broadcast %cst_218 : f32 to vector<8x128xf32>
    %576 = arith.mulf %575, %574 : vector<8x128xf32>
    %cst_219 = arith.constant 5.000000e-01 : f32
    %577 = vector.broadcast %cst_219 : f32 to vector<8x128xf32>
    %578 = arith.addf %576, %577 : vector<8x128xf32>
    %579 = vector.extract_strided_slice %562 {offsets = [0, 256], sizes = [8, 128], strides = [1, 1]} : vector<8x512xf32> to vector<8x128xf32>
    %580 = math.tanh %579 : vector<8x128xf32>
    %581 = vector.extract_strided_slice %562 {offsets = [0, 384], sizes = [8, 128], strides = [1, 1]} : vector<8x512xf32> to vector<8x128xf32>
    %cst_220 = arith.constant 5.000000e-01 : f32
    %582 = vector.broadcast %cst_220 : f32 to vector<8x128xf32>
    %583 = arith.mulf %582, %581 : vector<8x128xf32>
    %584 = math.tanh %583 : vector<8x128xf32>
    %cst_221 = arith.constant 5.000000e-01 : f32
    %585 = vector.broadcast %cst_221 : f32 to vector<8x128xf32>
    %586 = arith.mulf %585, %584 : vector<8x128xf32>
    %cst_222 = arith.constant 5.000000e-01 : f32
    %587 = vector.broadcast %cst_222 : f32 to vector<8x128xf32>
    %588 = arith.addf %586, %587 : vector<8x128xf32>
    %589 = arith.mulf %578, %554 : vector<8x128xf32>
    %590 = arith.mulf %570, %580 : vector<8x128xf32>
    %591 = arith.addf %589, %590 : vector<8x128xf32>
    %592 = math.tanh %591 : vector<8x128xf32>
    %593 = arith.mulf %588, %592 : vector<8x128xf32>
    %c56_223 = arith.constant 56 : index
    %c0_224 = arith.constant 0 : index
    %594 = vector.load %arg9[%c56_223, %c0_224] : memref<64x128xf32, #tpu.memory_space<vmem>>, vector<8x128xf32>
    tpu.vector_store %arg9[%c56_223, %c0_224], %593 {strides = array<i32>} : memref<64x128xf32, #tpu.memory_space<vmem>>, vector<8x128xf32>,
    %c0_225 = arith.constant 0 : index
    %c0_226 = arith.constant 0 : index
    %c0_227 = arith.constant 0 : index
    %595 = vector.load %arg10[%c0_225, %c0_226, %c0_227] : memref<2x8x128xf32, #tpu.memory_space<vmem>>, vector<1x8x128xf32>
    %596 = vector.shape_cast %595 : vector<1x8x128xf32> to vector<8x128xf32>
    %597 = vector.shape_cast %520 : vector<8x128xf32> to vector<1x8x128xf32>
    tpu.vector_store %arg10[%c0_225, %c0_226, %c0_227], %597 {strides = array<i32>} : memref<2x8x128xf32, #tpu.memory_space<vmem>>, vector<1x8x128xf32>,
    %c0_228 = arith.constant 0 : index
    %c0_229 = arith.constant 0 : index
    %c0_230 = arith.constant 0 : index
    %598 = vector.load %arg11[%c0_228, %c0_229, %c0_230] : memref<2x8x128xf32, #tpu.memory_space<vmem>>, vector<1x8x128xf32>
    %599 = vector.shape_cast %598 : vector<1x8x128xf32> to vector<8x128xf32>
    %600 = vector.shape_cast %518 : vector<8x128xf32> to vector<1x8x128xf32>
    tpu.vector_store %arg11[%c0_228, %c0_229, %c0_230], %600 {strides = array<i32>} : memref<2x8x128xf32, #tpu.memory_space<vmem>>, vector<1x8x128xf32>,
    %c1_231 = arith.constant 1 : index
    %c0_232 = arith.constant 0 : index
    %c0_233 = arith.constant 0 : index
    %601 = vector.load %arg10[%c1_231, %c0_232, %c0_233] : memref<2x8x128xf32, #tpu.memory_space<vmem>>, vector<1x8x128xf32>
    %602 = vector.shape_cast %601 : vector<1x8x128xf32> to vector<8x128xf32>
    %603 = vector.shape_cast %593 : vector<8x128xf32> to vector<1x8x128xf32>
    tpu.vector_store %arg10[%c1_231, %c0_232, %c0_233], %603 {strides = array<i32>} : memref<2x8x128xf32, #tpu.memory_space<vmem>>, vector<1x8x128xf32>,
    %c1_234 = arith.constant 1 : index
    %c0_235 = arith.constant 0 : index
    %c0_236 = arith.constant 0 : index
    %604 = vector.load %arg11[%c1_234, %c0_235, %c0_236] : memref<2x8x128xf32, #tpu.memory_space<vmem>>, vector<1x8x128xf32>
    %605 = vector.shape_cast %604 : vector<1x8x128xf32> to vector<8x128xf32>
    %606 = vector.shape_cast %591 : vector<8x128xf32> to vector<1x8x128xf32>
    tpu.vector_store %arg11[%c1_234, %c0_235, %c0_236], %606 {strides = array<i32>} : memref<2x8x128xf32, #tpu.memory_space<vmem>>, vector<1x8x128xf32>,
    return
  }
  func.func @transform_0(%arg0: i32, %arg1: i32) -> (i32, i32) {
    %c1_i32 = arith.constant 1 : i32
    %0 = arith.muli %arg0, %c1_i32 : i32
    %1 = arith.addi %0, %arg1 : i32
    %c0_i32 = arith.constant 0 : i32
    %c0_i32_0 = arith.constant 0 : i32
    return %1, %c0_i32 : i32, i32
  }
  func.func @transform_1(%arg0: i32, %arg1: i32) -> (i32, i32, i32) {
    %c0_i32 = arith.constant 0 : i32
    %c0_i32_0 = arith.constant 0 : i32
    %c0_i32_1 = arith.constant 0 : i32
    return %c0_i32, %arg0, %c0_i32_0 : i32, i32, i32
  }
  func.func @transform_2(%arg0: i32, %arg1: i32) -> (i32, i32, i32) {
    %c0_i32 = arith.constant 0 : i32
    %c0_i32_0 = arith.constant 0 : i32
    %c0_i32_1 = arith.constant 0 : i32
    return %c0_i32, %arg0, %c0_i32_0 : i32, i32, i32
  }
  func.func @transform_3(%arg0: i32, %arg1: i32) -> (i32, i32) {
    %c0_i32 = arith.constant 0 : i32
    %c0_i32_0 = arith.constant 0 : i32
    %c0_i32_1 = arith.constant 0 : i32
    return %c0_i32, %c0_i32_0 : i32, i32
  }
  func.func @transform_4(%arg0: i32, %arg1: i32) -> (i32, i32, i32) {
    %c0_i32 = arith.constant 0 : i32
    %c0_i32_0 = arith.constant 0 : i32
    %c0_i32_1 = arith.constant 0 : i32
    %c0_i32_2 = arith.constant 0 : i32
    return %c0_i32, %c0_i32_0, %c0_i32_1 : i32, i32, i32
  }
  func.func @transform_5(%arg0: i32, %arg1: i32) -> (i32, i32, i32) {
    %c0_i32 = arith.constant 0 : i32
    %c0_i32_0 = arith.constant 0 : i32
    %c0_i32_1 = arith.constant 0 : i32
    %c0_i32_2 = arith.constant 0 : i32
    return %c0_i32, %c0_i32_0, %c0_i32_1 : i32, i32, i32
  }
  func.func @transform_6(%arg0: i32, %arg1: i32) -> (i32, i32, i32) {
    %c0_i32 = arith.constant 0 : i32
    %c0_i32_0 = arith.constant 0 : i32
    %c0_i32_1 = arith.constant 0 : i32
    %c0_i32_2 = arith.constant 0 : i32
    return %c0_i32, %c0_i32_0, %c0_i32_1 : i32, i32, i32
  }
  func.func @transform_7(%arg0: i32, %arg1: i32) -> (i32, i32) {
    %c1_i32 = arith.constant 1 : i32
    %0 = arith.muli %arg0, %c1_i32 : i32
    %1 = arith.addi %0, %arg1 : i32
    %c0_i32 = arith.constant 0 : i32
    %c0_i32_0 = arith.constant 0 : i32
    return %1, %c0_i32 : i32, i32
  }
  func.func @transform_8(%arg0: i32, %arg1: i32) -> (i32, i32, i32) {
    %c0_i32 = arith.constant 0 : i32
    %c0_i32_0 = arith.constant 0 : i32
    %c0_i32_1 = arith.constant 0 : i32
    return %c0_i32, %arg0, %c0_i32_0 : i32, i32, i32
  }
  func.func @transform_9(%arg0: i32, %arg1: i32) -> (i32, i32, i32) {
    %c0_i32 = arith.constant 0 : i32
    %c0_i32_0 = arith.constant 0 : i32
    %c0_i32_1 = arith.constant 0 : i32
    return %c0_i32, %arg0, %c0_i32_0 : i32, i32, i32
  }
}

</mosaic_0001>

<llo_original>
// kernel: tpu_custom_call.1
$region0: #{tpu_custom_call.1}
  #allocation0 [shape = 'u32[]', space=smem, size = 0x4, offset = 0x4, fixed_abs, tag = 'smem constant byte address 0x4 - core index']
  #allocation1 [shape = 'u32[144,128]{1,0:T(1,128)}', space=vmem, size = 0x12000, scoped, tag = 'internal scratch']
  #allocation2 [shape = 'f32[64,512]{1,0:T(8,128)}', space=vmem, size = 0x20000, scoped, tag = 'scratch operand']
  %s0 = inlined_call_operand.hbm [shape: f32[64,128], index: 0, kind: input, shape index: {}]
  %s1 = inlined_call_operand.hbm [shape: f32[2,8,128], index: 1, kind: input, shape index: {}]
  %s2 = inlined_call_operand.hbm [shape: f32[2,8,128], index: 2, kind: input, shape index: {}]
  %s3 = inlined_call_operand.hbm [shape: f32[128,512], index: 3, kind: input, shape index: {}]
  %s4 = inlined_call_operand.hbm [shape: f32[1,128,512], index: 4, kind: input, shape index: {}]
  %s5 = inlined_call_operand.hbm [shape: f32[2,128,512], index: 5, kind: input, shape index: {}]
  %s6 = inlined_call_operand.vmem [shape: f32[2,1,512], index: 6, kind: input, shape index: {}]
  %s7 = inlined_call_operand.hbm [shape: f32[64,128], index: 7, kind: output, shape index: {0}]
  %s8 = inlined_call_operand.hbm [shape: f32[2,8,128], index: 8, kind: output, shape index: {1}]
  %s9 = inlined_call_operand.hbm [shape: f32[2,8,128], index: 9, kind: output, shape index: {2}]
  %10 = xla_tuple %s7, %s8, %s9
  %s11 = sld [smem:[#allocation0]]
  $region82: #{tpu_custom_call.1} parent=0
    _
  %s13 = ssub.s32 1, %s11
  %s14 = scalar_select 0, %s13, %s11
  $region1: #{tpu_custom_call.1} parent=0
    #allocation3 [shape = 'u8[32768]{0}', space=vmem, size = 0x8000, scoped, tag = 'input window, operand 0, single buffered']
    #allocation4 [shape = 's32[1]{0}', space=sflag, size = 0x4, scoped, tag = 'scoped memory for tpu_custom_call.1']
    #allocation5 [shape = 's32[1]{0}', space=sflag, size = 0x4, scoped, tag = 'scoped memory for tpu_custom_call.1']
    #allocation6 [shape = 'u8[8192]{0}', space=vmem, size = 0x2000, scoped, tag = 'input window, operand 1, single buffered']
    #allocation7 [shape = 's32[1]{0}', space=sflag, size = 0x4, scoped, tag = 'scoped memory for tpu_custom_call.1']
    #allocation8 [shape = 'u8[8192]{0}', space=vmem, size = 0x2000, scoped, tag = 'input window, operand 2, single buffered']
    #allocation9 [shape = 'u8[262144]{0}', space=vmem, size = 0x40000, scoped, tag = 'input window, operand 3, single buffered']
    #allocation10 [shape = 's32[1]{0}', space=sflag, size = 0x4, scoped, tag = 'scoped memory for tpu_custom_call.1']
    #allocation11 [shape = 'u8[262144]{0}', space=vmem, size = 0x40000, scoped, tag = 'input window, operand 4, single buffered']
    #allocation12 [shape = 'u8[524288]{0}', space=vmem, size = 0x80000, scoped, tag = 'input window, operand 5, single buffered']
    #allocation13 [shape = 's32[1]{0}', space=sflag, size = 0x4, scoped, tag = 'scoped memory for tpu_custom_call.1']
    #allocation14 [shape = 'u8[32768]{0}', space=vmem, size = 0x8000, scoped, tag = 'output window, operand 0, single buffered']
    #allocation15 [shape = 'u8[8192]{0}', space=vmem, size = 0x2000, scoped, tag = 'output window, operand 1, single buffered']
    #allocation16 [shape = 's32[1]{0}', space=sflag, size = 0x4, scoped, tag = 'scoped memory for tpu_custom_call.1']
    #allocation17 [shape = 'u8[8192]{0}', space=vmem, size = 0x2000, scoped, tag = 'output window, operand 2, single buffered']
    %15 = vsyncpa [#allocation4], 0
    %16 = vsyncpa [#allocation7], 0
    %17 = vsyncpa [#allocation10], 0
    %18 = vsyncpa [#allocation13], 0
    %19 = vsyncpa [#allocation5], 0
    %20 = vsyncpa [#allocation16], 0
    // Predicated region
    $region2: #{tpu_custom_call.1} parent=1 // pred_check
      _
    $region3: #{tpu_custom_call.1} parent=1 // pred_check_branch
      %22 = sbr.rel (0) target = $region5
    $region4: #{tpu_custom_call.1} parent=1 // pred_region
      %s23 = sadd.s32 0, 0
      %s24 = smul.u32 8, %s23
      %s26 = ssub.s32 1024, 1024
      %27 = vsyncadd [#allocation4], %s26
      %s28 = smul.addr %s24, 128
      %s29 = scalar_lea.hbm %s0, %s28
      %s30 = sshll.u32 [#allocation3], 4
      %s31 = int_to_ptr.vmem [resolvable:$true] %s30
      %36 = dma.hbm_to_vmem [thread:$0]  %s29, 1024, %s31, [#allocation4], 128, 128, 8
    $region5: #{tpu_custom_call.1} parent=1 // pred_fallthru
      _
    // Predicated region
    $region6: #{tpu_custom_call.1} parent=1 // pred_check
      _
    $region7: #{tpu_custom_call.1} parent=1 // pred_check_branch
      %38 = sbr.rel (0) target = $region9
    $region8: #{tpu_custom_call.1} parent=1 // pred_region
      %s40 = ssub.s32 256, 256
      %41 = vsyncadd [#allocation7], %s40
      %s42 = sshll.u32 [#allocation6], 4
      %s43 = int_to_ptr.vmem [resolvable:$true] %s42
      %48 = dma.hbm_to_vmem [thread:$0]  %s1, 256, %s43, [#allocation7], 128, 128, 8
    $region9: #{tpu_custom_call.1} parent=1 // pred_fallthru
      _
    // Predicated region
    $region10: #{tpu_custom_call.1} parent=1 // pred_check
      _
    $region11: #{tpu_custom_call.1} parent=1 // pred_check_branch
      %50 = sbr.rel (0) target = $region13
    $region12: #{tpu_custom_call.1} parent=1 // pred_region
      %s52 = ssub.s32 256, 256
      %53 = vsyncadd [#allocation7], %s52
      %s54 = sshll.u32 [#allocation8], 4
      %s55 = int_to_ptr.vmem [resolvable:$true] %s54
      %60 = dma.hbm_to_vmem [thread:$0]  %s2, 256, %s55, [#allocation7], 128, 128, 8
    $region13: #{tpu_custom_call.1} parent=1 // pred_fallthru
      _
    // Predicated region
    $region14: #{tpu_custom_call.1} parent=1 // pred_check
      _
    $region15: #{tpu_custom_call.1} parent=1 // pred_check_branch
      %62 = sbr.rel (0) target = $region17
    $region16: #{tpu_custom_call.1} parent=1 // pred_region
      %s64 = ssub.s32 8192, 8192
      %65 = vsyncadd [#allocation10], %s64
      %s66 = sshll.u32 [#allocation9], 4
      %s67 = int_to_ptr.vmem [resolvable:$true] %s66
      %72 = dma.hbm_to_vmem [thread:$0]  %s3, 8192, %s67, [#allocation10], 512, 512, 32
    $region17: #{tpu_custom_call.1} parent=1 // pred_fallthru
      _
    // Predicated region
    $region18: #{tpu_custom_call.1} parent=1 // pred_check
      _
    $region19: #{tpu_custom_call.1} parent=1 // pred_check_branch
      %74 = sbr.rel (0) target = $region21
    $region20: #{tpu_custom_call.1} parent=1 // pred_region
      %s76 = ssub.s32 8192, 8192
      %77 = vsyncadd [#allocation10], %s76
      %s78 = sshll.u32 [#allocation11], 4
      %s79 = int_to_ptr.vmem [resolvable:$true] %s78
      %84 = dma.hbm_to_vmem [thread:$0]  %s4, 8192, %s79, [#allocation10], 512, 512, 32
    $region21: #{tpu_custom_call.1} parent=1 // pred_fallthru
      _
    // Predicated region
    $region22: #{tpu_custom_call.1} parent=1 // pred_check
      _
    $region23: #{tpu_custom_call.1} parent=1 // pred_check_branch
      %86 = sbr.rel (0) target = $region25
    $region24: #{tpu_custom_call.1} parent=1 // pred_region
      %s88 = ssub.s32 16384, 16384
      %89 = vsyncadd [#allocation13], %s88
      %s90 = sshll.u32 [#allocation12], 4
      %s91 = int_to_ptr.vmem [resolvable:$true] %s90
      %96 = dma.hbm_to_vmem [thread:$0]  %s5, 16384, %s91, [#allocation13], 512, 512, 32
    $region25: #{tpu_custom_call.1} parent=1 // pred_fallthru
      _
    // Predicated region
    $region26: #{tpu_custom_call.1} parent=1 // pred_check
      _
    $region27: #{tpu_custom_call.1} parent=1 // pred_check_branch
      %98 = sbr.rel (0) target = $region29
    $region28: #{tpu_custom_call.1} parent=1 // pred_region
      _
    $region29: #{tpu_custom_call.1} parent=1 // pred_fallthru
      _
    // Predicated region
    $region30: #{tpu_custom_call.1} parent=1 // pred_check
      _
    $region31: #{tpu_custom_call.1} parent=1 // pred_check_branch
      %100 = sbr.rel (0) target = $region33
    $region32: #{tpu_custom_call.1} parent=1 // pred_region
      %101 = dma.done [#allocation4], 1024
    $region33: #{tpu_custom_call.1} parent=1 // pred_fallthru
      _
    // Predicated region
    $region34: #{tpu_custom_call.1} parent=1 // pred_check
      _
    $region35: #{tpu_custom_call.1} parent=1 // pred_check_branch
      %103 = sbr.rel (0) target = $region37
    $region36: #{tpu_custom_call.1} parent=1 // pred_region
      %104 = dma.done [#allocation7], 256
    $region37: #{tpu_custom_call.1} parent=1 // pred_fallthru
      _
    // Predicated region
    $region38: #{tpu_custom_call.1} parent=1 // pred_check
      _
    $region39: #{tpu_custom_call.1} parent=1 // pred_check_branch
      %106 = sbr.rel (0) target = $region41
    $region40: #{tpu_custom_call.1} parent=1 // pred_region
      %107 = dma.done [#allocation7], 256
    $region41: #{tpu_custom_call.1} parent=1 // pred_fallthru
      _
    // Predicated region
    $region42: #{tpu_custom_call.1} parent=1 // pred_check
      _
    $region43: #{tpu_custom_call.1} parent=1 // pred_check_branch
      %109 = sbr.rel (0) target = $region45
    $region44: #{tpu_custom_call.1} parent=1 // pred_region
      %110 = dma.done [#allocation10], 8192
    $region45: #{tpu_custom_call.1} parent=1 // pred_fallthru
      _
    // Predicated region
    $region46: #{tpu_custom_call.1} parent=1 // pred_check
      _
    $region47: #{tpu_custom_call.1} parent=1 // pred_check_branch
      %112 = sbr.rel (0) target = $region49
    $region48: #{tpu_custom_call.1} parent=1 // pred_region
      %113 = dma.done [#allocation10], 8192
    $region49: #{tpu_custom_call.1} parent=1 // pred_fallthru
      _
    // Predicated region
    $region50: #{tpu_custom_call.1} parent=1 // pred_check
      _
    $region51: #{tpu_custom_call.1} parent=1 // pred_check_branch
      %115 = sbr.rel (0) target = $region53
    $region52: #{tpu_custom_call.1} parent=1 // pred_region
      %116 = dma.done [#allocation13], 16384
    $region53: #{tpu_custom_call.1} parent=1 // pred_fallthru
      _
    %s117 = sadd.s32 0, 0
    %s118 = smul.u32 8, %s117
    %s119 = sadd.s32 0, 0
    %s120 = smul.u32 8, %s119
    %p121 = scmp.eq.s32.totalorder 0, 0
    // Predicated region
    $region54: #{tpu_custom_call.1} parent=1 // pred_check
      %p122 = pneg %p121
    $region55: #{tpu_custom_call.1} parent=1 // pred_check_branch
      %124 = sbr.rel (%p122) target = $region57
    $region56: #{tpu_custom_call.1} parent=1 // pred_region
      %v125 = vld [vmem:[#allocation6] sm:$0xff]
      %v126 = vld [vmem:[#allocation6 + $0x8] sm:$0xff]
      %127 = vst [vmem:[#allocation15] sm:$0xff] %v125
      %128 = vst [vmem:[#allocation15 + $0x8] sm:$0xff] %v126
      %v129 = vld [vmem:[#allocation8] sm:$0xff]
      %v130 = vld [vmem:[#allocation8 + $0x8] sm:$0xff]
      %131 = vst [vmem:[#allocation17] sm:$0xff] %v129
      %132 = vst [vmem:[#allocation17 + $0x8] sm:$0xff] %v130
    $region57: #{tpu_custom_call.1} parent=1 // pred_fallthru
      _
    %v133 = vld [vmem:[#allocation3] sm:$0xff]
    %v134 = vld [vmem:[#allocation3 + $0x8] sm:$0xff]
    %v135 = vld [vmem:[#allocation3 + $0x10] sm:$0xff]
    %v136 = vld [vmem:[#allocation3 + $0x18] sm:$0xff]
    %v137 = vld [vmem:[#allocation3 + $0x20] sm:$0xff]
    %v138 = vld [vmem:[#allocation3 + $0x28] sm:$0xff]
    %v139 = vld [vmem:[#allocation3 + $0x30] sm:$0xff]
    %v140 = vld [vmem:[#allocation3 + $0x38] sm:$0xff]
    %v141 = vld [vmem:[#allocation9] sm:$0xff]
    %v142 = vld [vmem:[#allocation9 + $0x8] sm:$0xff]
    %v143 = vld [vmem:[#allocation9 + $0x10] sm:$0xff]
    %v144 = vld [vmem:[#allocation9 + $0x18] sm:$0xff]
    %v145 = vld [vmem:[#allocation9 + $0x20] sm:$0xff]
    %v146 = vld [vmem:[#allocation9 + $0x28] sm:$0xff]
    %v147 = vld [vmem:[#allocation9 + $0x30] sm:$0xff]
    %v148 = vld [vmem:[#allocation9 + $0x38] sm:$0xff]
    %v149 = vld [vmem:[#allocation9 + $0x40] sm:$0xff]
    %v150 = vld [vmem:[#allocation9 + $0x48] sm:$0xff]
    %v151 = vld [vmem:[#allocation9 + $0x50] sm:$0xff]
    %v152 = vld [vmem:[#allocation9 + $0x58] sm:$0xff]
    %v153 = vld [vmem:[#allocation9 + $0x60] sm:$0xff]
    %v154 = vld [vmem:[#allocation9 + $0x68] sm:$0xff]
    %v155 = vld [vmem:[#allocation9 + $0x70] sm:$0xff]
    %v156 = vld [vmem:[#allocation9 + $0x78] sm:$0xff]
    %v157 = vld [vmem:[#allocation9 + $0x80] sm:$0xff]
    %v158 = vld [vmem:[#allocation9 + $0x88] sm:$0xff]
    %v159 = vld [vmem:[#allocation9 + $0x90] sm:$0xff]
    %v160 = vld [vmem:[#allocation9 + $0x98] sm:$0xff]
    %v161 = vld [vmem:[#allocation9 + $0xa0] sm:$0xff]
    %v162 = vld [vmem:[#allocation9 + $0xa8] sm:$0xff]
    %v163 = vld [vmem:[#allocation9 + $0xb0] sm:$0xff]
    %v164 = vld [vmem:[#allocation9 + $0xb8] sm:$0xff]
    %v165 = vld [vmem:[#allocation9 + $0xc0] sm:$0xff]
    %v166 = vld [vmem:[#allocation9 + $0xc8] sm:$0xff]
    %v167 = vld [vmem:[#allocation9 + $0xd0] sm:$0xff]
    %v168 = vld [vmem:[#allocation9 + $0xd8] sm:$0xff]
    %v169 = vld [vmem:[#allocation9 + $0xe0] sm:$0xff]
    %v170 = vld [vmem:[#allocation9 + $0xe8] sm:$0xff]
    %v171 = vld [vmem:[#allocation9 + $0xf0] sm:$0xff]
    %v172 = vld [vmem:[#allocation9 + $0xf8] sm:$0xff]
    %v173 = vld [vmem:[#allocation9 + $0x100] sm:$0xff]
    %v174 = vld [vmem:[#allocation9 + $0x108] sm:$0xff]
    %v175 = vld [vmem:[#allocation9 + $0x110] sm:$0xff]
    %v176 = vld [vmem:[#allocation9 + $0x118] sm:$0xff]
    %v177 = vld [vmem:[#allocation9 + $0x120] sm:$0xff]
    %v178 = vld [vmem:[#allocation9 + $0x128] sm:$0xff]
    %v179 = vld [vmem:[#allocation9 + $0x130] sm:$0xff]
    %v180 = vld [vmem:[#allocation9 + $0x138] sm:$0xff]
    %v181 = vld [vmem:[#allocation9 + $0x140] sm:$0xff]
    %v182 = vld [vmem:[#allocation9 + $0x148] sm:$0xff]
    %v183 = vld [vmem:[#allocation9 + $0x150] sm:$0xff]
    %v184 = vld [vmem:[#allocation9 + $0x158] sm:$0xff]
    %v185 = vld [vmem:[#allocation9 + $0x160] sm:$0xff]
    %v186 = vld [vmem:[#allocation9 + $0x168] sm:$0xff]
    %v187 = vld [vmem:[#allocation9 + $0x170] sm:$0xff]
    %v188 = vld [vmem:[#allocation9 + $0x178] sm:$0xff]
    %v189 = vld [vmem:[#allocation9 + $0x180] sm:$0xff]
    %v190 = vld [vmem:[#allocation9 + $0x188] sm:$0xff]
    %v191 = vld [vmem:[#allocation9 + $0x190] sm:$0xff]
    %v192 = vld [vmem:[#allocation9 + $0x198] sm:$0xff]
    %v193 = vld [vmem:[#allocation9 + $0x1a0] sm:$0xff]
    %v194 = vld [vmem:[#allocation9 + $0x1a8] sm:$0xff]
    %v195 = vld [vmem:[#allocation9 + $0x1b0] sm:$0xff]
    %v196 = vld [vmem:[#allocation9 + $0x1b8] sm:$0xff]
    %v197 = vld [vmem:[#allocation9 + $0x1c0] sm:$0xff]
    %v198 = vld [vmem:[#allocation9 + $0x1c8] sm:$0xff]
    %v199 = vld [vmem:[#allocation9 + $0x1d0] sm:$0xff]
    %v200 = vld [vmem:[#allocation9 + $0x1d8] sm:$0xff]
    %v201 = vld [vmem:[#allocation9 + $0x1e0] sm:$0xff]
    %v202 = vld [vmem:[#allocation9 + $0x1e8] sm:$0xff]
    %v203 = vld [vmem:[#allocation9 + $0x1f0] sm:$0xff]
    %v204 = vld [vmem:[#allocation9 + $0x1f8] sm:$0xff]
    %v205 = vld [vmem:[%s6] sm:$0xf]
    %v207 = vlaneseq
    %v208 = vshrl.u32 %v207, 7
    %v209 = vsub.s32 0, %v208
    %v210 = vrot.slane %v205, %v209
    %v211 = vlaneseq
    %v212 = vshrl.u32 %v211, 7
    %v213 = vsub.s32 1, %v212
    %v214 = vrot.slane %v205, %v213
    %v215 = vlaneseq
    %v216 = vshrl.u32 %v215, 7
    %v217 = vsub.s32 2, %v216
    %v218 = vrot.slane %v205, %v217
    %v219 = vlaneseq
    %v220 = vshrl.u32 %v219, 7
    %v221 = vsub.s32 3, %v220
    %v222 = vrot.slane %v205, %v221
    %227 = vmatprep.subr.mxu0 %v142
    %228 = vmatpush1.msra.mxu0 %v141
    %229 = vmatprep.subr.mxu0 %v146
    %230 = vmatpush1.msra.mxu0 %v145
    %231 = vmatprep.subr.mxu0 %v150
    %232 = vmatpush1.msra.mxu0 %v149
    %233 = vmatprep.subr.mxu0 %v154
    %234 = vmatpush1.msra.mxu0 %v153
    %235 = vmatprep.subr.mxu0 %v158
    %236 = vmatpush1.msra.mxu0 %v157
    %237 = vmatprep.subr.mxu0 %v162
    %238 = vmatpush1.msra.mxu0 %v161
    %239 = vmatprep.subr.mxu0 %v166
    %240 = vmatpush1.msra.mxu0 %v165
    %241 = vmatprep.subr.mxu0 %v170
    %242 = vmatpush1.msra.mxu0 %v169
    %243 = vmatprep.subr.mxu0 %v174
    %244 = vmatpush1.msra.mxu0 %v173
    %245 = vmatprep.subr.mxu0 %v178
    %246 = vmatpush1.msra.mxu0 %v177
    %247 = vmatprep.subr.mxu0 %v182
    %248 = vmatpush1.msra.mxu0 %v181
    %249 = vmatprep.subr.mxu0 %v186
    %250 = vmatpush1.msra.mxu0 %v185
    %251 = vmatprep.subr.mxu0 %v190
    %252 = vmatpush1.msra.mxu0 %v189
    %253 = vmatprep.subr.mxu0 %v194
    %254 = vmatpush1.msra.mxu0 %v193
    %255 = vmatprep.subr.mxu0 %v198
    %256 = vmatpush1.msra.mxu0 %v197
    %257 = vmatprep.subr.mxu0 %v202
    %258 = vmatpush1.msra.mxu0 %v201
    %259 = vmatprep.subr.mxu0 0.0
    %260 = vmatpush1.msra.mxu0 0.0
    %261 = vmatprep.subr.mxu0 0.0
    %262 = vmatpush1.msra.mxu0 0.0
    %263 = vmatprep.subr.mxu0 0.0
    %264 = vmatpush1.msra.mxu0 0.0
    %265 = vmatprep.subr.mxu0 0.0
    %266 = vmatpush1.msra.mxu0 0.0
    %267 = vmatprep.subr.mxu0 0.0
    %268 = vmatpush1.msra.mxu0 0.0
    %269 = vmatprep.subr.mxu0 0.0
    %270 = vmatpush1.msra.mxu0 0.0
    %271 = vmatprep.subr.mxu0 0.0
    %272 = vmatpush1.msra.mxu0 0.0
    %273 = vmatprep.subr.mxu0 0.0
    %274 = vmatpush1.msra.mxu0 0.0
    %275 = vmatprep.subr.mxu0 0.0
    %276 = vmatpush1.msra.mxu0 0.0
    %277 = vmatprep.subr.mxu0 0.0
    %278 = vmatpush1.msra.mxu0 0.0
    %279 = vmatprep.subr.mxu0 0.0
    %280 = vmatpush1.msra.mxu0 0.0
    %281 = vmatprep.subr.mxu0 0.0
    %282 = vmatpush1.msra.mxu0 0.0
    %283 = vmatprep.subr.mxu0 0.0
    %284 = vmatpush1.msra.mxu0 0.0
    %285 = vmatprep.subr.mxu0 0.0
    %286 = vmatpush1.msra.mxu0 0.0
    %287 = vmatprep.subr.mxu0 0.0
    %288 = vmatpush1.msra.mxu0 0.0
    %289 = vmatprep.subr.mxu0 0.0
    %290 = vmatpush1.msra.mxu0 0.0
    %291 = vmatprep.mubr.f32.mxu0 0.0
    %292 = vmatmul.mubr.f32.gmra.mrb[0].mxu0 %v133
    %v293 = vpop.f32.mrb[0].mxu0
    %v294 = vadd.f32 %v210, %v293
    %v295 = vpop.f32.mrb[0].mxu0
    %v296 = vadd.f32 %v214, %v295
    %297 = vmatprep.mubr.f32.mxu0 0.0
    %298 = vmatmul.mubr.f32.gmra.mrb[0].mxu0 %v134
    %v299 = vpop.f32.mrb[0].mxu0
    %v300 = vadd.f32 %v210, %v299
    %v301 = vpop.f32.mrb[0].mxu0
    %v302 = vadd.f32 %v214, %v301
    %303 = vmatprep.mubr.f32.mxu0 0.0
    %304 = vmatmul.mubr.f32.gmra.mrb[0].mxu0 %v135
    %v305 = vpop.f32.mrb[0].mxu0
    %v306 = vadd.f32 %v210, %v305
    %v307 = vpop.f32.mrb[0].mxu0
    %v308 = vadd.f32 %v214, %v307
    %309 = vmatprep.mubr.f32.mxu0 0.0
    %310 = vmatmul.mubr.f32.gmra.mrb[0].mxu0 %v136
    %v311 = vpop.f32.mrb[0].mxu0
    %v312 = vadd.f32 %v210, %v311
    %v313 = vpop.f32.mrb[0].mxu0
    %v314 = vadd.f32 %v214, %v313
    %315 = vmatprep.mubr.f32.mxu0 0.0
    %316 = vmatmul.mubr.f32.gmra.mrb[0].mxu0 %v137
    %v317 = vpop.f32.mrb[0].mxu0
    %v318 = vadd.f32 %v210, %v317
    %v319 = vpop.f32.mrb[0].mxu0
    %v320 = vadd.f32 %v214, %v319
    %321 = vmatprep.mubr.f32.mxu0 0.0
    %322 = vmatmul.mubr.f32.gmra.mrb[0].mxu0 %v138
    %v323 = vpop.f32.mrb[0].mxu0
    %v324 = vadd.f32 %v210, %v323
    %v325 = vpop.f32.mrb[0].mxu0
    %v326 = vadd.f32 %v214, %v325
    %327 = vmatprep.mubr.f32.mxu0 0.0
    %328 = vmatmul.mubr.f32.gmra.mrb[0].mxu0 %v139
    %v329 = vpop.f32.mrb[0].mxu0
    %v330 = vadd.f32 %v210, %v329
    %v331 = vpop.f32.mrb[0].mxu0
    %v332 = vadd.f32 %v214, %v331
    %333 = vmatprep.mubr.f32.mxu0 0.0
    %334 = vmatmul.mubr.f32.gmra.mrb[0].mxu0 %v140
    %v335 = vpop.f32.mrb[0].mxu0
    %v336 = vadd.f32 %v210, %v335
    %v337 = vpop.f32.mrb[0].mxu0
    %v338 = vadd.f32 %v214, %v337
    %339 = vdwg.mxu0
    %340 = vmatprep.subr.mxu0 %v144
    %341 = vmatpush1.msra.mxu0 %v143
    %342 = vmatprep.subr.mxu0 %v148
    %343 = vmatpush1.msra.mxu0 %v147
    %344 = vmatprep.subr.mxu0 %v152
    %345 = vmatpush1.msra.mxu0 %v151
    %346 = vmatprep.subr.mxu0 %v156
    %347 = vmatpush1.msra.mxu0 %v155
    %348 = vmatprep.subr.mxu0 %v160
    %349 = vmatpush1.msra.mxu0 %v159
    %350 = vmatprep.subr.mxu0 %v164
    %351 = vmatpush1.msra.mxu0 %v163
    %352 = vmatprep.subr.mxu0 %v168
    %353 = vmatpush1.msra.mxu0 %v167
    %354 = vmatprep.subr.mxu0 %v172
    %355 = vmatpush1.msra.mxu0 %v171
    %356 = vmatprep.subr.mxu0 %v176
    %357 = vmatpush1.msra.mxu0 %v175
    %358 = vmatprep.subr.mxu0 %v180
    %359 = vmatpush1.msra.mxu0 %v179
    %360 = vmatprep.subr.mxu0 %v184
    %361 = vmatpush1.msra.mxu0 %v183
    %362 = vmatprep.subr.mxu0 %v188
    %363 = vmatpush1.msra.mxu0 %v187
    %364 = vmatprep.subr.mxu0 %v192
    %365 = vmatpush1.msra.mxu0 %v191
    %366 = vmatprep.subr.mxu0 %v196
    %367 = vmatpush1.msra.mxu0 %v195
    %368 = vmatprep.subr.mxu0 %v200
    %369 = vmatpush1.msra.mxu0 %v199
    %370 = vmatprep.subr.mxu0 %v204
    %371 = vmatpush1.msra.mxu0 %v203
    %372 = vmatprep.subr.mxu0 0.0
    %373 = vmatpush1.msra.mxu0 0.0
    %374 = vmatprep.subr.mxu0 0.0
    %375 = vmatpush1.msra.mxu0 0.0
    %376 = vmatprep.subr.mxu0 0.0
    %377 = vmatpush1.msra.mxu0 0.0
    %378 = vmatprep.subr.mxu0 0.0
    %379 = vmatpush1.msra.mxu0 0.0
    %380 = vmatprep.subr.mxu0 0.0
    %381 = vmatpush1.msra.mxu0 0.0
    %382 = vmatprep.subr.mxu0 0.0
    %383 = vmatpush1.msra.mxu0 0.0
    %384 = vmatprep.subr.mxu0 0.0
    %385 = vmatpush1.msra.mxu0 0.0
    %386 = vmatprep.subr.mxu0 0.0
    %387 = vmatpush1.msra.mxu0 0.0
    %388 = vmatprep.subr.mxu0 0.0
    %389 = vmatpush1.msra.mxu0 0.0
    %390 = vmatprep.subr.mxu0 0.0
    %391 = vmatpush1.msra.mxu0 0.0
    %392 = vmatprep.subr.mxu0 0.0
    %393 = vmatpush1.msra.mxu0 0.0
    %394 = vmatprep.subr.mxu0 0.0
    %395 = vmatpush1.msra.mxu0 0.0
    %396 = vmatprep.subr.mxu0 0.0
    %397 = vmatpush1.msra.mxu0 0.0
    %398 = vmatprep.subr.mxu0 0.0
    %399 = vmatpush1.msra.mxu0 0.0
    %400 = vmatprep.subr.mxu0 0.0
    %401 = vmatpush1.msra.mxu0 0.0
    %402 = vmatprep.subr.mxu0 0.0
    %403 = vmatpush1.msra.mxu0 0.0
    %404 = vmatprep.mubr.f32.mxu0 0.0
    %405 = vmatmul.mubr.f32.gmra.mrb[0].mxu0 %v133
    %v406 = vpop.f32.mrb[0].mxu0
    %v407 = vadd.f32 %v218, %v406
    %v408 = vpop.f32.mrb[0].mxu0
    %v409 = vadd.f32 %v222, %v408
    %410 = vmatprep.mubr.f32.mxu0 0.0
    %411 = vmatmul.mubr.f32.gmra.mrb[0].mxu0 %v134
    %v412 = vpop.f32.mrb[0].mxu0
    %v413 = vadd.f32 %v218, %v412
    %v414 = vpop.f32.mrb[0].mxu0
    %v415 = vadd.f32 %v222, %v414
    %416 = vmatprep.mubr.f32.mxu0 0.0
    %417 = vmatmul.mubr.f32.gmra.mrb[0].mxu0 %v135
    %v418 = vpop.f32.mrb[0].mxu0
    %v419 = vadd.f32 %v218, %v418
    %v420 = vpop.f32.mrb[0].mxu0
    %v421 = vadd.f32 %v222, %v420
    %422 = vmatprep.mubr.f32.mxu0 0.0
    %423 = vmatmul.mubr.f32.gmra.mrb[0].mxu0 %v136
    %v424 = vpop.f32.mrb[0].mxu0
    %v425 = vadd.f32 %v218, %v424
    %v426 = vpop.f32.mrb[0].mxu0
    %v427 = vadd.f32 %v222, %v426
    %428 = vmatprep.mubr.f32.mxu0 0.0
    %429 = vmatmul.mubr.f32.gmra.mrb[0].mxu0 %v137
    %v430 = vpop.f32.mrb[0].mxu0
    %v431 = vadd.f32 %v218, %v430
    %v432 = vpop.f32.mrb[0].mxu0
    %v433 = vadd.f32 %v222, %v432
    %434 = vmatprep.mubr.f32.mxu0 0.0
    %435 = vmatmul.mubr.f32.gmra.mrb[0].mxu0 %v138
    %v436 = vpop.f32.mrb[0].mxu0
    %v437 = vadd.f32 %v218, %v436
    %v438 = vpop.f32.mrb[0].mxu0
    %v439 = vadd.f32 %v222, %v438
    %440 = vmatprep.mubr.f32.mxu0 0.0
    %441 = vmatmul.mubr.f32.gmra.mrb[0].mxu0 %v139
    %v442 = vpop.f32.mrb[0].mxu0
    %v443 = vadd.f32 %v218, %v442
    %v444 = vpop.f32.mrb[0].mxu0
    %v445 = vadd.f32 %v222, %v444
    %446 = vmatprep.mubr.f32.mxu0 0.0
    %447 = vmatmul.mubr.f32.gmra.mrb[0].mxu0 %v140
    %v448 = vpop.f32.mrb[0].mxu0
    %v449 = vadd.f32 %v218, %v448
    %v450 = vpop.f32.mrb[0].mxu0
    %v451 = vadd.f32 %v222, %v450
    %452 = vdwg.mxu0
    %453 = vst [vmem:[#allocation2] sm:$0xff] %v294
    %454 = vst [vmem:[#allocation2 + $0x8] sm:$0xff] %v296
    %455 = vst [vmem:[#allocation2 + $0x10] sm:$0xff] %v407
    %456 = vst [vmem:[#allocation2 + $0x18] sm:$0xff] %v409
    %457 = vst [vmem:[#allocation2 + $0x20] sm:$0xff] %v300
    %458 = vst [vmem:[#allocation2 + $0x28] sm:$0xff] %v302
    %459 = vst [vmem:[#allocation2 + $0x30] sm:$0xff] %v413
    %460 = vst [vmem:[#allocation2 + $0x38] sm:$0xff] %v415
    %461 = vst [vmem:[#allocation2 + $0x40] sm:$0xff] %v306
    %462 = vst [vmem:[#allocation2 + $0x48] sm:$0xff] %v308
    %463 = vst [vmem:[#allocation2 + $0x50] sm:$0xff] %v419
    %464 = vst [vmem:[#allocation2 + $0x58] sm:$0xff] %v421
    %465 = vst [vmem:[#allocation2 + $0x60] sm:$0xff] %v312
    %466 = vst [vmem:[#allocation2 + $0x68] sm:$0xff] %v314
    %467 = vst [vmem:[#allocation2 + $0x70] sm:$0xff] %v425
    %468 = vst [vmem:[#allocation2 + $0x78] sm:$0xff] %v427
    %469 = vst [vmem:[#allocation2 + $0x80] sm:$0xff] %v318
    %470 = vst [vmem:[#allocation2 + $0x88] sm:$0xff] %v320
    %471 = vst [vmem:[#allocation2 + $0x90] sm:$0xff] %v431
    %472 = vst [vmem:[#allocation2 + $0x98] sm:$0xff] %v433
    %473 = vst [vmem:[#allocation2 + $0xa0] sm:$0xff] %v324
    %474 = vst [vmem:[#allocation2 + $0xa8] sm:$0xff] %v326
    %475 = vst [vmem:[#allocation2 + $0xb0] sm:$0xff] %v437
    %476 = vst [vmem:[#allocation2 + $0xb8] sm:$0xff] %v439
    %477 = vst [vmem:[#allocation2 + $0xc0] sm:$0xff] %v330
    %478 = vst [vmem:[#allocation2 + $0xc8] sm:$0xff] %v332
    %479 = vst [vmem:[#allocation2 + $0xd0] sm:$0xff] %v443
    %480 = vst [vmem:[#allocation2 + $0xd8] sm:$0xff] %v445
    %481 = vst [vmem:[#allocation2 + $0xe0] sm:$0xff] %v336
    %482 = vst [vmem:[#allocation2 + $0xe8] sm:$0xff] %v338
    %483 = vst [vmem:[#allocation2 + $0xf0] sm:$0xff] %v449
    %484 = vst [vmem:[#allocation2 + $0xf8] sm:$0xff] %v451
    %v485 = vld [vmem:[#allocation12] sm:$0xff]
    %v486 = vld [vmem:[#allocation12 + $0x8] sm:$0xff]
    %v487 = vld [vmem:[#allocation12 + $0x10] sm:$0xff]
    %v488 = vld [vmem:[#allocation12 + $0x18] sm:$0xff]
    %v489 = vld [vmem:[#allocation12 + $0x20] sm:$0xff]
    %v490 = vld [vmem:[#allocation12 + $0x28] sm:$0xff]
    %v491 = vld [vmem:[#allocation12 + $0x30] sm:$0xff]
    %v492 = vld [vmem:[#allocation12 + $0x38] sm:$0xff]
    %v493 = vld [vmem:[#allocation12 + $0x40] sm:$0xff]
    %v494 = vld [vmem:[#allocation12 + $0x48] sm:$0xff]
    %v495 = vld [vmem:[#allocation12 + $0x50] sm:$0xff]
    %v496 = vld [vmem:[#allocation12 + $0x58] sm:$0xff]
    %v497 = vld [vmem:[#allocation12 + $0x60] sm:$0xff]
    %v498 = vld [vmem:[#allocation12 + $0x68] sm:$0xff]
    %v499 = vld [vmem:[#allocation12 + $0x70] sm:$0xff]
    %v500 = vld [vmem:[#allocation12 + $0x78] sm:$0xff]
    %v501 = vld [vmem:[#allocation12 + $0x80] sm:$0xff]
    %v502 = vld [vmem:[#allocation12 + $0x88] sm:$0xff]
    %v503 = vld [vmem:[#allocation12 + $0x90] sm:$0xff]
    %v504 = vld [vmem:[#allocation12 + $0x98] sm:$0xff]
    %v505 = vld [vmem:[#allocation12 + $0xa0] sm:$0xff]
    %v506 = vld [vmem:[#allocation12 + $0xa8] sm:$0xff]
    %v507 = vld [vmem:[#allocation12 + $0xb0] sm:$0xff]
    %v508 = vld [vmem:[#allocation12 + $0xb8] sm:$0xff]
    %v509 = vld [vmem:[#allocation12 + $0xc0] sm:$0xff]
    %v510 = vld [vmem:[#allocation12 + $0xc8] sm:$0xff]
    %v511 = vld [vmem:[#allocation12 + $0xd0] sm:$0xff]
    %v512 = vld [vmem:[#allocation12 + $0xd8] sm:$0xff]
    %v513 = vld [vmem:[#allocation12 + $0xe0] sm:$0xff]
    %v514 = vld [vmem:[#allocation12 + $0xe8] sm:$0xff]
    %v515 = vld [vmem:[#allocation12 + $0xf0] sm:$0xff]
    %v516 = vld [vmem:[#allocation12 + $0xf8] sm:$0xff]
    %v517 = vld [vmem:[#allocation12 + $0x100] sm:$0xff]
    %v518 = vld [vmem:[#allocation12 + $0x108] sm:$0xff]
    %v519 = vld [vmem:[#allocation12 + $0x110] sm:$0xff]
    %v520 = vld [vmem:[#allocation12 + $0x118] sm:$0xff]
    %v521 = vld [vmem:[#allocation12 + $0x120] sm:$0xff]
    %v522 = vld [vmem:[#allocation12 + $0x128] sm:$0xff]
    %v523 = vld [vmem:[#allocation12 + $0x130] sm:$0xff]
    %v524 = vld [vmem:[#allocation12 + $0x138] sm:$0xff]
    %v525 = vld [vmem:[#allocation12 + $0x140] sm:$0xff]
    %v526 = vld [vmem:[#allocation12 + $0x148] sm:$0xff]
    %v527 = vld [vmem:[#allocation12 + $0x150] sm:$0xff]
    %v528 = vld [vmem:[#allocation12 + $0x158] sm:$0xff]
    %v529 = vld [vmem:[#allocation12 + $0x160] sm:$0xff]
    %v530 = vld [vmem:[#allocation12 + $0x168] sm:$0xff]
    %v531 = vld [vmem:[#allocation12 + $0x170] sm:$0xff]
    %v532 = vld [vmem:[#allocation12 + $0x178] sm:$0xff]
    %v533 = vld [vmem:[#allocation12 + $0x180] sm:$0xff]
    %v534 = vld [vmem:[#allocation12 + $0x188] sm:$0xff]
    %v535 = vld [vmem:[#allocation12 + $0x190] sm:$0xff]
    %v536 = vld [vmem:[#allocation12 + $0x198] sm:$0xff]
    %v537 = vld [vmem:[#allocation12 + $0x1a0] sm:$0xff]
    %v538 = vld [vmem:[#allocation12 + $0x1a8] sm:$0xff]
    %v539 = vld [vmem:[#allocation12 + $0x1b0] sm:$0xff]
    %v540 = vld [vmem:[#allocation12 + $0x1b8] sm:$0xff]
    %v541 = vld [vmem:[#allocation12 + $0x1c0] sm:$0xff]
    %v542 = vld [vmem:[#allocation12 + $0x1c8] sm:$0xff]
    %v543 = vld [vmem:[#allocation12 + $0x1d0] sm:$0xff]
    %v544 = vld [vmem:[#allocation12 + $0x1d8] sm:$0xff]
    %v545 = vld [vmem:[#allocation12 + $0x1e0] sm:$0xff]
    %v546 = vld [vmem:[#allocation12 + $0x1e8] sm:$0xff]
    %v547 = vld [vmem:[#allocation12 + $0x1f0] sm:$0xff]
    %v548 = vld [vmem:[#allocation12 + $0x1f8] sm:$0xff]
    %s549 = scalar_lea.vmem [#allocation12], 512
    %v550 = vld [vmem:[%s549] sm:$0xff]
    %v551 = vld [vmem:[%s549 + $0x8] sm:$0xff]
    %v552 = vld [vmem:[%s549 + $0x10] sm:$0xff]
    %v553 = vld [vmem:[%s549 + $0x18] sm:$0xff]
    %v554 = vld [vmem:[%s549 + $0x20] sm:$0xff]
    %v555 = vld [vmem:[%s549 + $0x28] sm:$0xff]
    %v556 = vld [vmem:[%s549 + $0x30] sm:$0xff]
    %v557 = vld [vmem:[%s549 + $0x38] sm:$0xff]
    %v558 = vld [vmem:[%s549 + $0x40] sm:$0xff]
    %v559 = vld [vmem:[%s549 + $0x48] sm:$0xff]
    %v560 = vld [vmem:[%s549 + $0x50] sm:$0xff]
    %v561 = vld [vmem:[%s549 + $0x58] sm:$0xff]
    %v562 = vld [vmem:[%s549 + $0x60] sm:$0xff]
    %v563 = vld [vmem:[%s549 + $0x68] sm:$0xff]
    %v564 = vld [vmem:[%s549 + $0x70] sm:$0xff]
    %v565 = vld [vmem:[%s549 + $0x78] sm:$0xff]
    %v566 = vld [vmem:[%s549 + $0x80] sm:$0xff]
    %v567 = vld [vmem:[%s549 + $0x88] sm:$0xff]
    %v568 = vld [vmem:[%s549 + $0x90] sm:$0xff]
    %v569 = vld [vmem:[%s549 + $0x98] sm:$0xff]
    %v570 = vld [vmem:[%s549 + $0xa0] sm:$0xff]
    %v571 = vld [vmem:[%s549 + $0xa8] sm:$0xff]
    %v572 = vld [vmem:[%s549 + $0xb0] sm:$0xff]
    %v573 = vld [vmem:[%s549 + $0xb8] sm:$0xff]
    %v574 = vld [vmem:[%s549 + $0xc0] sm:$0xff]
    %v575 = vld [vmem:[%s549 + $0xc8] sm:$0xff]
    %v576 = vld [vmem:[%s549 + $0xd0] sm:$0xff]
    %v577 = vld [vmem:[%s549 + $0xd8] sm:$0xff]
    %v578 = vld [vmem:[%s549 + $0xe0] sm:$0xff]
    %v579 = vld [vmem:[%s549 + $0xe8] sm:$0xff]
    %v580 = vld [vmem:[%s549 + $0xf0] sm:$0xff]
    %v581 = vld [vmem:[%s549 + $0xf8] sm:$0xff]
    %v582 = vld [vmem:[%s549 + $0x100] sm:$0xff]
    %v583 = vld [vmem:[%s549 + $0x108] sm:$0xff]
    %v584 = vld [vmem:[%s549 + $0x110] sm:$0xff]
    %v585 = vld [vmem:[%s549 + $0x118] sm:$0xff]
    %v586 = vld [vmem:[%s549 + $0x120] sm:$0xff]
    %v587 = vld [vmem:[%s549 + $0x128] sm:$0xff]
    %v588 = vld [vmem:[%s549 + $0x130] sm:$0xff]
    %v589 = vld [vmem:[%s549 + $0x138] sm:$0xff]
    %v590 = vld [vmem:[%s549 + $0x140] sm:$0xff]
    %v591 = vld [vmem:[%s549 + $0x148] sm:$0xff]
    %v592 = vld [vmem:[%s549 + $0x150] sm:$0xff]
    %v593 = vld [vmem:[%s549 + $0x158] sm:$0xff]
    %v594 = vld [vmem:[%s549 + $0x160] sm:$0xff]
    %v595 = vld [vmem:[%s549 + $0x168] sm:$0xff]
    %v596 = vld [vmem:[%s549 + $0x170] sm:$0xff]
    %v597 = vld [vmem:[%s549 + $0x178] sm:$0xff]
    %v598 = vld [vmem:[%s549 + $0x180] sm:$0xff]
    %v599 = vld [vmem:[%s549 + $0x188] sm:$0xff]
    %v600 = vld [vmem:[%s549 + $0x190] sm:$0xff]
    %v601 = vld [vmem:[%s549 + $0x198] sm:$0xff]
    %v602 = vld [vmem:[%s549 + $0x1a0] sm:$0xff]
    %v603 = vld [vmem:[%s549 + $0x1a8] sm:$0xff]
    %v604 = vld [vmem:[%s549 + $0x1b0] sm:$0xff]
    %v605 = vld [vmem:[%s549 + $0x1b8] sm:$0xff]
    %v606 = vld [vmem:[%s549 + $0x1c0] sm:$0xff]
    %v607 = vld [vmem:[%s549 + $0x1c8] sm:$0xff]
    %v608 = vld [vmem:[%s549 + $0x1d0] sm:$0xff]
    %v609 = vld [vmem:[%s549 + $0x1d8] sm:$0xff]
    %v610 = vld [vmem:[%s549 + $0x1e0] sm:$0xff]
    %v611 = vld [vmem:[%s549 + $0x1e8] sm:$0xff]
    %v612 = vld [vmem:[%s549 + $0x1f0] sm:$0xff]
    %v613 = vld [vmem:[%s549 + $0x1f8] sm:$0xff]
    %v614 = vld [vmem:[#allocation11] sm:$0xff]
    %v615 = vld [vmem:[#allocation11 + $0x8] sm:$0xff]
    %v616 = vld [vmem:[#allocation11 + $0x10] sm:$0xff]
    %v617 = vld [vmem:[#allocation11 + $0x18] sm:$0xff]
    %v618 = vld [vmem:[#allocation11 + $0x20] sm:$0xff]
    %v619 = vld [vmem:[#allocation11 + $0x28] sm:$0xff]
    %v620 = vld [vmem:[#allocation11 + $0x30] sm:$0xff]
    %v621 = vld [vmem:[#allocation11 + $0x38] sm:$0xff]
    %v622 = vld [vmem:[#allocation11 + $0x40] sm:$0xff]
    %v623 = vld [vmem:[#allocation11 + $0x48] sm:$0xff]
    %v624 = vld [vmem:[#allocation11 + $0x50] sm:$0xff]
    %v625 = vld [vmem:[#allocation11 + $0x58] sm:$0xff]
    %v626 = vld [vmem:[#allocation11 + $0x60] sm:$0xff]
    %v627 = vld [vmem:[#allocation11 + $0x68] sm:$0xff]
    %v628 = vld [vmem:[#allocation11 + $0x70] sm:$0xff]
    %v629 = vld [vmem:[#allocation11 + $0x78] sm:$0xff]
    %v630 = vld [vmem:[#allocation11 + $0x80] sm:$0xff]
    %v631 = vld [vmem:[#allocation11 + $0x88] sm:$0xff]
    %v632 = vld [vmem:[#allocation11 + $0x90] sm:$0xff]
    %v633 = vld [vmem:[#allocation11 + $0x98] sm:$0xff]
    %v634 = vld [vmem:[#allocation11 + $0xa0] sm:$0xff]
    %v635 = vld [vmem:[#allocation11 + $0xa8] sm:$0xff]
    %v636 = vld [vmem:[#allocation11 + $0xb0] sm:$0xff]
    %v637 = vld [vmem:[#allocation11 + $0xb8] sm:$0xff]
    %v638 = vld [vmem:[#allocation11 + $0xc0] sm:$0xff]
    %v639 = vld [vmem:[#allocation11 + $0xc8] sm:$0xff]
    %v640 = vld [vmem:[#allocation11 + $0xd0] sm:$0xff]
    %v641 = vld [vmem:[#allocation11 + $0xd8] sm:$0xff]
    %v642 = vld [vmem:[#allocation11 + $0xe0] sm:$0xff]
    %v643 = vld [vmem:[#allocation11 + $0xe8] sm:$0xff]
    %v644 = vld [vmem:[#allocation11 + $0xf0] sm:$0xff]
    %v645 = vld [vmem:[#allocation11 + $0xf8] sm:$0xff]
    %v646 = vld [vmem:[#allocation11 + $0x100] sm:$0xff]
    %v647 = vld [vmem:[#allocation11 + $0x108] sm:$0xff]
    %v648 = vld [vmem:[#allocation11 + $0x110] sm:$0xff]
    %v649 = vld [vmem:[#allocation11 + $0x118] sm:$0xff]
    %v650 = vld [vmem:[#allocation11 + $0x120] sm:$0xff]
    %v651 = vld [vmem:[#allocation11 + $0x128] sm:$0xff]
    %v652 = vld [vmem:[#allocation11 + $0x130] sm:$0xff]
    %v653 = vld [vmem:[#allocation11 + $0x138] sm:$0xff]
    %v654 = vld [vmem:[#allocation11 + $0x140] sm:$0xff]
    %v655 = vld [vmem:[#allocation11 + $0x148] sm:$0xff]
    %v656 = vld [vmem:[#allocation11 + $0x150] sm:$0xff]
    %v657 = vld [vmem:[#allocation11 + $0x158] sm:$0xff]
    %v658 = vld [vmem:[#allocation11 + $0x160] sm:$0xff]
    %v659 = vld [vmem:[#allocation11 + $0x168] sm:$0xff]
    %v660 = vld [vmem:[#allocation11 + $0x170] sm:$0xff]
    %v661 = vld [vmem:[#allocation11 + $0x178] sm:$0xff]
    %v662 = vld [vmem:[#allocation11 + $0x180] sm:$0xff]
    %v663 = vld [vmem:[#allocation11 + $0x188] sm:$0xff]
    %v664 = vld [vmem:[#allocation11 + $0x190] sm:$0xff]
    %v665 = vld [vmem:[#allocation11 + $0x198] sm:$0xff]
    %v666 = vld [vmem:[#allocation11 + $0x1a0] sm:$0xff]
    %v667 = vld [vmem:[#allocation11 + $0x1a8] sm:$0xff]
    %v668 = vld [vmem:[#allocation11 + $0x1b0] sm:$0xff]
    %v669 = vld [vmem:[#allocation11 + $0x1b8] sm:$0xff]
    %v670 = vld [vmem:[#allocation11 + $0x1c0] sm:$0xff]
    %v671 = vld [vmem:[#allocation11 + $0x1c8] sm:$0xff]
    %v672 = vld [vmem:[#allocation11 + $0x1d0] sm:$0xff]
    %v673 = vld [vmem:[#allocation11 + $0x1d8] sm:$0xff]
    %v674 = vld [vmem:[#allocation11 + $0x1e0] sm:$0xff]
    %v675 = vld [vmem:[#allocation11 + $0x1e8] sm:$0xff]
    %v676 = vld [vmem:[#allocation11 + $0x1f0] sm:$0xff]
    %v677 = vld [vmem:[#allocation11 + $0x1f8] sm:$0xff]
    %s678 = scalar_lea.vmem %s6, 4
    %v679 = vld [vmem:[%s678] sm:$0xf]
    %v680 = vld [vmem:[#allocation15] sm:$0xff]
    %s681 = scalar_lea.vmem [#allocation15], 8
    %v682 = vld [vmem:[%s681] sm:$0xff]
    %v683 = vld [vmem:[#allocation17] sm:$0xff]
    %s684 = scalar_lea.vmem [#allocation17], 8
    %v685 = vld [vmem:[%s684] sm:$0xff]
    %v686 = vld [vmem:[#allocation2] sm:$0xff]
    %v687 = vld [vmem:[#allocation2 + $0x8] sm:$0xff]
    %v688 = vld [vmem:[#allocation2 + $0x10] sm:$0xff]
    %v689 = vld [vmem:[#allocation2 + $0x18] sm:$0xff]
    %690 = vmatprep.subr.mxu0 %v486
    %691 = vmatpush1.msra.mxu0 %v485
    %692 = vmatprep.subr.mxu0 %v490
    %693 = vmatpush1.msra.mxu0 %v489
    %694 = vmatprep.subr.mxu0 %v494
    %695 = vmatpush1.msra.mxu0 %v493
    %696 = vmatprep.subr.mxu0 %v498
    %697 = vmatpush1.msra.mxu0 %v497
    %698 = vmatprep.subr.mxu0 %v502
    %699 = vmatpush1.msra.mxu0 %v501
    %700 = vmatprep.subr.mxu0 %v506
    %701 = vmatpush1.msra.mxu0 %v505
    %702 = vmatprep.subr.mxu0 %v510
    %703 = vmatpush1.msra.mxu0 %v509
    %704 = vmatprep.subr.mxu0 %v514
    %705 = vmatpush1.msra.mxu0 %v513
    %706 = vmatprep.subr.mxu0 %v518
    %707 = vmatpush1.msra.mxu0 %v517
    %708 = vmatprep.subr.mxu0 %v522
    %709 = vmatpush1.msra.mxu0 %v521
    %710 = vmatprep.subr.mxu0 %v526
    %711 = vmatpush1.msra.mxu0 %v525
    %712 = vmatprep.subr.mxu0 %v530
    %713 = vmatpush1.msra.mxu0 %v529
    %714 = vmatprep.subr.mxu0 %v534
    %715 = vmatpush1.msra.mxu0 %v533
    %716 = vmatprep.subr.mxu0 %v538
    %717 = vmatpush1.msra.mxu0 %v537
    %718 = vmatprep.subr.mxu0 %v542
    %719 = vmatpush1.msra.mxu0 %v541
    %720 = vmatprep.subr.mxu0 %v546
    %721 = vmatpush1.msra.mxu0 %v545
    %722 = vmatprep.subr.mxu0 0.0
    %723 = vmatpush1.msra.mxu0 0.0
    %724 = vmatprep.subr.mxu0 0.0
    %725 = vmatpush1.msra.mxu0 0.0
    %726 = vmatprep.subr.mxu0 0.0
    %727 = vmatpush1.msra.mxu0 0.0
    %728 = vmatprep.subr.mxu0 0.0
    %729 = vmatpush1.msra.mxu0 0.0
    %730 = vmatprep.subr.mxu0 0.0
    %731 = vmatpush1.msra.mxu0 0.0
    %732 = vmatprep.subr.mxu0 0.0
    %733 = vmatpush1.msra.mxu0 0.0
    %734 = vmatprep.subr.mxu0 0.0
    %735 = vmatpush1.msra.mxu0 0.0
    %736 = vmatprep.subr.mxu0 0.0
    %737 = vmatpush1.msra.mxu0 0.0
    %738 = vmatprep.subr.mxu0 0.0
    %739 = vmatpush1.msra.mxu0 0.0
    %740 = vmatprep.subr.mxu0 0.0
    %741 = vmatpush1.msra.mxu0 0.0
    %742 = vmatprep.subr.mxu0 0.0
    %743 = vmatpush1.msra.mxu0 0.0
    %744 = vmatprep.subr.mxu0 0.0
    %745 = vmatpush1.msra.mxu0 0.0
    %746 = vmatprep.subr.mxu0 0.0
    %747 = vmatpush1.msra.mxu0 0.0
    %748 = vmatprep.subr.mxu0 0.0
    %749 = vmatpush1.msra.mxu0 0.0
    %750 = vmatprep.subr.mxu0 0.0
    %751 = vmatpush1.msra.mxu0 0.0
    %752 = vmatprep.subr.mxu0 0.0
    %753 = vmatpush1.msra.mxu0 0.0
    %754 = vmatprep.mubr.f32.mxu0 0.0
    %755 = vmatmul.mubr.f32.gmra.mrb[0].mxu0 %v680
    %v756 = vpop.f32.mrb[0].mxu0
    %v757 = vadd.f32 0.0, %v756
    %v758 = vpop.f32.mrb[0].mxu0
    %v759 = vadd.f32 0.0, %v758
    %760 = vdwg.mxu0
    %761 = vmatprep.subr.mxu0 %v488
    %762 = vmatpush1.msra.mxu0 %v487
    %763 = vmatprep.subr.mxu0 %v492
    %764 = vmatpush1.msra.mxu0 %v491
    %765 = vmatprep.subr.mxu0 %v496
    %766 = vmatpush1.msra.mxu0 %v495
    %767 = vmatprep.subr.mxu0 %v500
    %768 = vmatpush1.msra.mxu0 %v499
    %769 = vmatprep.subr.mxu0 %v504
    %770 = vmatpush1.msra.mxu0 %v503
    %771 = vmatprep.subr.mxu0 %v508
    %772 = vmatpush1.msra.mxu0 %v507
    %773 = vmatprep.subr.mxu0 %v512
    %774 = vmatpush1.msra.mxu0 %v511
    %775 = vmatprep.subr.mxu0 %v516
    %776 = vmatpush1.msra.mxu0 %v515
    %777 = vmatprep.subr.mxu0 %v520
    %778 = vmatpush1.msra.mxu0 %v519
    %779 = vmatprep.subr.mxu0 %v524
    %780 = vmatpush1.msra.mxu0 %v523
    %781 = vmatprep.subr.mxu0 %v528
    %782 = vmatpush1.msra.mxu0 %v527
    %783 = vmatprep.subr.mxu0 %v532
    %784 = vmatpush1.msra.mxu0 %v531
    %785 = vmatprep.subr.mxu0 %v536
    %786 = vmatpush1.msra.mxu0 %v535
    %787 = vmatprep.subr.mxu0 %v540
    %788 = vmatpush1.msra.mxu0 %v539
    %789 = vmatprep.subr.mxu0 %v544
    %790 = vmatpush1.msra.mxu0 %v543
    %791 = vmatprep.subr.mxu0 %v548
    %792 = vmatpush1.msra.mxu0 %v547
    %793 = vmatprep.subr.mxu0 0.0
    %794 = vmatpush1.msra.mxu0 0.0
    %795 = vmatprep.subr.mxu0 0.0
    %796 = vmatpush1.msra.mxu0 0.0
    %797 = vmatprep.subr.mxu0 0.0
    %798 = vmatpush1.msra.mxu0 0.0
    %799 = vmatprep.subr.mxu0 0.0
    %800 = vmatpush1.msra.mxu0 0.0
    %801 = vmatprep.subr.mxu0 0.0
    %802 = vmatpush1.msra.mxu0 0.0
    %803 = vmatprep.subr.mxu0 0.0
    %804 = vmatpush1.msra.mxu0 0.0
    %805 = vmatprep.subr.mxu0 0.0
    %806 = vmatpush1.msra.mxu0 0.0
    %807 = vmatprep.subr.mxu0 0.0
    %808 = vmatpush1.msra.mxu0 0.0
    %809 = vmatprep.subr.mxu0 0.0
    %810 = vmatpush1.msra.mxu0 0.0
    %811 = vmatprep.subr.mxu0 0.0
    %812 = vmatpush1.msra.mxu0 0.0
    %813 = vmatprep.subr.mxu0 0.0
    %814 = vmatpush1.msra.mxu0 0.0
    %815 = vmatprep.subr.mxu0 0.0
    %816 = vmatpush1.msra.mxu0 0.0
    %817 = vmatprep.subr.mxu0 0.0
    %818 = vmatpush1.msra.mxu0 0.0
    %819 = vmatprep.subr.mxu0 0.0
    %820 = vmatpush1.msra.mxu0 0.0
    %821 = vmatprep.subr.mxu0 0.0
    %822 = vmatpush1.msra.mxu0 0.0
    %823 = vmatprep.subr.mxu0 0.0
    %824 = vmatpush1.msra.mxu0 0.0
    %825 = vmatprep.mubr.f32.mxu0 0.0
    %826 = vmatmul.mubr.f32.gmra.mrb[0].mxu0 %v680
    %v827 = vpop.f32.mrb[0].mxu0
    %v828 = vadd.f32 0.0, %v827
    %v829 = vpop.f32.mrb[0].mxu0
    %v830 = vadd.f32 0.0, %v829
    %831 = vdwg.mxu0
    %v832 = vadd.f32 %v686, %v757
    %v833 = vadd.f32 %v687, %v759
    %v834 = vadd.f32 %v688, %v828
    %v835 = vadd.f32 %v689, %v830
    %v836 = vmul.f32 %v832, 0.5
    %v837 = vtanh.pop %v836
    %v838 = vmul.f32 %v837, 0.5
    %v839 = vadd.f32 %v838, 0.5
    %v840 = vmul.f32 %v833, 0.5
    %v841 = vtanh.pop %v840
    %v842 = vmul.f32 %v841, 0.5
    %v843 = vadd.f32 %v842, 0.5
    %v844 = vtanh.pop %v834
    %v845 = vmul.f32 %v835, 0.5
    %v846 = vtanh.pop %v845
    %v847 = vmul.f32 %v846, 0.5
    %v848 = vadd.f32 %v847, 0.5
    %v849 = vmul.f32 %v843, %v683
    %v850 = vmul.f32 %v839, %v844
    %v851 = vadd.f32 %v849, %v850
    %v852 = vtanh.pop %v851
    %v853 = vmul.f32 %v848, %v852
    %v854 = vld [vmem:[#allocation2 + $0x20] sm:$0xff]
    %v855 = vld [vmem:[#allocation2 + $0x28] sm:$0xff]
    %v856 = vld [vmem:[#allocation2 + $0x30] sm:$0xff]
    %v857 = vld [vmem:[#allocation2 + $0x38] sm:$0xff]
    %858 = vmatprep.subr.mxu0 %v486
    %859 = vmatpush1.msra.mxu0 %v485
    %860 = vmatprep.subr.mxu0 %v490
    %861 = vmatpush1.msra.mxu0 %v489
    %862 = vmatprep.subr.mxu0 %v494
    %863 = vmatpush1.msra.mxu0 %v493
    %864 = vmatprep.subr.mxu0 %v498
    %865 = vmatpush1.msra.mxu0 %v497
    %866 = vmatprep.subr.mxu0 %v502
    %867 = vmatpush1.msra.mxu0 %v501
    %868 = vmatprep.subr.mxu0 %v506
    %869 = vmatpush1.msra.mxu0 %v505
    %870 = vmatprep.subr.mxu0 %v510
    %871 = vmatpush1.msra.mxu0 %v509
    %872 = vmatprep.subr.mxu0 %v514
    %873 = vmatpush1.msra.mxu0 %v513
    %874 = vmatprep.subr.mxu0 %v518
    %875 = vmatpush1.msra.mxu0 %v517
    %876 = vmatprep.subr.mxu0 %v522
    %877 = vmatpush1.msra.mxu0 %v521
    %878 = vmatprep.subr.mxu0 %v526
    %879 = vmatpush1.msra.mxu0 %v525
    %880 = vmatprep.subr.mxu0 %v530
    %881 = vmatpush1.msra.mxu0 %v529
    %882 = vmatprep.subr.mxu0 %v534
    %883 = vmatpush1.msra.mxu0 %v533
    %884 = vmatprep.subr.mxu0 %v538
    %885 = vmatpush1.msra.mxu0 %v537
    %886 = vmatprep.subr.mxu0 %v542
    %887 = vmatpush1.msra.mxu0 %v541
    %888 = vmatprep.subr.mxu0 %v546
    %889 = vmatpush1.msra.mxu0 %v545
    %890 = vmatprep.subr.mxu0 0.0
    %891 = vmatpush1.msra.mxu0 0.0
    %892 = vmatprep.subr.mxu0 0.0
    %893 = vmatpush1.msra.mxu0 0.0
    %894 = vmatprep.subr.mxu0 0.0
    %895 = vmatpush1.msra.mxu0 0.0
    %896 = vmatprep.subr.mxu0 0.0
    %897 = vmatpush1.msra.mxu0 0.0
    %898 = vmatprep.subr.mxu0 0.0
    %899 = vmatpush1.msra.mxu0 0.0
    %900 = vmatprep.subr.mxu0 0.0
    %901 = vmatpush1.msra.mxu0 0.0
    %902 = vmatprep.subr.mxu0 0.0
    %903 = vmatpush1.msra.mxu0 0.0
    %904 = vmatprep.subr.mxu0 0.0
    %905 = vmatpush1.msra.mxu0 0.0
    %906 = vmatprep.subr.mxu0 0.0
    %907 = vmatpush1.msra.mxu0 0.0
    %908 = vmatprep.subr.mxu0 0.0
    %909 = vmatpush1.msra.mxu0 0.0
    %910 = vmatprep.subr.mxu0 0.0
    %911 = vmatpush1.msra.mxu0 0.0
    %912 = vmatprep.subr.mxu0 0.0
    %913 = vmatpush1.msra.mxu0 0.0
    %914 = vmatprep.subr.mxu0 0.0
    %915 = vmatpush1.msra.mxu0 0.0
    %916 = vmatprep.subr.mxu0 0.0
    %917 = vmatpush1.msra.mxu0 0.0
    %918 = vmatprep.subr.mxu0 0.0
    %919 = vmatpush1.msra.mxu0 0.0
    %920 = vmatprep.subr.mxu0 0.0
    %921 = vmatpush1.msra.mxu0 0.0
    %922 = vmatprep.mubr.f32.mxu0 0.0
    %923 = vmatmul.mubr.f32.gmra.mrb[0].mxu0 %v853
    %v924 = vpop.f32.mrb[0].mxu0
    %v925 = vadd.f32 0.0, %v924
    %v926 = vpop.f32.mrb[0].mxu0
    %v927 = vadd.f32 0.0, %v926
    %928 = vdwg.mxu0
    %929 = vmatprep.subr.mxu0 %v488
    %930 = vmatpush1.msra.mxu0 %v487
    %931 = vmatprep.subr.mxu0 %v492
    %932 = vmatpush1.msra.mxu0 %v491
    %933 = vmatprep.subr.mxu0 %v496
    %934 = vmatpush1.msra.mxu0 %v495
    %935 = vmatprep.subr.mxu0 %v500
    %936 = vmatpush1.msra.mxu0 %v499
    %937 = vmatprep.subr.mxu0 %v504
    %938 = vmatpush1.msra.mxu0 %v503
    %939 = vmatprep.subr.mxu0 %v508
    %940 = vmatpush1.msra.mxu0 %v507
    %941 = vmatprep.subr.mxu0 %v512
    %942 = vmatpush1.msra.mxu0 %v511
    %943 = vmatprep.subr.mxu0 %v516
    %944 = vmatpush1.msra.mxu0 %v515
    %945 = vmatprep.subr.mxu0 %v520
    %946 = vmatpush1.msra.mxu0 %v519
    %947 = vmatprep.subr.mxu0 %v524
    %948 = vmatpush1.msra.mxu0 %v523
    %949 = vmatprep.subr.mxu0 %v528
    %950 = vmatpush1.msra.mxu0 %v527
    %951 = vmatprep.subr.mxu0 %v532
    %952 = vmatpush1.msra.mxu0 %v531
    %953 = vmatprep.subr.mxu0 %v536
    %954 = vmatpush1.msra.mxu0 %v535
    %955 = vmatprep.subr.mxu0 %v540
    %956 = vmatpush1.msra.mxu0 %v539
    %957 = vmatprep.subr.mxu0 %v544
    %958 = vmatpush1.msra.mxu0 %v543
    %959 = vmatprep.subr.mxu0 %v548
    %960 = vmatpush1.msra.mxu0 %v547
    %961 = vmatprep.subr.mxu0 0.0
    %962 = vmatpush1.msra.mxu0 0.0
    %963 = vmatprep.subr.mxu0 0.0
    %964 = vmatpush1.msra.mxu0 0.0
    %965 = vmatprep.subr.mxu0 0.0
    %966 = vmatpush1.msra.mxu0 0.0
    %967 = vmatprep.subr.mxu0 0.0
    %968 = vmatpush1.msra.mxu0 0.0
    %969 = vmatprep.subr.mxu0 0.0
    %970 = vmatpush1.msra.mxu0 0.0
    %971 = vmatprep.subr.mxu0 0.0
    %972 = vmatpush1.msra.mxu0 0.0
    %973 = vmatprep.subr.mxu0 0.0
    %974 = vmatpush1.msra.mxu0 0.0
    %975 = vmatprep.subr.mxu0 0.0
    %976 = vmatpush1.msra.mxu0 0.0
    %977 = vmatprep.subr.mxu0 0.0
    %978 = vmatpush1.msra.mxu0 0.0
    %979 = vmatprep.subr.mxu0 0.0
    %980 = vmatpush1.msra.mxu0 0.0
    %981 = vmatprep.subr.mxu0 0.0
    %982 = vmatpush1.msra.mxu0 0.0
    %983 = vmatprep.subr.mxu0 0.0
    %984 = vmatpush1.msra.mxu0 0.0
    %985 = vmatprep.subr.mxu0 0.0
    %986 = vmatpush1.msra.mxu0 0.0
    %987 = vmatprep.subr.mxu0 0.0
    %988 = vmatpush1.msra.mxu0 0.0
    %989 = vmatprep.subr.mxu0 0.0
    %990 = vmatpush1.msra.mxu0 0.0
    %991 = vmatprep.subr.mxu0 0.0
    %992 = vmatpush1.msra.mxu0 0.0
    %993 = vmatprep.mubr.f32.mxu0 0.0
    %994 = vmatmul.mubr.f32.gmra.mrb[0].mxu0 %v853
    %v995 = vpop.f32.mrb[0].mxu0
    %v996 = vadd.f32 0.0, %v995
    %v997 = vpop.f32.mrb[0].mxu0
    %v998 = vadd.f32 0.0, %v997
    %999 = vdwg.mxu0
    %v1000 = vadd.f32 %v854, %v925
    %v1001 = vadd.f32 %v855, %v927
    %v1002 = vadd.f32 %v856, %v996
    %v1003 = vadd.f32 %v857, %v998
    %v1004 = vmul.f32 %v1000, 0.5
    %v1005 = vtanh.pop %v1004
    %v1006 = vmul.f32 %v1005, 0.5
    %v1007 = vadd.f32 %v1006, 0.5
    %v1008 = vmul.f32 %v1001, 0.5
    %v1009 = vtanh.pop %v1008
    %v1010 = vmul.f32 %v1009, 0.5
    %v1011 = vadd.f32 %v1010, 0.5
    %v1012 = vtanh.pop %v1002
    %v1013 = vmul.f32 %v1003, 0.5
    %v1014 = vtanh.pop %v1013
    %v1015 = vmul.f32 %v1014, 0.5
    %v1016 = vadd.f32 %v1015, 0.5
    %v1017 = vmul.f32 %v1011, %v851
    %v1018 = vmul.f32 %v1007, %v1012
    %v1019 = vadd.f32 %v1017, %v1018
    %v1020 = vtanh.pop %v1019
    %v1021 = vmul.f32 %v1016, %v1020
    %1022 = vmatprep.subr.mxu0 %v551
    %1023 = vmatpush1.msra.mxu0 %v550
    %1024 = vmatprep.subr.mxu0 %v555
    %1025 = vmatpush1.msra.mxu0 %v554
    %1026 = vmatprep.subr.mxu0 %v559
    %1027 = vmatpush1.msra.mxu0 %v558
    %1028 = vmatprep.subr.mxu0 %v563
    %1029 = vmatpush1.msra.mxu0 %v562
    %1030 = vmatprep.subr.mxu0 %v567
    %1031 = vmatpush1.msra.mxu0 %v566
    %1032 = vmatprep.subr.mxu0 %v571
    %1033 = vmatpush1.msra.mxu0 %v570
    %1034 = vmatprep.subr.mxu0 %v575
    %1035 = vmatpush1.msra.mxu0 %v574
    %1036 = vmatprep.subr.mxu0 %v579
    %1037 = vmatpush1.msra.mxu0 %v578
    %1038 = vmatprep.subr.mxu0 %v583
    %1039 = vmatpush1.msra.mxu0 %v582
    %1040 = vmatprep.subr.mxu0 %v587
    %1041 = vmatpush1.msra.mxu0 %v586
    %1042 = vmatprep.subr.mxu0 %v591
    %1043 = vmatpush1.msra.mxu0 %v590
    %1044 = vmatprep.subr.mxu0 %v595
    %1045 = vmatpush1.msra.mxu0 %v594
    %1046 = vmatprep.subr.mxu0 %v599
    %1047 = vmatpush1.msra.mxu0 %v598
    %1048 = vmatprep.subr.mxu0 %v603
    %1049 = vmatpush1.msra.mxu0 %v602
    %1050 = vmatprep.subr.mxu0 %v607
    %1051 = vmatpush1.msra.mxu0 %v606
    %1052 = vmatprep.subr.mxu0 %v611
    %1053 = vmatpush1.msra.mxu0 %v610
    %1054 = vmatprep.subr.mxu0 0.0
    %1055 = vmatpush1.msra.mxu0 0.0
    %1056 = vmatprep.subr.mxu0 0.0
    %1057 = vmatpush1.msra.mxu0 0.0
    %1058 = vmatprep.subr.mxu0 0.0
    %1059 = vmatpush1.msra.mxu0 0.0
    %1060 = vmatprep.subr.mxu0 0.0
    %1061 = vmatpush1.msra.mxu0 0.0
    %1062 = vmatprep.subr.mxu0 0.0
    %1063 = vmatpush1.msra.mxu0 0.0
    %1064 = vmatprep.subr.mxu0 0.0
    %1065 = vmatpush1.msra.mxu0 0.0
    %1066 = vmatprep.subr.mxu0 0.0
    %1067 = vmatpush1.msra.mxu0 0.0
    %1068 = vmatprep.subr.mxu0 0.0
    %1069 = vmatpush1.msra.mxu0 0.0
    %1070 = vmatprep.subr.mxu0 0.0
    %1071 = vmatpush1.msra.mxu0 0.0
    %1072 = vmatprep.subr.mxu0 0.0
    %1073 = vmatpush1.msra.mxu0 0.0
    %1074 = vmatprep.subr.mxu0 0.0
    %1075 = vmatpush1.msra.mxu0 0.0
    %1076 = vmatprep.subr.mxu0 0.0
    %1077 = vmatpush1.msra.mxu0 0.0
    %1078 = vmatprep.subr.mxu0 0.0
    %1079 = vmatpush1.msra.mxu0 0.0
    %1080 = vmatprep.subr.mxu0 0.0
    %1081 = vmatpush1.msra.mxu0 0.0
    %1082 = vmatprep.subr.mxu0 0.0
    %1083 = vmatpush1.msra.mxu0 0.0
    %1084 = vmatprep.subr.mxu0 0.0
    %1085 = vmatpush1.msra.mxu0 0.0
    %1086 = vmatprep.mubr.f32.mxu0 0.0
    %1087 = vmatmul.mubr.f32.gmra.mrb[0].mxu0 %v682
    %v1088 = vpop.f32.mrb[0].mxu0
    %v1089 = vadd.f32 0.0, %v1088
    %v1090 = vpop.f32.mrb[0].mxu0
    %v1091 = vadd.f32 0.0, %v1090
    %1092 = vdwg.mxu0
    %1093 = vmatprep.subr.mxu0 %v553
    %1094 = vmatpush1.msra.mxu0 %v552
    %1095 = vmatprep.subr.mxu0 %v557
    %1096 = vmatpush1.msra.mxu0 %v556
    %1097 = vmatprep.subr.mxu0 %v561
    %1098 = vmatpush1.msra.mxu0 %v560
    %1099 = vmatprep.subr.mxu0 %v565
    %1100 = vmatpush1.msra.mxu0 %v564
    %1101 = vmatprep.subr.mxu0 %v569
    %1102 = vmatpush1.msra.mxu0 %v568
    %1103 = vmatprep.subr.mxu0 %v573
    %1104 = vmatpush1.msra.mxu0 %v572
    %1105 = vmatprep.subr.mxu0 %v577
    %1106 = vmatpush1.msra.mxu0 %v576
    %1107 = vmatprep.subr.mxu0 %v581
    %1108 = vmatpush1.msra.mxu0 %v580
    %1109 = vmatprep.subr.mxu0 %v585
    %1110 = vmatpush1.msra.mxu0 %v584
    %1111 = vmatprep.subr.mxu0 %v589
    %1112 = vmatpush1.msra.mxu0 %v588
    %1113 = vmatprep.subr.mxu0 %v593
    %1114 = vmatpush1.msra.mxu0 %v592
    %1115 = vmatprep.subr.mxu0 %v597
    %1116 = vmatpush1.msra.mxu0 %v596
    %1117 = vmatprep.subr.mxu0 %v601
    %1118 = vmatpush1.msra.mxu0 %v600
    %1119 = vmatprep.subr.mxu0 %v605
    %1120 = vmatpush1.msra.mxu0 %v604
    %1121 = vmatprep.subr.mxu0 %v609
    %1122 = vmatpush1.msra.mxu0 %v608
    %1123 = vmatprep.subr.mxu0 %v613
    %1124 = vmatpush1.msra.mxu0 %v612
    %1125 = vmatprep.subr.mxu0 0.0
    %1126 = vmatpush1.msra.mxu0 0.0
    %1127 = vmatprep.subr.mxu0 0.0
    %1128 = vmatpush1.msra.mxu0 0.0
    %1129 = vmatprep.subr.mxu0 0.0
    %1130 = vmatpush1.msra.mxu0 0.0
    %1131 = vmatprep.subr.mxu0 0.0
    %1132 = vmatpush1.msra.mxu0 0.0
    %1133 = vmatprep.subr.mxu0 0.0
    %1134 = vmatpush1.msra.mxu0 0.0
    %1135 = vmatprep.subr.mxu0 0.0
    %1136 = vmatpush1.msra.mxu0 0.0
    %1137 = vmatprep.subr.mxu0 0.0
    %1138 = vmatpush1.msra.mxu0 0.0
    %1139 = vmatprep.subr.mxu0 0.0
    %1140 = vmatpush1.msra.mxu0 0.0
    %1141 = vmatprep.subr.mxu0 0.0
    %1142 = vmatpush1.msra.mxu0 0.0
    %1143 = vmatprep.subr.mxu0 0.0
    %1144 = vmatpush1.msra.mxu0 0.0
    %1145 = vmatprep.subr.mxu0 0.0
    %1146 = vmatpush1.msra.mxu0 0.0
    %1147 = vmatprep.subr.mxu0 0.0
    %1148 = vmatpush1.msra.mxu0 0.0
    %1149 = vmatprep.subr.mxu0 0.0
    %1150 = vmatpush1.msra.mxu0 0.0
    %1151 = vmatprep.subr.mxu0 0.0
    %1152 = vmatpush1.msra.mxu0 0.0
    %1153 = vmatprep.subr.mxu0 0.0
    %1154 = vmatpush1.msra.mxu0 0.0
    %1155 = vmatprep.subr.mxu0 0.0
    %1156 = vmatpush1.msra.mxu0 0.0
    %1157 = vmatprep.mubr.f32.mxu0 0.0
    %1158 = vmatmul.mubr.f32.gmra.mrb[0].mxu0 %v682
    %v1159 = vpop.f32.mrb[0].mxu0
    %v1160 = vadd.f32 0.0, %v1159
    %v1161 = vpop.f32.mrb[0].mxu0
    %v1162 = vadd.f32 0.0, %v1161
    %1163 = vdwg.mxu0
    %1164 = vmatprep.subr.mxu0 %v615
    %1165 = vmatpush1.msra.mxu0 %v614
    %1166 = vmatprep.subr.mxu0 %v619
    %1167 = vmatpush1.msra.mxu0 %v618
    %1168 = vmatprep.subr.mxu0 %v623
    %1169 = vmatpush1.msra.mxu0 %v622
    %1170 = vmatprep.subr.mxu0 %v627
    %1171 = vmatpush1.msra.mxu0 %v626
    %1172 = vmatprep.subr.mxu0 %v631
    %1173 = vmatpush1.msra.mxu0 %v630
    %1174 = vmatprep.subr.mxu0 %v635
    %1175 = vmatpush1.msra.mxu0 %v634
    %1176 = vmatprep.subr.mxu0 %v639
    %1177 = vmatpush1.msra.mxu0 %v638
    %1178 = vmatprep.subr.mxu0 %v643
    %1179 = vmatpush1.msra.mxu0 %v642
    %1180 = vmatprep.subr.mxu0 %v647
    %1181 = vmatpush1.msra.mxu0 %v646
    %1182 = vmatprep.subr.mxu0 %v651
    %1183 = vmatpush1.msra.mxu0 %v650
    %1184 = vmatprep.subr.mxu0 %v655
    %1185 = vmatpush1.msra.mxu0 %v654
    %1186 = vmatprep.subr.mxu0 %v659
    %1187 = vmatpush1.msra.mxu0 %v658
    %1188 = vmatprep.subr.mxu0 %v663
    %1189 = vmatpush1.msra.mxu0 %v662
    %1190 = vmatprep.subr.mxu0 %v667
    %1191 = vmatpush1.msra.mxu0 %v666
    %1192 = vmatprep.subr.mxu0 %v671
    %1193 = vmatpush1.msra.mxu0 %v670
    %1194 = vmatprep.subr.mxu0 %v675
    %1195 = vmatpush1.msra.mxu0 %v674
    %1196 = vmatprep.subr.mxu0 0.0
    %1197 = vmatpush1.msra.mxu0 0.0
    %1198 = vmatprep.subr.mxu0 0.0
    %1199 = vmatpush1.msra.mxu0 0.0
    %1200 = vmatprep.subr.mxu0 0.0
    %1201 = vmatpush1.msra.mxu0 0.0
    %1202 = vmatprep.subr.mxu0 0.0
    %1203 = vmatpush1.msra.mxu0 0.0
    %1204 = vmatprep.subr.mxu0 0.0
    %1205 = vmatpush1.msra.mxu0 0.0
    %1206 = vmatprep.subr.mxu0 0.0
    %1207 = vmatpush1.msra.mxu0 0.0
    %1208 = vmatprep.subr.mxu0 0.0
    %1209 = vmatpush1.msra.mxu0 0.0
    %1210 = vmatprep.subr.mxu0 0.0
    %1211 = vmatpush1.msra.mxu0 0.0
    %1212 = vmatprep.subr.mxu0 0.0
    %1213 = vmatpush1.msra.mxu0 0.0
    %1214 = vmatprep.subr.mxu0 0.0
    %1215 = vmatpush1.msra.mxu0 0.0
    %1216 = vmatprep.subr.mxu0 0.0
    %1217 = vmatpush1.msra.mxu0 0.0
    %1218 = vmatprep.subr.mxu0 0.0
    %1219 = vmatpush1.msra.mxu0 0.0
    %1220 = vmatprep.subr.mxu0 0.0
    %1221 = vmatpush1.msra.mxu0 0.0
    %1222 = vmatprep.subr.mxu0 0.0
    %1223 = vmatpush1.msra.mxu0 0.0
    %1224 = vmatprep.subr.mxu0 0.0
    %1225 = vmatpush1.msra.mxu0 0.0
    %1226 = vmatprep.subr.mxu0 0.0
    %1227 = vmatpush1.msra.mxu0 0.0
    %1228 = vmatprep.mubr.f32.mxu0 0.0
    %1229 = vmatmul.mubr.f32.gmra.mrb[0].mxu0 %v853
    %v1230 = vpop.f32.mrb[0].mxu0
    %v1231 = vadd.f32 %v1089, %v1230
    %v1232 = vpop.f32.mrb[0].mxu0
    %v1233 = vadd.f32 %v1091, %v1232
    %1234 = vdwg.mxu0
    %1235 = vmatprep.subr.mxu0 %v617
    %1236 = vmatpush1.msra.mxu0 %v616
    %1237 = vmatprep.subr.mxu0 %v621
    %1238 = vmatpush1.msra.mxu0 %v620
    %1239 = vmatprep.subr.mxu0 %v625
    %1240 = vmatpush1.msra.mxu0 %v624
    %1241 = vmatprep.subr.mxu0 %v629
    %1242 = vmatpush1.msra.mxu0 %v628
    %1243 = vmatprep.subr.mxu0 %v633
    %1244 = vmatpush1.msra.mxu0 %v632
    %1245 = vmatprep.subr.mxu0 %v637
    %1246 = vmatpush1.msra.mxu0 %v636
    %1247 = vmatprep.subr.mxu0 %v641
    %1248 = vmatpush1.msra.mxu0 %v640
    %1249 = vmatprep.subr.mxu0 %v645
    %1250 = vmatpush1.msra.mxu0 %v644
    %1251 = vmatprep.subr.mxu0 %v649
    %1252 = vmatpush1.msra.mxu0 %v648
    %1253 = vmatprep.subr.mxu0 %v653
    %1254 = vmatpush1.msra.mxu0 %v652
    %1255 = vmatprep.subr.mxu0 %v657
    %1256 = vmatpush1.msra.mxu0 %v656
    %1257 = vmatprep.subr.mxu0 %v661
    %1258 = vmatpush1.msra.mxu0 %v660
    %1259 = vmatprep.subr.mxu0 %v665
    %1260 = vmatpush1.msra.mxu0 %v664
    %1261 = vmatprep.subr.mxu0 %v669
    %1262 = vmatpush1.msra.mxu0 %v668
    %1263 = vmatprep.subr.mxu0 %v673
    %1264 = vmatpush1.msra.mxu0 %v672
    %1265 = vmatprep.subr.mxu0 %v677
    %1266 = vmatpush1.msra.mxu0 %v676
    %1267 = vmatprep.subr.mxu0 0.0
    %1268 = vmatpush1.msra.mxu0 0.0
    %1269 = vmatprep.subr.mxu0 0.0
    %1270 = vmatpush1.msra.mxu0 0.0
    %1271 = vmatprep.subr.mxu0 0.0
    %1272 = vmatpush1.msra.mxu0 0.0
    %1273 = vmatprep.subr.mxu0 0.0
    %1274 = vmatpush1.msra.mxu0 0.0
    %1275 = vmatprep.subr.mxu0 0.0
    %1276 = vmatpush1.msra.mxu0 0.0
    %1277 = vmatprep.subr.mxu0 0.0
    %1278 = vmatpush1.msra.mxu0 0.0
    %1279 = vmatprep.subr.mxu0 0.0
    %1280 = vmatpush1.msra.mxu0 0.0
    %1281 = vmatprep.subr.mxu0 0.0
    %1282 = vmatpush1.msra.mxu0 0.0
    %1283 = vmatprep.subr.mxu0 0.0
    %1284 = vmatpush1.msra.mxu0 0.0
    %1285 = vmatprep.subr.mxu0 0.0
    %1286 = vmatpush1.msra.mxu0 0.0
    %1287 = vmatprep.subr.mxu0 0.0
    %1288 = vmatpush1.msra.mxu0 0.0
    %1289 = vmatprep.subr.mxu0 0.0
    %1290 = vmatpush1.msra.mxu0 0.0
    %1291 = vmatprep.subr.mxu0 0.0
    %1292 = vmatpush1.msra.mxu0 0.0
    %1293 = vmatprep.subr.mxu0 0.0
    %1294 = vmatpush1.msra.mxu0 0.0
    %1295 = vmatprep.subr.mxu0 0.0
    %1296 = vmatpush1.msra.mxu0 0.0
    %1297 = vmatprep.subr.mxu0 0.0
    %1298 = vmatpush1.msra.mxu0 0.0
    %1299 = vmatprep.mubr.f32.mxu0 0.0
    %1300 = vmatmul.mubr.f32.gmra.mrb[0].mxu0 %v853
    %v1301 = vpop.f32.mrb[0].mxu0
    %v1302 = vadd.f32 %v1160, %v1301
    %v1303 = vpop.f32.mrb[0].mxu0
    %v1304 = vadd.f32 %v1162, %v1303
    %1305 = vdwg.mxu0
    %v1307 = vlaneseq
    %v1308 = vshrl.u32 %v1307, 7
    %v1309 = vsub.s32 0, %v1308
    %v1310 = vrot.slane %v679, %v1309
    %v1311 = vlaneseq
    %v1312 = vshrl.u32 %v1311, 7
    %v1313 = vsub.s32 1, %v1312
    %v1314 = vrot.slane %v679, %v1313
    %v1315 = vlaneseq
    %v1316 = vshrl.u32 %v1315, 7
    %v1317 = vsub.s32 2, %v1316
    %v1318 = vrot.slane %v679, %v1317
    %v1319 = vlaneseq
    %v1320 = vshrl.u32 %v1319, 7
    %v1321 = vsub.s32 3, %v1320
    %v1322 = vrot.slane %v679, %v1321
    %v1327 = vadd.f32 %v1231, %v1310
    %v1328 = vadd.f32 %v1233, %v1314
    %v1329 = vadd.f32 %v1302, %v1318
    %v1330 = vadd.f32 %v1304, %v1322
    %v1331 = vmul.f32 %v1327, 0.5
    %v1332 = vtanh.pop %v1331
    %v1333 = vmul.f32 %v1332, 0.5
    %v1334 = vadd.f32 %v1333, 0.5
    %v1335 = vmul.f32 %v1328, 0.5
    %v1336 = vtanh.pop %v1335
    %v1337 = vmul.f32 %v1336, 0.5
    %v1338 = vadd.f32 %v1337, 0.5
    %v1339 = vtanh.pop %v1329
    %v1340 = vmul.f32 %v1330, 0.5
    %v1341 = vtanh.pop %v1340
    %v1342 = vmul.f32 %v1341, 0.5
    %v1343 = vadd.f32 %v1342, 0.5
    %v1344 = vmul.f32 %v1338, %v685
    %v1345 = vmul.f32 %v1334, %v1339
    %v1346 = vadd.f32 %v1344, %v1345
    %v1347 = vtanh.pop %v1346
    %v1348 = vmul.f32 %v1343, %v1347
    %1349 = vst [vmem:[#allocation14] sm:$0xff] %v1348
    %v1350 = vld [vmem:[#allocation2 + $0x40] sm:$0xff]
    %v1351 = vld [vmem:[#allocation2 + $0x48] sm:$0xff]
    %v1352 = vld [vmem:[#allocation2 + $0x50] sm:$0xff]
    %v1353 = vld [vmem:[#allocation2 + $0x58] sm:$0xff]
    %1354 = vmatprep.subr.mxu0 %v486
    %1355 = vmatpush1.msra.mxu0 %v485
    %1356 = vmatprep.subr.mxu0 %v490
    %1357 = vmatpush1.msra.mxu0 %v489
    %1358 = vmatprep.subr.mxu0 %v494
    %1359 = vmatpush1.msra.mxu0 %v493
    %1360 = vmatprep.subr.mxu0 %v498
    %1361 = vmatpush1.msra.mxu0 %v497
    %1362 = vmatprep.subr.mxu0 %v502
    %1363 = vmatpush1.msra.mxu0 %v501
    %1364 = vmatprep.subr.mxu0 %v506
    %1365 = vmatpush1.msra.mxu0 %v505
    %1366 = vmatprep.subr.mxu0 %v510
    %1367 = vmatpush1.msra.mxu0 %v509
    %1368 = vmatprep.subr.mxu0 %v514
    %1369 = vmatpush1.msra.mxu0 %v513
    %1370 = vmatprep.subr.mxu0 %v518
    %1371 = vmatpush1.msra.mxu0 %v517
    %1372 = vmatprep.subr.mxu0 %v522
    %1373 = vmatpush1.msra.mxu0 %v521
    %1374 = vmatprep.subr.mxu0 %v526
    %1375 = vmatpush1.msra.mxu0 %v525
    %1376 = vmatprep.subr.mxu0 %v530
    %1377 = vmatpush1.msra.mxu0 %v529
    %1378 = vmatprep.subr.mxu0 %v534
    %1379 = vmatpush1.msra.mxu0 %v533
    %1380 = vmatprep.subr.mxu0 %v538
    %1381 = vmatpush1.msra.mxu0 %v537
    %1382 = vmatprep.subr.mxu0 %v542
    %1383 = vmatpush1.msra.mxu0 %v541
    %1384 = vmatprep.subr.mxu0 %v546
    %1385 = vmatpush1.msra.mxu0 %v545
    %1386 = vmatprep.subr.mxu0 0.0
    %1387 = vmatpush1.msra.mxu0 0.0
    %1388 = vmatprep.subr.mxu0 0.0
    %1389 = vmatpush1.msra.mxu0 0.0
    %1390 = vmatprep.subr.mxu0 0.0
    %1391 = vmatpush1.msra.mxu0 0.0
    %1392 = vmatprep.subr.mxu0 0.0
    %1393 = vmatpush1.msra.mxu0 0.0
    %1394 = vmatprep.subr.mxu0 0.0
    %1395 = vmatpush1.msra.mxu0 0.0
    %1396 = vmatprep.subr.mxu0 0.0
    %1397 = vmatpush1.msra.mxu0 0.0
    %1398 = vmatprep.subr.mxu0 0.0
    %1399 = vmatpush1.msra.mxu0 0.0
    %1400 = vmatprep.subr.mxu0 0.0
    %1401 = vmatpush1.msra.mxu0 0.0
    %1402 = vmatprep.subr.mxu0 0.0
    %1403 = vmatpush1.msra.mxu0 0.0
    %1404 = vmatprep.subr.mxu0 0.0
    %1405 = vmatpush1.msra.mxu0 0.0
    %1406 = vmatprep.subr.mxu0 0.0
    %1407 = vmatpush1.msra.mxu0 0.0
    %1408 = vmatprep.subr.mxu0 0.0
    %1409 = vmatpush1.msra.mxu0 0.0
    %1410 = vmatprep.subr.mxu0 0.0
    %1411 = vmatpush1.msra.mxu0 0.0
    %1412 = vmatprep.subr.mxu0 0.0
    %1413 = vmatpush1.msra.mxu0 0.0
    %1414 = vmatprep.subr.mxu0 0.0
    %1415 = vmatpush1.msra.mxu0 0.0
    %1416 = vmatprep.subr.mxu0 0.0
    %1417 = vmatpush1.msra.mxu0 0.0
    %1418 = vmatprep.mubr.f32.mxu0 0.0
    %1419 = vmatmul.mubr.f32.gmra.mrb[0].mxu0 %v1021
    %v1420 = vpop.f32.mrb[0].mxu0
    %v1421 = vadd.f32 0.0, %v1420
    %v1422 = vpop.f32.mrb[0].mxu0
    %v1423 = vadd.f32 0.0, %v1422
    %1424 = vdwg.mxu0
    %1425 = vmatprep.subr.mxu0 %v488
    %1426 = vmatpush1.msra.mxu0 %v487
    %1427 = vmatprep.subr.mxu0 %v492
    %1428 = vmatpush1.msra.mxu0 %v491
    %1429 = vmatprep.subr.mxu0 %v496
    %1430 = vmatpush1.msra.mxu0 %v495
    %1431 = vmatprep.subr.mxu0 %v500
    %1432 = vmatpush1.msra.mxu0 %v499
    %1433 = vmatprep.subr.mxu0 %v504
    %1434 = vmatpush1.msra.mxu0 %v503
    %1435 = vmatprep.subr.mxu0 %v508
    %1436 = vmatpush1.msra.mxu0 %v507
    %1437 = vmatprep.subr.mxu0 %v512
    %1438 = vmatpush1.msra.mxu0 %v511
    %1439 = vmatprep.subr.mxu0 %v516
    %1440 = vmatpush1.msra.mxu0 %v515
    %1441 = vmatprep.subr.mxu0 %v520
    %1442 = vmatpush1.msra.mxu0 %v519
    %1443 = vmatprep.subr.mxu0 %v524
    %1444 = vmatpush1.msra.mxu0 %v523
    %1445 = vmatprep.subr.mxu0 %v528
    %1446 = vmatpush1.msra.mxu0 %v527
    %1447 = vmatprep.subr.mxu0 %v532
    %1448 = vmatpush1.msra.mxu0 %v531
    %1449 = vmatprep.subr.mxu0 %v536
    %1450 = vmatpush1.msra.mxu0 %v535
    %1451 = vmatprep.subr.mxu0 %v540
    %1452 = vmatpush1.msra.mxu0 %v539
    %1453 = vmatprep.subr.mxu0 %v544
    %1454 = vmatpush1.msra.mxu0 %v543
    %1455 = vmatprep.subr.mxu0 %v548
    %1456 = vmatpush1.msra.mxu0 %v547
    %1457 = vmatprep.subr.mxu0 0.0
    %1458 = vmatpush1.msra.mxu0 0.0
    %1459 = vmatprep.subr.mxu0 0.0
    %1460 = vmatpush1.msra.mxu0 0.0
    %1461 = vmatprep.subr.mxu0 0.0
    %1462 = vmatpush1.msra.mxu0 0.0
    %1463 = vmatprep.subr.mxu0 0.0
    %1464 = vmatpush1.msra.mxu0 0.0
    %1465 = vmatprep.subr.mxu0 0.0
    %1466 = vmatpush1.msra.mxu0 0.0
    %1467 = vmatprep.subr.mxu0 0.0
    %1468 = vmatpush1.msra.mxu0 0.0
    %1469 = vmatprep.subr.mxu0 0.0
    %1470 = vmatpush1.msra.mxu0 0.0
    %1471 = vmatprep.subr.mxu0 0.0
    %1472 = vmatpush1.msra.mxu0 0.0
    %1473 = vmatprep.subr.mxu0 0.0
    %1474 = vmatpush1.msra.mxu0 0.0
    %1475 = vmatprep.subr.mxu0 0.0
    %1476 = vmatpush1.msra.mxu0 0.0
    %1477 = vmatprep.subr.mxu0 0.0
    %1478 = vmatpush1.msra.mxu0 0.0
    %1479 = vmatprep.subr.mxu0 0.0
    %1480 = vmatpush1.msra.mxu0 0.0
    %1481 = vmatprep.subr.mxu0 0.0
    %1482 = vmatpush1.msra.mxu0 0.0
    %1483 = vmatprep.subr.mxu0 0.0
    %1484 = vmatpush1.msra.mxu0 0.0
    %1485 = vmatprep.subr.mxu0 0.0
    %1486 = vmatpush1.msra.mxu0 0.0
    %1487 = vmatprep.subr.mxu0 0.0
    %1488 = vmatpush1.msra.mxu0 0.0
    %1489 = vmatprep.mubr.f32.mxu0 0.0
    %1490 = vmatmul.mubr.f32.gmra.mrb[0].mxu0 %v1021
    %v1491 = vpop.f32.mrb[0].mxu0
    %v1492 = vadd.f32 0.0, %v1491
    %v1493 = vpop.f32.mrb[0].mxu0
    %v1494 = vadd.f32 0.0, %v1493
    %1495 = vdwg.mxu0
    %v1496 = vadd.f32 %v1350, %v1421
    %v1497 = vadd.f32 %v1351, %v1423
    %v1498 = vadd.f32 %v1352, %v1492
    %v1499 = vadd.f32 %v1353, %v1494
    %v1500 = vmul.f32 %v1496, 0.5
    %v1501 = vtanh.pop %v1500
    %v1502 = vmul.f32 %v1501, 0.5
    %v1503 = vadd.f32 %v1502, 0.5
    %v1504 = vmul.f32 %v1497, 0.5
    %v1505 = vtanh.pop %v1504
    %v1506 = vmul.f32 %v1505, 0.5
    %v1507 = vadd.f32 %v1506, 0.5
    %v1508 = vtanh.pop %v1498
    %v1509 = vmul.f32 %v1499, 0.5
    %v1510 = vtanh.pop %v1509
    %v1511 = vmul.f32 %v1510, 0.5
    %v1512 = vadd.f32 %v1511, 0.5
    %v1513 = vmul.f32 %v1507, %v1019
    %v1514 = vmul.f32 %v1503, %v1508
    %v1515 = vadd.f32 %v1513, %v1514
    %v1516 = vtanh.pop %v1515
    %v1517 = vmul.f32 %v1512, %v1516
    %1518 = vmatprep.subr.mxu0 %v551
    %1519 = vmatpush1.msra.mxu0 %v550
    %1520 = vmatprep.subr.mxu0 %v555
    %1521 = vmatpush1.msra.mxu0 %v554
    %1522 = vmatprep.subr.mxu0 %v559
    %1523 = vmatpush1.msra.mxu0 %v558
    %1524 = vmatprep.subr.mxu0 %v563
    %1525 = vmatpush1.msra.mxu0 %v562
    %1526 = vmatprep.subr.mxu0 %v567
    %1527 = vmatpush1.msra.mxu0 %v566
    %1528 = vmatprep.subr.mxu0 %v571
    %1529 = vmatpush1.msra.mxu0 %v570
    %1530 = vmatprep.subr.mxu0 %v575
    %1531 = vmatpush1.msra.mxu0 %v574
    %1532 = vmatprep.subr.mxu0 %v579
    %1533 = vmatpush1.msra.mxu0 %v578
    %1534 = vmatprep.subr.mxu0 %v583
    %1535 = vmatpush1.msra.mxu0 %v582
    %1536 = vmatprep.subr.mxu0 %v587
    %1537 = vmatpush1.msra.mxu0 %v586
    %1538 = vmatprep.subr.mxu0 %v591
    %1539 = vmatpush1.msra.mxu0 %v590
    %1540 = vmatprep.subr.mxu0 %v595
    %1541 = vmatpush1.msra.mxu0 %v594
    %1542 = vmatprep.subr.mxu0 %v599
    %1543 = vmatpush1.msra.mxu0 %v598
    %1544 = vmatprep.subr.mxu0 %v603
    %1545 = vmatpush1.msra.mxu0 %v602
    %1546 = vmatprep.subr.mxu0 %v607
    %1547 = vmatpush1.msra.mxu0 %v606
    %1548 = vmatprep.subr.mxu0 %v611
    %1549 = vmatpush1.msra.mxu0 %v610
    %1550 = vmatprep.subr.mxu0 0.0
    %1551 = vmatpush1.msra.mxu0 0.0
    %1552 = vmatprep.subr.mxu0 0.0
    %1553 = vmatpush1.msra.mxu0 0.0
    %1554 = vmatprep.subr.mxu0 0.0
    %1555 = vmatpush1.msra.mxu0 0.0
    %1556 = vmatprep.subr.mxu0 0.0
    %1557 = vmatpush1.msra.mxu0 0.0
    %1558 = vmatprep.subr.mxu0 0.0
    %1559 = vmatpush1.msra.mxu0 0.0
    %1560 = vmatprep.subr.mxu0 0.0
    %1561 = vmatpush1.msra.mxu0 0.0
    %1562 = vmatprep.subr.mxu0 0.0
    %1563 = vmatpush1.msra.mxu0 0.0
    %1564 = vmatprep.subr.mxu0 0.0
    %1565 = vmatpush1.msra.mxu0 0.0
    %1566 = vmatprep.subr.mxu0 0.0
    %1567 = vmatpush1.msra.mxu0 0.0
    %1568 = vmatprep.subr.mxu0 0.0
    %1569 = vmatpush1.msra.mxu0 0.0
    %1570 = vmatprep.subr.mxu0 0.0
    %1571 = vmatpush1.msra.mxu0 0.0
    %1572 = vmatprep.subr.mxu0 0.0
    %1573 = vmatpush1.msra.mxu0 0.0
    %1574 = vmatprep.subr.mxu0 0.0
    %1575 = vmatpush1.msra.mxu0 0.0
    %1576 = vmatprep.subr.mxu0 0.0
    %1577 = vmatpush1.msra.mxu0 0.0
    %1578 = vmatprep.subr.mxu0 0.0
    %1579 = vmatpush1.msra.mxu0 0.0
    %1580 = vmatprep.subr.mxu0 0.0
    %1581 = vmatpush1.msra.mxu0 0.0
    %1582 = vmatprep.mubr.f32.mxu0 0.0
    %1583 = vmatmul.mubr.f32.gmra.mrb[0].mxu0 %v1348
    %v1584 = vpop.f32.mrb[0].mxu0
    %v1585 = vadd.f32 0.0, %v1584
    %v1586 = vpop.f32.mrb[0].mxu0
    %v1587 = vadd.f32 0.0, %v1586
    %1588 = vdwg.mxu0
    %1589 = vmatprep.subr.mxu0 %v553
    %1590 = vmatpush1.msra.mxu0 %v552
    %1591 = vmatprep.subr.mxu0 %v557
    %1592 = vmatpush1.msra.mxu0 %v556
    %1593 = vmatprep.subr.mxu0 %v561
    %1594 = vmatpush1.msra.mxu0 %v560
    %1595 = vmatprep.subr.mxu0 %v565
    %1596 = vmatpush1.msra.mxu0 %v564
    %1597 = vmatprep.subr.mxu0 %v569
    %1598 = vmatpush1.msra.mxu0 %v568
    %1599 = vmatprep.subr.mxu0 %v573
    %1600 = vmatpush1.msra.mxu0 %v572
    %1601 = vmatprep.subr.mxu0 %v577
    %1602 = vmatpush1.msra.mxu0 %v576
    %1603 = vmatprep.subr.mxu0 %v581
    %1604 = vmatpush1.msra.mxu0 %v580
    %1605 = vmatprep.subr.mxu0 %v585
    %1606 = vmatpush1.msra.mxu0 %v584
    %1607 = vmatprep.subr.mxu0 %v589
    %1608 = vmatpush1.msra.mxu0 %v588
    %1609 = vmatprep.subr.mxu0 %v593
    %1610 = vmatpush1.msra.mxu0 %v592
    %1611 = vmatprep.subr.mxu0 %v597
    %1612 = vmatpush1.msra.mxu0 %v596
    %1613 = vmatprep.subr.mxu0 %v601
    %1614 = vmatpush1.msra.mxu0 %v600
    %1615 = vmatprep.subr.mxu0 %v605
    %1616 = vmatpush1.msra.mxu0 %v604
    %1617 = vmatprep.subr.mxu0 %v609
    %1618 = vmatpush1.msra.mxu0 %v608
    %1619 = vmatprep.subr.mxu0 %v613
    %1620 = vmatpush1.msra.mxu0 %v612
    %1621 = vmatprep.subr.mxu0 0.0
    %1622 = vmatpush1.msra.mxu0 0.0
    %1623 = vmatprep.subr.mxu0 0.0
    %1624 = vmatpush1.msra.mxu0 0.0
    %1625 = vmatprep.subr.mxu0 0.0
    %1626 = vmatpush1.msra.mxu0 0.0
    %1627 = vmatprep.subr.mxu0 0.0
    %1628 = vmatpush1.msra.mxu0 0.0
    %1629 = vmatprep.subr.mxu0 0.0
    %1630 = vmatpush1.msra.mxu0 0.0
    %1631 = vmatprep.subr.mxu0 0.0
    %1632 = vmatpush1.msra.mxu0 0.0
    %1633 = vmatprep.subr.mxu0 0.0
    %1634 = vmatpush1.msra.mxu0 0.0
    %1635 = vmatprep.subr.mxu0 0.0
    %1636 = vmatpush1.msra.mxu0 0.0
    %1637 = vmatprep.subr.mxu0 0.0
    %1638 = vmatpush1.msra.mxu0 0.0
    %1639 = vmatprep.subr.mxu0 0.0
    %1640 = vmatpush1.msra.mxu0 0.0
    %1641 = vmatprep.subr.mxu0 0.0
    %1642 = vmatpush1.msra.mxu0 0.0
    %1643 = vmatprep.subr.mxu0 0.0
    %1644 = vmatpush1.msra.mxu0 0.0
    %1645 = vmatprep.subr.mxu0 0.0
    %1646 = vmatpush1.msra.mxu0 0.0
    %1647 = vmatprep.subr.mxu0 0.0
    %1648 = vmatpush1.msra.mxu0 0.0
    %1649 = vmatprep.subr.mxu0 0.0
    %1650 = vmatpush1.msra.mxu0 0.0
    %1651 = vmatprep.subr.mxu0 0.0
    %1652 = vmatpush1.msra.mxu0 0.0
    %1653 = vmatprep.mubr.f32.mxu0 0.0
    %1654 = vmatmul.mubr.f32.gmra.mrb[0].mxu0 %v1348
    %v1655 = vpop.f32.mrb[0].mxu0
    %v1656 = vadd.f32 0.0, %v1655
    %v1657 = vpop.f32.mrb[0].mxu0
    %v1658 = vadd.f32 0.0, %v1657
    %1659 = vdwg.mxu0
    %1660 = vmatprep.subr.mxu0 %v615
    %1661 = vmatpush1.msra.mxu0 %v614
    %1662 = vmatprep.subr.mxu0 %v619
    %1663 = vmatpush1.msra.mxu0 %v618
    %1664 = vmatprep.subr.mxu0 %v623
    %1665 = vmatpush1.msra.mxu0 %v622
    %1666 = vmatprep.subr.mxu0 %v627
    %1667 = vmatpush1.msra.mxu0 %v626
    %1668 = vmatprep.subr.mxu0 %v631
    %1669 = vmatpush1.msra.mxu0 %v630
    %1670 = vmatprep.subr.mxu0 %v635
    %1671 = vmatpush1.msra.mxu0 %v634
    %1672 = vmatprep.subr.mxu0 %v639
    %1673 = vmatpush1.msra.mxu0 %v638
    %1674 = vmatprep.subr.mxu0 %v643
    %1675 = vmatpush1.msra.mxu0 %v642
    %1676 = vmatprep.subr.mxu0 %v647
    %1677 = vmatpush1.msra.mxu0 %v646
    %1678 = vmatprep.subr.mxu0 %v651
    %1679 = vmatpush1.msra.mxu0 %v650
    %1680 = vmatprep.subr.mxu0 %v655
    %1681 = vmatpush1.msra.mxu0 %v654
    %1682 = vmatprep.subr.mxu0 %v659
    %1683 = vmatpush1.msra.mxu0 %v658
    %1684 = vmatprep.subr.mxu0 %v663
    %1685 = vmatpush1.msra.mxu0 %v662
    %1686 = vmatprep.subr.mxu0 %v667
    %1687 = vmatpush1.msra.mxu0 %v666
    %1688 = vmatprep.subr.mxu0 %v671
    %1689 = vmatpush1.msra.mxu0 %v670
    %1690 = vmatprep.subr.mxu0 %v675
    %1691 = vmatpush1.msra.mxu0 %v674
    %1692 = vmatprep.subr.mxu0 0.0
    %1693 = vmatpush1.msra.mxu0 0.0
    %1694 = vmatprep.subr.mxu0 0.0
    %1695 = vmatpush1.msra.mxu0 0.0
    %1696 = vmatprep.subr.mxu0 0.0
    %1697 = vmatpush1.msra.mxu0 0.0
    %1698 = vmatprep.subr.mxu0 0.0
    %1699 = vmatpush1.msra.mxu0 0.0
    %1700 = vmatprep.subr.mxu0 0.0
    %1701 = vmatpush1.msra.mxu0 0.0
    %1702 = vmatprep.subr.mxu0 0.0
    %1703 = vmatpush1.msra.mxu0 0.0
    %1704 = vmatprep.subr.mxu0 0.0
    %1705 = vmatpush1.msra.mxu0 0.0
    %1706 = vmatprep.subr.mxu0 0.0
    %1707 = vmatpush1.msra.mxu0 0.0
    %1708 = vmatprep.subr.mxu0 0.0
    %1709 = vmatpush1.msra.mxu0 0.0
    %1710 = vmatprep.subr.mxu0 0.0
    %1711 = vmatpush1.msra.mxu0 0.0
    %1712 = vmatprep.subr.mxu0 0.0
    %1713 = vmatpush1.msra.mxu0 0.0
    %1714 = vmatprep.subr.mxu0 0.0
    %1715 = vmatpush1.msra.mxu0 0.0
    %1716 = vmatprep.subr.mxu0 0.0
    %1717 = vmatpush1.msra.mxu0 0.0
    %1718 = vmatprep.subr.mxu0 0.0
    %1719 = vmatpush1.msra.mxu0 0.0
    %1720 = vmatprep.subr.mxu0 0.0
    %1721 = vmatpush1.msra.mxu0 0.0
    %1722 = vmatprep.subr.mxu0 0.0
    %1723 = vmatpush1.msra.mxu0 0.0
    %1724 = vmatprep.mubr.f32.mxu0 0.0
    %1725 = vmatmul.mubr.f32.gmra.mrb[0].mxu0 %v1021
    %v1726 = vpop.f32.mrb[0].mxu0
    %v1727 = vadd.f32 %v1585, %v1726
    %v1728 = vpop.f32.mrb[0].mxu0
    %v1729 = vadd.f32 %v1587, %v1728
    %1730 = vdwg.mxu0
    %1731 = vmatprep.subr.mxu0 %v617
    %1732 = vmatpush1.msra.mxu0 %v616
    %1733 = vmatprep.subr.mxu0 %v621
    %1734 = vmatpush1.msra.mxu0 %v620
    %1735 = vmatprep.subr.mxu0 %v625
    %1736 = vmatpush1.msra.mxu0 %v624
    %1737 = vmatprep.subr.mxu0 %v629
    %1738 = vmatpush1.msra.mxu0 %v628
    %1739 = vmatprep.subr.mxu0 %v633
    %1740 = vmatpush1.msra.mxu0 %v632
    %1741 = vmatprep.subr.mxu0 %v637
    %1742 = vmatpush1.msra.mxu0 %v636
    %1743 = vmatprep.subr.mxu0 %v641
    %1744 = vmatpush1.msra.mxu0 %v640
    %1745 = vmatprep.subr.mxu0 %v645
    %1746 = vmatpush1.msra.mxu0 %v644
    %1747 = vmatprep.subr.mxu0 %v649
    %1748 = vmatpush1.msra.mxu0 %v648
    %1749 = vmatprep.subr.mxu0 %v653
    %1750 = vmatpush1.msra.mxu0 %v652
    %1751 = vmatprep.subr.mxu0 %v657
    %1752 = vmatpush1.msra.mxu0 %v656
    %1753 = vmatprep.subr.mxu0 %v661
    %1754 = vmatpush1.msra.mxu0 %v660
    %1755 = vmatprep.subr.mxu0 %v665
    %1756 = vmatpush1.msra.mxu0 %v664
    %1757 = vmatprep.subr.mxu0 %v669
    %1758 = vmatpush1.msra.mxu0 %v668
    %1759 = vmatprep.subr.mxu0 %v673
    %1760 = vmatpush1.msra.mxu0 %v672
    %1761 = vmatprep.subr.mxu0 %v677
    %1762 = vmatpush1.msra.mxu0 %v676
    %1763 = vmatprep.subr.mxu0 0.0
    %1764 = vmatpush1.msra.mxu0 0.0
    %1765 = vmatprep.subr.mxu0 0.0
    %1766 = vmatpush1.msra.mxu0 0.0
    %1767 = vmatprep.subr.mxu0 0.0
    %1768 = vmatpush1.msra.mxu0 0.0
    %1769 = vmatprep.subr.mxu0 0.0
    %1770 = vmatpush1.msra.mxu0 0.0
    %1771 = vmatprep.subr.mxu0 0.0
    %1772 = vmatpush1.msra.mxu0 0.0
    %1773 = vmatprep.subr.mxu0 0.0
    %1774 = vmatpush1.msra.mxu0 0.0
    %1775 = vmatprep.subr.mxu0 0.0
    %1776 = vmatpush1.msra.mxu0 0.0
    %1777 = vmatprep.subr.mxu0 0.0
    %1778 = vmatpush1.msra.mxu0 0.0
    %1779 = vmatprep.subr.mxu0 0.0
    %1780 = vmatpush1.msra.mxu0 0.0
    %1781 = vmatprep.subr.mxu0 0.0
    %1782 = vmatpush1.msra.mxu0 0.0
    %1783 = vmatprep.subr.mxu0 0.0
    %1784 = vmatpush1.msra.mxu0 0.0
    %1785 = vmatprep.subr.mxu0 0.0
    %1786 = vmatpush1.msra.mxu0 0.0
    %1787 = vmatprep.subr.mxu0 0.0
    %1788 = vmatpush1.msra.mxu0 0.0
    %1789 = vmatprep.subr.mxu0 0.0
    %1790 = vmatpush1.msra.mxu0 0.0
    %1791 = vmatprep.subr.mxu0 0.0
    %1792 = vmatpush1.msra.mxu0 0.0
    %1793 = vmatprep.subr.mxu0 0.0
    %1794 = vmatpush1.msra.mxu0 0.0
    %1795 = vmatprep.mubr.f32.mxu0 0.0
    %1796 = vmatmul.mubr.f32.gmra.mrb[0].mxu0 %v1021
    %v1797 = vpop.f32.mrb[0].mxu0
    %v1798 = vadd.f32 %v1656, %v1797
    %v1799 = vpop.f32.mrb[0].mxu0
    %v1800 = vadd.f32 %v1658, %v1799
    %1801 = vdwg.mxu0
    %v1802 = vadd.f32 %v1727, %v1310
    %v1803 = vadd.f32 %v1729, %v1314
    %v1804 = vadd.f32 %v1798, %v1318
    %v1805 = vadd.f32 %v1800, %v1322
    %v1806 = vmul.f32 %v1802, 0.5
    %v1807 = vtanh.pop %v1806
    %v1808 = vmul.f32 %v1807, 0.5
    %v1809 = vadd.f32 %v1808, 0.5
    %v1810 = vmul.f32 %v1803, 0.5
    %v1811 = vtanh.pop %v1810
    %v1812 = vmul.f32 %v1811, 0.5
    %v1813 = vadd.f32 %v1812, 0.5
    %v1814 = vtanh.pop %v1804
    %v1815 = vmul.f32 %v1805, 0.5
    %v1816 = vtanh.pop %v1815
    %v1817 = vmul.f32 %v1816, 0.5
    %v1818 = vadd.f32 %v1817, 0.5
    %v1819 = vmul.f32 %v1813, %v1346
    %v1820 = vmul.f32 %v1809, %v1814
    %v1821 = vadd.f32 %v1819, %v1820
    %v1822 = vtanh.pop %v1821
    %v1823 = vmul.f32 %v1818, %v1822
    %1824 = vst [vmem:[#allocation14 + $0x8] sm:$0xff] %v1823
    %v1825 = vld [vmem:[#allocation2 + $0x60] sm:$0xff]
    %v1826 = vld [vmem:[#allocation2 + $0x68] sm:$0xff]
    %v1827 = vld [vmem:[#allocation2 + $0x70] sm:$0xff]
    %v1828 = vld [vmem:[#allocation2 + $0x78] sm:$0xff]
    %1829 = vmatprep.subr.mxu0 %v486
    %1830 = vmatpush1.msra.mxu0 %v485
    %1831 = vmatprep.subr.mxu0 %v490
    %1832 = vmatpush1.msra.mxu0 %v489
    %1833 = vmatprep.subr.mxu0 %v494
    %1834 = vmatpush1.msra.mxu0 %v493
    %1835 = vmatprep.subr.mxu0 %v498
    %1836 = vmatpush1.msra.mxu0 %v497
    %1837 = vmatprep.subr.mxu0 %v502
    %1838 = vmatpush1.msra.mxu0 %v501
    %1839 = vmatprep.subr.mxu0 %v506
    %1840 = vmatpush1.msra.mxu0 %v505
    %1841 = vmatprep.subr.mxu0 %v510
    %1842 = vmatpush1.msra.mxu0 %v509
    %1843 = vmatprep.subr.mxu0 %v514
    %1844 = vmatpush1.msra.mxu0 %v513
    %1845 = vmatprep.subr.mxu0 %v518
    %1846 = vmatpush1.msra.mxu0 %v517
    %1847 = vmatprep.subr.mxu0 %v522
    %1848 = vmatpush1.msra.mxu0 %v521
    %1849 = vmatprep.subr.mxu0 %v526
    %1850 = vmatpush1.msra.mxu0 %v525
    %1851 = vmatprep.subr.mxu0 %v530
    %1852 = vmatpush1.msra.mxu0 %v529
    %1853 = vmatprep.subr.mxu0 %v534
    %1854 = vmatpush1.msra.mxu0 %v533
    %1855 = vmatprep.subr.mxu0 %v538
    %1856 = vmatpush1.msra.mxu0 %v537
    %1857 = vmatprep.subr.mxu0 %v542
    %1858 = vmatpush1.msra.mxu0 %v541
    %1859 = vmatprep.subr.mxu0 %v546
    %1860 = vmatpush1.msra.mxu0 %v545
    %1861 = vmatprep.subr.mxu0 0.0
    %1862 = vmatpush1.msra.mxu0 0.0
    %1863 = vmatprep.subr.mxu0 0.0
    %1864 = vmatpush1.msra.mxu0 0.0
    %1865 = vmatprep.subr.mxu0 0.0
    %1866 = vmatpush1.msra.mxu0 0.0
    %1867 = vmatprep.subr.mxu0 0.0
    %1868 = vmatpush1.msra.mxu0 0.0
    %1869 = vmatprep.subr.mxu0 0.0
    %1870 = vmatpush1.msra.mxu0 0.0
    %1871 = vmatprep.subr.mxu0 0.0
    %1872 = vmatpush1.msra.mxu0 0.0
    %1873 = vmatprep.subr.mxu0 0.0
    %1874 = vmatpush1.msra.mxu0 0.0
    %1875 = vmatprep.subr.mxu0 0.0
    %1876 = vmatpush1.msra.mxu0 0.0
    %1877 = vmatprep.subr.mxu0 0.0
    %1878 = vmatpush1.msra.mxu0 0.0
    %1879 = vmatprep.subr.mxu0 0.0
    %1880 = vmatpush1.msra.mxu0 0.0
    %1881 = vmatprep.subr.mxu0 0.0
    %1882 = vmatpush1.msra.mxu0 0.0
    %1883 = vmatprep.subr.mxu0 0.0
    %1884 = vmatpush1.msra.mxu0 0.0
    %1885 = vmatprep.subr.mxu0 0.0
    %1886 = vmatpush1.msra.mxu0 0.0
    %1887 = vmatprep.subr.mxu0 0.0
    %1888 = vmatpush1.msra.mxu0 0.0
    %1889 = vmatprep.subr.mxu0 0.0
    %1890 = vmatpush1.msra.mxu0 0.0
    %1891 = vmatprep.subr.mxu0 0.0
    %1892 = vmatpush1.msra.mxu0 0.0
    %1893 = vmatprep.mubr.f32.mxu0 0.0
    %1894 = vmatmul.mubr.f32.gmra.mrb[0].mxu0 %v1517
    %v1895 = vpop.f32.mrb[0].mxu0
    %v1896 = vadd.f32 0.0, %v1895
    %v1897 = vpop.f32.mrb[0].mxu0
    %v1898 = vadd.f32 0.0, %v1897
    %1899 = vdwg.mxu0
    %1900 = vmatprep.subr.mxu0 %v488
    %1901 = vmatpush1.msra.mxu0 %v487
    %1902 = vmatprep.subr.mxu0 %v492
    %1903 = vmatpush1.msra.mxu0 %v491
    %1904 = vmatprep.subr.mxu0 %v496
    %1905 = vmatpush1.msra.mxu0 %v495
    %1906 = vmatprep.subr.mxu0 %v500
    %1907 = vmatpush1.msra.mxu0 %v499
    %1908 = vmatprep.subr.mxu0 %v504
    %1909 = vmatpush1.msra.mxu0 %v503
    %1910 = vmatprep.subr.mxu0 %v508
    %1911 = vmatpush1.msra.mxu0 %v507
    %1912 = vmatprep.subr.mxu0 %v512
    %1913 = vmatpush1.msra.mxu0 %v511
    %1914 = vmatprep.subr.mxu0 %v516
    %1915 = vmatpush1.msra.mxu0 %v515
    %1916 = vmatprep.subr.mxu0 %v520
    %1917 = vmatpush1.msra.mxu0 %v519
    %1918 = vmatprep.subr.mxu0 %v524
    %1919 = vmatpush1.msra.mxu0 %v523
    %1920 = vmatprep.subr.mxu0 %v528
    %1921 = vmatpush1.msra.mxu0 %v527
    %1922 = vmatprep.subr.mxu0 %v532
    %1923 = vmatpush1.msra.mxu0 %v531
    %1924 = vmatprep.subr.mxu0 %v536
    %1925 = vmatpush1.msra.mxu0 %v535
    %1926 = vmatprep.subr.mxu0 %v540
    %1927 = vmatpush1.msra.mxu0 %v539
    %1928 = vmatprep.subr.mxu0 %v544
    %1929 = vmatpush1.msra.mxu0 %v543
    %1930 = vmatprep.subr.mxu0 %v548
    %1931 = vmatpush1.msra.mxu0 %v547
    %1932 = vmatprep.subr.mxu0 0.0
    %1933 = vmatpush1.msra.mxu0 0.0
    %1934 = vmatprep.subr.mxu0 0.0
    %1935 = vmatpush1.msra.mxu0 0.0
    %1936 = vmatprep.subr.mxu0 0.0
    %1937 = vmatpush1.msra.mxu0 0.0
    %1938 = vmatprep.subr.mxu0 0.0
    %1939 = vmatpush1.msra.mxu0 0.0
    %1940 = vmatprep.subr.mxu0 0.0
    %1941 = vmatpush1.msra.mxu0 0.0
    %1942 = vmatprep.subr.mxu0 0.0
    %1943 = vmatpush1.msra.mxu0 0.0
    %1944 = vmatprep.subr.mxu0 0.0
    %1945 = vmatpush1.msra.mxu0 0.0
    %1946 = vmatprep.subr.mxu0 0.0
    %1947 = vmatpush1.msra.mxu0 0.0
    %1948 = vmatprep.subr.mxu0 0.0
    %1949 = vmatpush1.msra.mxu0 0.0
    %1950 = vmatprep.subr.mxu0 0.0
    %1951 = vmatpush1.msra.mxu0 0.0
    %1952 = vmatprep.subr.mxu0 0.0
    %1953 = vmatpush1.msra.mxu0 0.0
    %1954 = vmatprep.subr.mxu0 0.0
    %1955 = vmatpush1.msra.mxu0 0.0
    %1956 = vmatprep.subr.mxu0 0.0
    %1957 = vmatpush1.msra.mxu0 0.0
    %1958 = vmatprep.subr.mxu0 0.0
    %1959 = vmatpush1.msra.mxu0 0.0
    %1960 = vmatprep.subr.mxu0 0.0
    %1961 = vmatpush1.msra.mxu0 0.0
    %1962 = vmatprep.subr.mxu0 0.0
    %1963 = vmatpush1.msra.mxu0 0.0
    %1964 = vmatprep.mubr.f32.mxu0 0.0
    %1965 = vmatmul.mubr.f32.gmra.mrb[0].mxu0 %v1517
    %v1966 = vpop.f32.mrb[0].mxu0
    %v1967 = vadd.f32 0.0, %v1966
    %v1968 = vpop.f32.mrb[0].mxu0
    %v1969 = vadd.f32 0.0, %v1968
    %1970 = vdwg.mxu0
    %v1971 = vadd.f32 %v1825, %v1896
    %v1972 = vadd.f32 %v1826, %v1898
    %v1973 = vadd.f32 %v1827, %v1967
    %v1974 = vadd.f32 %v1828, %v1969
    %v1975 = vmul.f32 %v1971, 0.5
    %v1976 = vtanh.pop %v1975
    %v1977 = vmul.f32 %v1976, 0.5
    %v1978 = vadd.f32 %v1977, 0.5
    %v1979 = vmul.f32 %v1972, 0.5
    %v1980 = vtanh.pop %v1979
    %v1981 = vmul.f32 %v1980, 0.5
    %v1982 = vadd.f32 %v1981, 0.5
    %v1983 = vtanh.pop %v1973
    %v1984 = vmul.f32 %v1974, 0.5
    %v1985 = vtanh.pop %v1984
    %v1986 = vmul.f32 %v1985, 0.5
    %v1987 = vadd.f32 %v1986, 0.5
    %v1988 = vmul.f32 %v1982, %v1515
    %v1989 = vmul.f32 %v1978, %v1983
    %v1990 = vadd.f32 %v1988, %v1989
    %v1991 = vtanh.pop %v1990
    %v1992 = vmul.f32 %v1987, %v1991
    %1993 = vmatprep.subr.mxu0 %v551
    %1994 = vmatpush1.msra.mxu0 %v550
    %1995 = vmatprep.subr.mxu0 %v555
    %1996 = vmatpush1.msra.mxu0 %v554
    %1997 = vmatprep.subr.mxu0 %v559
    %1998 = vmatpush1.msra.mxu0 %v558
    %1999 = vmatprep.subr.mxu0 %v563
    %2000 = vmatpush1.msra.mxu0 %v562
    %2001 = vmatprep.subr.mxu0 %v567
    %2002 = vmatpush1.msra.mxu0 %v566
    %2003 = vmatprep.subr.mxu0 %v571
    %2004 = vmatpush1.msra.mxu0 %v570
    %2005 = vmatprep.subr.mxu0 %v575
    %2006 = vmatpush1.msra.mxu0 %v574
    %2007 = vmatprep.subr.mxu0 %v579
    %2008 = vmatpush1.msra.mxu0 %v578
    %2009 = vmatprep.subr.mxu0 %v583
    %2010 = vmatpush1.msra.mxu0 %v582
    %2011 = vmatprep.subr.mxu0 %v587
    %2012 = vmatpush1.msra.mxu0 %v586
    %2013 = vmatprep.subr.mxu0 %v591
    %2014 = vmatpush1.msra.mxu0 %v590
    %2015 = vmatprep.subr.mxu0 %v595
    %2016 = vmatpush1.msra.mxu0 %v594
    %2017 = vmatprep.subr.mxu0 %v599
    %2018 = vmatpush1.msra.mxu0 %v598
    %2019 = vmatprep.subr.mxu0 %v603
    %2020 = vmatpush1.msra.mxu0 %v602
    %2021 = vmatprep.subr.mxu0 %v607
    %2022 = vmatpush1.msra.mxu0 %v606
    %2023 = vmatprep.subr.mxu0 %v611
    %2024 = vmatpush1.msra.mxu0 %v610
    %2025 = vmatprep.subr.mxu0 0.0
    %2026 = vmatpush1.msra.mxu0 0.0
    %2027 = vmatprep.subr.mxu0 0.0
    %2028 = vmatpush1.msra.mxu0 0.0
    %2029 = vmatprep.subr.mxu0 0.0
    %2030 = vmatpush1.msra.mxu0 0.0
    %2031 = vmatprep.subr.mxu0 0.0
    %2032 = vmatpush1.msra.mxu0 0.0
    %2033 = vmatprep.subr.mxu0 0.0
    %2034 = vmatpush1.msra.mxu0 0.0
    %2035 = vmatprep.subr.mxu0 0.0
    %2036 = vmatpush1.msra.mxu0 0.0
    %2037 = vmatprep.subr.mxu0 0.0
    %2038 = vmatpush1.msra.mxu0 0.0
    %2039 = vmatprep.subr.mxu0 0.0
    %2040 = vmatpush1.msra.mxu0 0.0
    %2041 = vmatprep.subr.mxu0 0.0
    %2042 = vmatpush1.msra.mxu0 0.0
    %2043 = vmatprep.subr.mxu0 0.0
    %2044 = vmatpush1.msra.mxu0 0.0
    %2045 = vmatprep.subr.mxu0 0.0
    %2046 = vmatpush1.msra.mxu0 0.0
    %2047 = vmatprep.subr.mxu0 0.0
    %2048 = vmatpush1.msra.mxu0 0.0
    %2049 = vmatprep.subr.mxu0 0.0
    %2050 = vmatpush1.msra.mxu0 0.0
    %2051 = vmatprep.subr.mxu0 0.0
    %2052 = vmatpush1.msra.mxu0 0.0
    %2053 = vmatprep.subr.mxu0 0.0
    %2054 = vmatpush1.msra.mxu0 0.0
    %2055 = vmatprep.subr.mxu0 0.0
    %2056 = vmatpush1.msra.mxu0 0.0
    %2057 = vmatprep.mubr.f32.mxu0 0.0
    %2058 = vmatmul.mubr.f32.gmra.mrb[0].mxu0 %v1823
    %v2059 = vpop.f32.mrb[0].mxu0
    %v2060 = vadd.f32 0.0, %v2059
    %v2061 = vpop.f32.mrb[0].mxu0
    %v2062 = vadd.f32 0.0, %v2061
    %2063 = vdwg.mxu0
    %2064 = vmatprep.subr.mxu0 %v553
    %2065 = vmatpush1.msra.mxu0 %v552
    %2066 = vmatprep.subr.mxu0 %v557
    %2067 = vmatpush1.msra.mxu0 %v556
    %2068 = vmatprep.subr.mxu0 %v561
    %2069 = vmatpush1.msra.mxu0 %v560
    %2070 = vmatprep.subr.mxu0 %v565
    %2071 = vmatpush1.msra.mxu0 %v564
    %2072 = vmatprep.subr.mxu0 %v569
    %2073 = vmatpush1.msra.mxu0 %v568
    %2074 = vmatprep.subr.mxu0 %v573
    %2075 = vmatpush1.msra.mxu0 %v572
    %2076 = vmatprep.subr.mxu0 %v577
    %2077 = vmatpush1.msra.mxu0 %v576
    %2078 = vmatprep.subr.mxu0 %v581
    %2079 = vmatpush1.msra.mxu0 %v580
    %2080 = vmatprep.subr.mxu0 %v585
    %2081 = vmatpush1.msra.mxu0 %v584
    %2082 = vmatprep.subr.mxu0 %v589
    %2083 = vmatpush1.msra.mxu0 %v588
    %2084 = vmatprep.subr.mxu0 %v593
    %2085 = vmatpush1.msra.mxu0 %v592
    %2086 = vmatprep.subr.mxu0 %v597
    %2087 = vmatpush1.msra.mxu0 %v596
    %2088 = vmatprep.subr.mxu0 %v601
    %2089 = vmatpush1.msra.mxu0 %v600
    %2090 = vmatprep.subr.mxu0 %v605
    %2091 = vmatpush1.msra.mxu0 %v604
    %2092 = vmatprep.subr.mxu0 %v609
    %2093 = vmatpush1.msra.mxu0 %v608
    %2094 = vmatprep.subr.mxu0 %v613
    %2095 = vmatpush1.msra.mxu0 %v612
    %2096 = vmatprep.subr.mxu0 0.0
    %2097 = vmatpush1.msra.mxu0 0.0
    %2098 = vmatprep.subr.mxu0 0.0
    %2099 = vmatpush1.msra.mxu0 0.0
    %2100 = vmatprep.subr.mxu0 0.0
    %2101 = vmatpush1.msra.mxu0 0.0
    %2102 = vmatprep.subr.mxu0 0.0
    %2103 = vmatpush1.msra.mxu0 0.0
    %2104 = vmatprep.subr.mxu0 0.0
    %2105 = vmatpush1.msra.mxu0 0.0
    %2106 = vmatprep.subr.mxu0 0.0
    %2107 = vmatpush1.msra.mxu0 0.0
    %2108 = vmatprep.subr.mxu0 0.0
    %2109 = vmatpush1.msra.mxu0 0.0
    %2110 = vmatprep.subr.mxu0 0.0
    %2111 = vmatpush1.msra.mxu0 0.0
    %2112 = vmatprep.subr.mxu0 0.0
    %2113 = vmatpush1.msra.mxu0 0.0
    %2114 = vmatprep.subr.mxu0 0.0
    %2115 = vmatpush1.msra.mxu0 0.0
    %2116 = vmatprep.subr.mxu0 0.0
    %2117 = vmatpush1.msra.mxu0 0.0
    %2118 = vmatprep.subr.mxu0 0.0
    %2119 = vmatpush1.msra.mxu0 0.0
    %2120 = vmatprep.subr.mxu0 0.0
    %2121 = vmatpush1.msra.mxu0 0.0
    %2122 = vmatprep.subr.mxu0 0.0
    %2123 = vmatpush1.msra.mxu0 0.0
    %2124 = vmatprep.subr.mxu0 0.0
    %2125 = vmatpush1.msra.mxu0 0.0
    %2126 = vmatprep.subr.mxu0 0.0
    %2127 = vmatpush1.msra.mxu0 0.0
    %2128 = vmatprep.mubr.f32.mxu0 0.0
    %2129 = vmatmul.mubr.f32.gmra.mrb[0].mxu0 %v1823
    %v2130 = vpop.f32.mrb[0].mxu0
    %v2131 = vadd.f32 0.0, %v2130
    %v2132 = vpop.f32.mrb[0].mxu0
    %v2133 = vadd.f32 0.0, %v2132
    %2134 = vdwg.mxu0
    %2135 = vmatprep.subr.mxu0 %v615
    %2136 = vmatpush1.msra.mxu0 %v614
    %2137 = vmatprep.subr.mxu0 %v619
    %2138 = vmatpush1.msra.mxu0 %v618
    %2139 = vmatprep.subr.mxu0 %v623
    %2140 = vmatpush1.msra.mxu0 %v622
    %2141 = vmatprep.subr.mxu0 %v627
    %2142 = vmatpush1.msra.mxu0 %v626
    %2143 = vmatprep.subr.mxu0 %v631
    %2144 = vmatpush1.msra.mxu0 %v630
    %2145 = vmatprep.subr.mxu0 %v635
    %2146 = vmatpush1.msra.mxu0 %v634
    %2147 = vmatprep.subr.mxu0 %v639
    %2148 = vmatpush1.msra.mxu0 %v638
    %2149 = vmatprep.subr.mxu0 %v643
    %2150 = vmatpush1.msra.mxu0 %v642
    %2151 = vmatprep.subr.mxu0 %v647
    %2152 = vmatpush1.msra.mxu0 %v646
    %2153 = vmatprep.subr.mxu0 %v651
    %2154 = vmatpush1.msra.mxu0 %v650
    %2155 = vmatprep.subr.mxu0 %v655
    %2156 = vmatpush1.msra.mxu0 %v654
    %2157 = vmatprep.subr.mxu0 %v659
    %2158 = vmatpush1.msra.mxu0 %v658
    %2159 = vmatprep.subr.mxu0 %v663
    %2160 = vmatpush1.msra.mxu0 %v662
    %2161 = vmatprep.subr.mxu0 %v667
    %2162 = vmatpush1.msra.mxu0 %v666
    %2163 = vmatprep.subr.mxu0 %v671
    %2164 = vmatpush1.msra.mxu0 %v670
    %2165 = vmatprep.subr.mxu0 %v675
    %2166 = vmatpush1.msra.mxu0 %v674
    %2167 = vmatprep.subr.mxu0 0.0
    %2168 = vmatpush1.msra.mxu0 0.0
    %2169 = vmatprep.subr.mxu0 0.0
    %2170 = vmatpush1.msra.mxu0 0.0
    %2171 = vmatprep.subr.mxu0 0.0
    %2172 = vmatpush1.msra.mxu0 0.0
    %2173 = vmatprep.subr.mxu0 0.0
    %2174 = vmatpush1.msra.mxu0 0.0
    %2175 = vmatprep.subr.mxu0 0.0
    %2176 = vmatpush1.msra.mxu0 0.0
    %2177 = vmatprep.subr.mxu0 0.0
    %2178 = vmatpush1.msra.mxu0 0.0
    %2179 = vmatprep.subr.mxu0 0.0
    %2180 = vmatpush1.msra.mxu0 0.0
    %2181 = vmatprep.subr.mxu0 0.0
    %2182 = vmatpush1.msra.mxu0 0.0
    %2183 = vmatprep.subr.mxu0 0.0
    %2184 = vmatpush1.msra.mxu0 0.0
    %2185 = vmatprep.subr.mxu0 0.0
    %2186 = vmatpush1.msra.mxu0 0.0
    %2187 = vmatprep.subr.mxu0 0.0
    %2188 = vmatpush1.msra.mxu0 0.0
    %2189 = vmatprep.subr.mxu0 0.0
    %2190 = vmatpush1.msra.mxu0 0.0
    %2191 = vmatprep.subr.mxu0 0.0
    %2192 = vmatpush1.msra.mxu0 0.0
    %2193 = vmatprep.subr.mxu0 0.0
    %2194 = vmatpush1.msra.mxu0 0.0
    %2195 = vmatprep.subr.mxu0 0.0
    %2196 = vmatpush1.msra.mxu0 0.0
    %2197 = vmatprep.subr.mxu0 0.0
    %2198 = vmatpush1.msra.mxu0 0.0
    %2199 = vmatprep.mubr.f32.mxu0 0.0
    %2200 = vmatmul.mubr.f32.gmra.mrb[0].mxu0 %v1517
    %v2201 = vpop.f32.mrb[0].mxu0
    %v2202 = vadd.f32 %v2060, %v2201
    %v2203 = vpop.f32.mrb[0].mxu0
    %v2204 = vadd.f32 %v2062, %v2203
    %2205 = vdwg.mxu0
    %2206 = vmatprep.subr.mxu0 %v617
    %2207 = vmatpush1.msra.mxu0 %v616
    %2208 = vmatprep.subr.mxu0 %v621
    %2209 = vmatpush1.msra.mxu0 %v620
    %2210 = vmatprep.subr.mxu0 %v625
    %2211 = vmatpush1.msra.mxu0 %v624
    %2212 = vmatprep.subr.mxu0 %v629
    %2213 = vmatpush1.msra.mxu0 %v628
    %2214 = vmatprep.subr.mxu0 %v633
    %2215 = vmatpush1.msra.mxu0 %v632
    %2216 = vmatprep.subr.mxu0 %v637
    %2217 = vmatpush1.msra.mxu0 %v636
    %2218 = vmatprep.subr.mxu0 %v641
    %2219 = vmatpush1.msra.mxu0 %v640
    %2220 = vmatprep.subr.mxu0 %v645
    %2221 = vmatpush1.msra.mxu0 %v644
    %2222 = vmatprep.subr.mxu0 %v649
    %2223 = vmatpush1.msra.mxu0 %v648
    %2224 = vmatprep.subr.mxu0 %v653
    %2225 = vmatpush1.msra.mxu0 %v652
    %2226 = vmatprep.subr.mxu0 %v657
    %2227 = vmatpush1.msra.mxu0 %v656
    %2228 = vmatprep.subr.mxu0 %v661
    %2229 = vmatpush1.msra.mxu0 %v660
    %2230 = vmatprep.subr.mxu0 %v665
    %2231 = vmatpush1.msra.mxu0 %v664
    %2232 = vmatprep.subr.mxu0 %v669
    %2233 = vmatpush1.msra.mxu0 %v668
    %2234 = vmatprep.subr.mxu0 %v673
    %2235 = vmatpush1.msra.mxu0 %v672
    %2236 = vmatprep.subr.mxu0 %v677
    %2237 = vmatpush1.msra.mxu0 %v676
    %2238 = vmatprep.subr.mxu0 0.0
    %2239 = vmatpush1.msra.mxu0 0.0
    %2240 = vmatprep.subr.mxu0 0.0
    %2241 = vmatpush1.msra.mxu0 0.0
    %2242 = vmatprep.subr.mxu0 0.0
    %2243 = vmatpush1.msra.mxu0 0.0
    %2244 = vmatprep.subr.mxu0 0.0
    %2245 = vmatpush1.msra.mxu0 0.0
    %2246 = vmatprep.subr.mxu0 0.0
    %2247 = vmatpush1.msra.mxu0 0.0
    %2248 = vmatprep.subr.mxu0 0.0
    %2249 = vmatpush1.msra.mxu0 0.0
    %2250 = vmatprep.subr.mxu0 0.0
    %2251 = vmatpush1.msra.mxu0 0.0
    %2252 = vmatprep.subr.mxu0 0.0
    %2253 = vmatpush1.msra.mxu0 0.0
    %2254 = vmatprep.subr.mxu0 0.0
    %2255 = vmatpush1.msra.mxu0 0.0
    %2256 = vmatprep.subr.mxu0 0.0
    %2257 = vmatpush1.msra.mxu0 0.0
    %2258 = vmatprep.subr.mxu0 0.0
    %2259 = vmatpush1.msra.mxu0 0.0
    %2260 = vmatprep.subr.mxu0 0.0
    %2261 = vmatpush1.msra.mxu0 0.0
    %2262 = vmatprep.subr.mxu0 0.0
    %2263 = vmatpush1.msra.mxu0 0.0
    %2264 = vmatprep.subr.mxu0 0.0
    %2265 = vmatpush1.msra.mxu0 0.0
    %2266 = vmatprep.subr.mxu0 0.0
    %2267 = vmatpush1.msra.mxu0 0.0
    %2268 = vmatprep.subr.mxu0 0.0
    %2269 = vmatpush1.msra.mxu0 0.0
    %2270 = vmatprep.mubr.f32.mxu0 0.0
    %2271 = vmatmul.mubr.f32.gmra.mrb[0].mxu0 %v1517
    %v2272 = vpop.f32.mrb[0].mxu0
    %v2273 = vadd.f32 %v2131, %v2272
    %v2274 = vpop.f32.mrb[0].mxu0
    %v2275 = vadd.f32 %v2133, %v2274
    %2276 = vdwg.mxu0
    %v2277 = vadd.f32 %v2202, %v1310
    %v2278 = vadd.f32 %v2204, %v1314
    %v2279 = vadd.f32 %v2273, %v1318
    %v2280 = vadd.f32 %v2275, %v1322
    %v2281 = vmul.f32 %v2277, 0.5
    %v2282 = vtanh.pop %v2281
    %v2283 = vmul.f32 %v2282, 0.5
    %v2284 = vadd.f32 %v2283, 0.5
    %v2285 = vmul.f32 %v2278, 0.5
    %v2286 = vtanh.pop %v2285
    %v2287 = vmul.f32 %v2286, 0.5
    %v2288 = vadd.f32 %v2287, 0.5
    %v2289 = vtanh.pop %v2279
    %v2290 = vmul.f32 %v2280, 0.5
    %v2291 = vtanh.pop %v2290
    %v2292 = vmul.f32 %v2291, 0.5
    %v2293 = vadd.f32 %v2292, 0.5
    %v2294 = vmul.f32 %v2288, %v1821
    %v2295 = vmul.f32 %v2284, %v2289
    %v2296 = vadd.f32 %v2294, %v2295
    %v2297 = vtanh.pop %v2296
    %v2298 = vmul.f32 %v2293, %v2297
    %2299 = vst [vmem:[#allocation14 + $0x10] sm:$0xff] %v2298
    %v2300 = vld [vmem:[#allocation2 + $0x80] sm:$0xff]
    %v2301 = vld [vmem:[#allocation2 + $0x88] sm:$0xff]
    %v2302 = vld [vmem:[#allocation2 + $0x90] sm:$0xff]
    %v2303 = vld [vmem:[#allocation2 + $0x98] sm:$0xff]
    %2304 = vmatprep.subr.mxu0 %v486
    %2305 = vmatpush1.msra.mxu0 %v485
    %2306 = vmatprep.subr.mxu0 %v490
    %2307 = vmatpush1.msra.mxu0 %v489
    %2308 = vmatprep.subr.mxu0 %v494
    %2309 = vmatpush1.msra.mxu0 %v493
    %2310 = vmatprep.subr.mxu0 %v498
    %2311 = vmatpush1.msra.mxu0 %v497
    %2312 = vmatprep.subr.mxu0 %v502
    %2313 = vmatpush1.msra.mxu0 %v501
    %2314 = vmatprep.subr.mxu0 %v506
    %2315 = vmatpush1.msra.mxu0 %v505
    %2316 = vmatprep.subr.mxu0 %v510
    %2317 = vmatpush1.msra.mxu0 %v509
    %2318 = vmatprep.subr.mxu0 %v514
    %2319 = vmatpush1.msra.mxu0 %v513
    %2320 = vmatprep.subr.mxu0 %v518
    %2321 = vmatpush1.msra.mxu0 %v517
    %2322 = vmatprep.subr.mxu0 %v522
    %2323 = vmatpush1.msra.mxu0 %v521
    %2324 = vmatprep.subr.mxu0 %v526
    %2325 = vmatpush1.msra.mxu0 %v525
    %2326 = vmatprep.subr.mxu0 %v530
    %2327 = vmatpush1.msra.mxu0 %v529
    %2328 = vmatprep.subr.mxu0 %v534
    %2329 = vmatpush1.msra.mxu0 %v533
    %2330 = vmatprep.subr.mxu0 %v538
    %2331 = vmatpush1.msra.mxu0 %v537
    %2332 = vmatprep.subr.mxu0 %v542
    %2333 = vmatpush1.msra.mxu0 %v541
    %2334 = vmatprep.subr.mxu0 %v546
    %2335 = vmatpush1.msra.mxu0 %v545
    %2336 = vmatprep.subr.mxu0 0.0
    %2337 = vmatpush1.msra.mxu0 0.0
    %2338 = vmatprep.subr.mxu0 0.0
    %2339 = vmatpush1.msra.mxu0 0.0
    %2340 = vmatprep.subr.mxu0 0.0
    %2341 = vmatpush1.msra.mxu0 0.0
    %2342 = vmatprep.subr.mxu0 0.0
    %2343 = vmatpush1.msra.mxu0 0.0
    %2344 = vmatprep.subr.mxu0 0.0
    %2345 = vmatpush1.msra.mxu0 0.0
    %2346 = vmatprep.subr.mxu0 0.0
    %2347 = vmatpush1.msra.mxu0 0.0
    %2348 = vmatprep.subr.mxu0 0.0
    %2349 = vmatpush1.msra.mxu0 0.0
    %2350 = vmatprep.subr.mxu0 0.0
    %2351 = vmatpush1.msra.mxu0 0.0
    %2352 = vmatprep.subr.mxu0 0.0
    %2353 = vmatpush1.msra.mxu0 0.0
    %2354 = vmatprep.subr.mxu0 0.0
    %2355 = vmatpush1.msra.mxu0 0.0
    %2356 = vmatprep.subr.mxu0 0.0
    %2357 = vmatpush1.msra.mxu0 0.0
    %2358 = vmatprep.subr.mxu0 0.0
    %2359 = vmatpush1.msra.mxu0 0.0
    %2360 = vmatprep.subr.mxu0 0.0
    %2361 = vmatpush1.msra.mxu0 0.0
    %2362 = vmatprep.subr.mxu0 0.0
    %2363 = vmatpush1.msra.mxu0 0.0
    %2364 = vmatprep.subr.mxu0 0.0
    %2365 = vmatpush1.msra.mxu0 0.0
    %2366 = vmatprep.subr.mxu0 0.0
    %2367 = vmatpush1.msra.mxu0 0.0
    %2368 = vmatprep.mubr.f32.mxu0 0.0
    %2369 = vmatmul.mubr.f32.gmra.mrb[0].mxu0 %v1992
    %v2370 = vpop.f32.mrb[0].mxu0
    %v2371 = vadd.f32 0.0, %v2370
    %v2372 = vpop.f32.mrb[0].mxu0
    %v2373 = vadd.f32 0.0, %v2372
    %2374 = vdwg.mxu0
    %2375 = vmatprep.subr.mxu0 %v488
    %2376 = vmatpush1.msra.mxu0 %v487
    %2377 = vmatprep.subr.mxu0 %v492
    %2378 = vmatpush1.msra.mxu0 %v491
    %2379 = vmatprep.subr.mxu0 %v496
    %2380 = vmatpush1.msra.mxu0 %v495
    %2381 = vmatprep.subr.mxu0 %v500
    %2382 = vmatpush1.msra.mxu0 %v499
    %2383 = vmatprep.subr.mxu0 %v504
    %2384 = vmatpush1.msra.mxu0 %v503
    %2385 = vmatprep.subr.mxu0 %v508
    %2386 = vmatpush1.msra.mxu0 %v507
    %2387 = vmatprep.subr.mxu0 %v512
    %2388 = vmatpush1.msra.mxu0 %v511
    %2389 = vmatprep.subr.mxu0 %v516
    %2390 = vmatpush1.msra.mxu0 %v515
    %2391 = vmatprep.subr.mxu0 %v520
    %2392 = vmatpush1.msra.mxu0 %v519
    %2393 = vmatprep.subr.mxu0 %v524
    %2394 = vmatpush1.msra.mxu0 %v523
    %2395 = vmatprep.subr.mxu0 %v528
    %2396 = vmatpush1.msra.mxu0 %v527
    %2397 = vmatprep.subr.mxu0 %v532
    %2398 = vmatpush1.msra.mxu0 %v531
    %2399 = vmatprep.subr.mxu0 %v536
    %2400 = vmatpush1.msra.mxu0 %v535
    %2401 = vmatprep.subr.mxu0 %v540
    %2402 = vmatpush1.msra.mxu0 %v539
    %2403 = vmatprep.subr.mxu0 %v544
    %2404 = vmatpush1.msra.mxu0 %v543
    %2405 = vmatprep.subr.mxu0 %v548
    %2406 = vmatpush1.msra.mxu0 %v547
    %2407 = vmatprep.subr.mxu0 0.0
    %2408 = vmatpush1.msra.mxu0 0.0
    %2409 = vmatprep.subr.mxu0 0.0
    %2410 = vmatpush1.msra.mxu0 0.0
    %2411 = vmatprep.subr.mxu0 0.0
    %2412 = vmatpush1.msra.mxu0 0.0
    %2413 = vmatprep.subr.mxu0 0.0
    %2414 = vmatpush1.msra.mxu0 0.0
    %2415 = vmatprep.subr.mxu0 0.0
    %2416 = vmatpush1.msra.mxu0 0.0
    %2417 = vmatprep.subr.mxu0 0.0
    %2418 = vmatpush1.msra.mxu0 0.0
    %2419 = vmatprep.subr.mxu0 0.0
    %2420 = vmatpush1.msra.mxu0 0.0
    %2421 = vmatprep.subr.mxu0 0.0
    %2422 = vmatpush1.msra.mxu0 0.0
    %2423 = vmatprep.subr.mxu0 0.0
    %2424 = vmatpush1.msra.mxu0 0.0
    %2425 = vmatprep.subr.mxu0 0.0
    %2426 = vmatpush1.msra.mxu0 0.0
    %2427 = vmatprep.subr.mxu0 0.0
    %2428 = vmatpush1.msra.mxu0 0.0
    %2429 = vmatprep.subr.mxu0 0.0
    %2430 = vmatpush1.msra.mxu0 0.0
    %2431 = vmatprep.subr.mxu0 0.0
    %2432 = vmatpush1.msra.mxu0 0.0
    %2433 = vmatprep.subr.mxu0 0.0
    %2434 = vmatpush1.msra.mxu0 0.0
    %2435 = vmatprep.subr.mxu0 0.0
    %2436 = vmatpush1.msra.mxu0 0.0
    %2437 = vmatprep.subr.mxu0 0.0
    %2438 = vmatpush1.msra.mxu0 0.0
    %2439 = vmatprep.mubr.f32.mxu0 0.0
    %2440 = vmatmul.mubr.f32.gmra.mrb[0].mxu0 %v1992
    %v2441 = vpop.f32.mrb[0].mxu0
    %v2442 = vadd.f32 0.0, %v2441
    %v2443 = vpop.f32.mrb[0].mxu0
    %v2444 = vadd.f32 0.0, %v2443
    %2445 = vdwg.mxu0
    %v2446 = vadd.f32 %v2300, %v2371
    %v2447 = vadd.f32 %v2301, %v2373
    %v2448 = vadd.f32 %v2302, %v2442
    %v2449 = vadd.f32 %v2303, %v2444
    %v2450 = vmul.f32 %v2446, 0.5
    %v2451 = vtanh.pop %v2450
    %v2452 = vmul.f32 %v2451, 0.5
    %v2453 = vadd.f32 %v2452, 0.5
    %v2454 = vmul.f32 %v2447, 0.5
    %v2455 = vtanh.pop %v2454
    %v2456 = vmul.f32 %v2455, 0.5
    %v2457 = vadd.f32 %v2456, 0.5
    %v2458 = vtanh.pop %v2448
    %v2459 = vmul.f32 %v2449, 0.5
    %v2460 = vtanh.pop %v2459
    %v2461 = vmul.f32 %v2460, 0.5
    %v2462 = vadd.f32 %v2461, 0.5
    %v2463 = vmul.f32 %v2457, %v1990
    %v2464 = vmul.f32 %v2453, %v2458
    %v2465 = vadd.f32 %v2463, %v2464
    %v2466 = vtanh.pop %v2465
    %v2467 = vmul.f32 %v2462, %v2466
    %2468 = vmatprep.subr.mxu0 %v551
    %2469 = vmatpush1.msra.mxu0 %v550
    %2470 = vmatprep.subr.mxu0 %v555
    %2471 = vmatpush1.msra.mxu0 %v554
    %2472 = vmatprep.subr.mxu0 %v559
    %2473 = vmatpush1.msra.mxu0 %v558
    %2474 = vmatprep.subr.mxu0 %v563
    %2475 = vmatpush1.msra.mxu0 %v562
    %2476 = vmatprep.subr.mxu0 %v567
    %2477 = vmatpush1.msra.mxu0 %v566
    %2478 = vmatprep.subr.mxu0 %v571
    %2479 = vmatpush1.msra.mxu0 %v570
    %2480 = vmatprep.subr.mxu0 %v575
    %2481 = vmatpush1.msra.mxu0 %v574
    %2482 = vmatprep.subr.mxu0 %v579
    %2483 = vmatpush1.msra.mxu0 %v578
    %2484 = vmatprep.subr.mxu0 %v583
    %2485 = vmatpush1.msra.mxu0 %v582
    %2486 = vmatprep.subr.mxu0 %v587
    %2487 = vmatpush1.msra.mxu0 %v586
    %2488 = vmatprep.subr.mxu0 %v591
    %2489 = vmatpush1.msra.mxu0 %v590
    %2490 = vmatprep.subr.mxu0 %v595
    %2491 = vmatpush1.msra.mxu0 %v594
    %2492 = vmatprep.subr.mxu0 %v599
    %2493 = vmatpush1.msra.mxu0 %v598
    %2494 = vmatprep.subr.mxu0 %v603
    %2495 = vmatpush1.msra.mxu0 %v602
    %2496 = vmatprep.subr.mxu0 %v607
    %2497 = vmatpush1.msra.mxu0 %v606
    %2498 = vmatprep.subr.mxu0 %v611
    %2499 = vmatpush1.msra.mxu0 %v610
    %2500 = vmatprep.subr.mxu0 0.0
    %2501 = vmatpush1.msra.mxu0 0.0
    %2502 = vmatprep.subr.mxu0 0.0
    %2503 = vmatpush1.msra.mxu0 0.0
    %2504 = vmatprep.subr.mxu0 0.0
    %2505 = vmatpush1.msra.mxu0 0.0
    %2506 = vmatprep.subr.mxu0 0.0
    %2507 = vmatpush1.msra.mxu0 0.0
    %2508 = vmatprep.subr.mxu0 0.0
    %2509 = vmatpush1.msra.mxu0 0.0
    %2510 = vmatprep.subr.mxu0 0.0
    %2511 = vmatpush1.msra.mxu0 0.0
    %2512 = vmatprep.subr.mxu0 0.0
    %2513 = vmatpush1.msra.mxu0 0.0
    %2514 = vmatprep.subr.mxu0 0.0
    %2515 = vmatpush1.msra.mxu0 0.0
    %2516 = vmatprep.subr.mxu0 0.0
    %2517 = vmatpush1.msra.mxu0 0.0
    %2518 = vmatprep.subr.mxu0 0.0
    %2519 = vmatpush1.msra.mxu0 0.0
    %2520 = vmatprep.subr.mxu0 0.0
    %2521 = vmatpush1.msra.mxu0 0.0
    %2522 = vmatprep.subr.mxu0 0.0
    %2523 = vmatpush1.msra.mxu0 0.0
    %2524 = vmatprep.subr.mxu0 0.0
    %2525 = vmatpush1.msra.mxu0 0.0
    %2526 = vmatprep.subr.mxu0 0.0
    %2527 = vmatpush1.msra.mxu0 0.0
    %2528 = vmatprep.subr.mxu0 0.0
    %2529 = vmatpush1.msra.mxu0 0.0
    %2530 = vmatprep.subr.mxu0 0.0
    %2531 = vmatpush1.msra.mxu0 0.0
    %2532 = vmatprep.mubr.f32.mxu0 0.0
    %2533 = vmatmul.mubr.f32.gmra.mrb[0].mxu0 %v2298
    %v2534 = vpop.f32.mrb[0].mxu0
    %v2535 = vadd.f32 0.0, %v2534
    %v2536 = vpop.f32.mrb[0].mxu0
    %v2537 = vadd.f32 0.0, %v2536
    %2538 = vdwg.mxu0
    %2539 = vmatprep.subr.mxu0 %v553
    %2540 = vmatpush1.msra.mxu0 %v552
    %2541 = vmatprep.subr.mxu0 %v557
    %2542 = vmatpush1.msra.mxu0 %v556
    %2543 = vmatprep.subr.mxu0 %v561
    %2544 = vmatpush1.msra.mxu0 %v560
    %2545 = vmatprep.subr.mxu0 %v565
    %2546 = vmatpush1.msra.mxu0 %v564
    %2547 = vmatprep.subr.mxu0 %v569
    %2548 = vmatpush1.msra.mxu0 %v568
    %2549 = vmatprep.subr.mxu0 %v573
    %2550 = vmatpush1.msra.mxu0 %v572
    %2551 = vmatprep.subr.mxu0 %v577
    %2552 = vmatpush1.msra.mxu0 %v576
    %2553 = vmatprep.subr.mxu0 %v581
    %2554 = vmatpush1.msra.mxu0 %v580
    %2555 = vmatprep.subr.mxu0 %v585
    %2556 = vmatpush1.msra.mxu0 %v584
    %2557 = vmatprep.subr.mxu0 %v589
    %2558 = vmatpush1.msra.mxu0 %v588
    %2559 = vmatprep.subr.mxu0 %v593
    %2560 = vmatpush1.msra.mxu0 %v592
    %2561 = vmatprep.subr.mxu0 %v597
    %2562 = vmatpush1.msra.mxu0 %v596
    %2563 = vmatprep.subr.mxu0 %v601
    %2564 = vmatpush1.msra.mxu0 %v600
    %2565 = vmatprep.subr.mxu0 %v605
    %2566 = vmatpush1.msra.mxu0 %v604
    %2567 = vmatprep.subr.mxu0 %v609
    %2568 = vmatpush1.msra.mxu0 %v608
    %2569 = vmatprep.subr.mxu0 %v613
    %2570 = vmatpush1.msra.mxu0 %v612
    %2571 = vmatprep.subr.mxu0 0.0
    %2572 = vmatpush1.msra.mxu0 0.0
    %2573 = vmatprep.subr.mxu0 0.0
    %2574 = vmatpush1.msra.mxu0 0.0
    %2575 = vmatprep.subr.mxu0 0.0
    %2576 = vmatpush1.msra.mxu0 0.0
    %2577 = vmatprep.subr.mxu0 0.0
    %2578 = vmatpush1.msra.mxu0 0.0
    %2579 = vmatprep.subr.mxu0 0.0
    %2580 = vmatpush1.msra.mxu0 0.0
    %2581 = vmatprep.subr.mxu0 0.0
    %2582 = vmatpush1.msra.mxu0 0.0
    %2583 = vmatprep.subr.mxu0 0.0
    %2584 = vmatpush1.msra.mxu0 0.0
    %2585 = vmatprep.subr.mxu0 0.0
    %2586 = vmatpush1.msra.mxu0 0.0
    %2587 = vmatprep.subr.mxu0 0.0
    %2588 = vmatpush1.msra.mxu0 0.0
    %2589 = vmatprep.subr.mxu0 0.0
    %2590 = vmatpush1.msra.mxu0 0.0
    %2591 = vmatprep.subr.mxu0 0.0
    %2592 = vmatpush1.msra.mxu0 0.0
    %2593 = vmatprep.subr.mxu0 0.0
    %2594 = vmatpush1.msra.mxu0 0.0
    %2595 = vmatprep.subr.mxu0 0.0
    %2596 = vmatpush1.msra.mxu0 0.0
    %2597 = vmatprep.subr.mxu0 0.0
    %2598 = vmatpush1.msra.mxu0 0.0
    %2599 = vmatprep.subr.mxu0 0.0
    %2600 = vmatpush1.msra.mxu0 0.0
    %2601 = vmatprep.subr.mxu0 0.0
    %2602 = vmatpush1.msra.mxu0 0.0
    %2603 = vmatprep.mubr.f32.mxu0 0.0
    %2604 = vmatmul.mubr.f32.gmra.mrb[0].mxu0 %v2298
    %v2605 = vpop.f32.mrb[0].mxu0
    %v2606 = vadd.f32 0.0, %v2605
    %v2607 = vpop.f32.mrb[0].mxu0
    %v2608 = vadd.f32 0.0, %v2607
    %2609 = vdwg.mxu0
    %2610 = vmatprep.subr.mxu0 %v615
    %2611 = vmatpush1.msra.mxu0 %v614
    %2612 = vmatprep.subr.mxu0 %v619
    %2613 = vmatpush1.msra.mxu0 %v618
    %2614 = vmatprep.subr.mxu0 %v623
    %2615 = vmatpush1.msra.mxu0 %v622
    %2616 = vmatprep.subr.mxu0 %v627
    %2617 = vmatpush1.msra.mxu0 %v626
    %2618 = vmatprep.subr.mxu0 %v631
    %2619 = vmatpush1.msra.mxu0 %v630
    %2620 = vmatprep.subr.mxu0 %v635
    %2621 = vmatpush1.msra.mxu0 %v634
    %2622 = vmatprep.subr.mxu0 %v639
    %2623 = vmatpush1.msra.mxu0 %v638
    %2624 = vmatprep.subr.mxu0 %v643
    %2625 = vmatpush1.msra.mxu0 %v642
    %2626 = vmatprep.subr.mxu0 %v647
    %2627 = vmatpush1.msra.mxu0 %v646
    %2628 = vmatprep.subr.mxu0 %v651
    %2629 = vmatpush1.msra.mxu0 %v650
    %2630 = vmatprep.subr.mxu0 %v655
    %2631 = vmatpush1.msra.mxu0 %v654
    %2632 = vmatprep.subr.mxu0 %v659
    %2633 = vmatpush1.msra.mxu0 %v658
    %2634 = vmatprep.subr.mxu0 %v663
    %2635 = vmatpush1.msra.mxu0 %v662
    %2636 = vmatprep.subr.mxu0 %v667
    %2637 = vmatpush1.msra.mxu0 %v666
    %2638 = vmatprep.subr.mxu0 %v671
    %2639 = vmatpush1.msra.mxu0 %v670
    %2640 = vmatprep.subr.mxu0 %v675
    %2641 = vmatpush1.msra.mxu0 %v674
    %2642 = vmatprep.subr.mxu0 0.0
    %2643 = vmatpush1.msra.mxu0 0.0
    %2644 = vmatprep.subr.mxu0 0.0
    %2645 = vmatpush1.msra.mxu0 0.0
    %2646 = vmatprep.subr.mxu0 0.0
    %2647 = vmatpush1.msra.mxu0 0.0
    %2648 = vmatprep.subr.mxu0 0.0
    %2649 = vmatpush1.msra.mxu0 0.0
    %2650 = vmatprep.subr.mxu0 0.0
    %2651 = vmatpush1.msra.mxu0 0.0
    %2652 = vmatprep.subr.mxu0 0.0
    %2653 = vmatpush1.msra.mxu0 0.0
    %2654 = vmatprep.subr.mxu0 0.0
    %2655 = vmatpush1.msra.mxu0 0.0
    %2656 = vmatprep.subr.mxu0 0.0
    %2657 = vmatpush1.msra.mxu0 0.0
    %2658 = vmatprep.subr.mxu0 0.0
    %2659 = vmatpush1.msra.mxu0 0.0
    %2660 = vmatprep.subr.mxu0 0.0
    %2661 = vmatpush1.msra.mxu0 0.0
    %2662 = vmatprep.subr.mxu0 0.0
    %2663 = vmatpush1.msra.mxu0 0.0
    %2664 = vmatprep.subr.mxu0 0.0
    %2665 = vmatpush1.msra.mxu0 0.0
    %2666 = vmatprep.subr.mxu0 0.0
    %2667 = vmatpush1.msra.mxu0 0.0
    %2668 = vmatprep.subr.mxu0 0.0
    %2669 = vmatpush1.msra.mxu0 0.0
    %2670 = vmatprep.subr.mxu0 0.0
    %2671 = vmatpush1.msra.mxu0 0.0
    %2672 = vmatprep.subr.mxu0 0.0
    %2673 = vmatpush1.msra.mxu0 0.0
    %2674 = vmatprep.mubr.f32.mxu0 0.0
    %2675 = vmatmul.mubr.f32.gmra.mrb[0].mxu0 %v1992
    %v2676 = vpop.f32.mrb[0].mxu0
    %v2677 = vadd.f32 %v2535, %v2676
    %v2678 = vpop.f32.mrb[0].mxu0
    %v2679 = vadd.f32 %v2537, %v2678
    %2680 = vdwg.mxu0
    %2681 = vmatprep.subr.mxu0 %v617
    %2682 = vmatpush1.msra.mxu0 %v616
    %2683 = vmatprep.subr.mxu0 %v621
    %2684 = vmatpush1.msra.mxu0 %v620
    %2685 = vmatprep.subr.mxu0 %v625
    %2686 = vmatpush1.msra.mxu0 %v624
    %2687 = vmatprep.subr.mxu0 %v629
    %2688 = vmatpush1.msra.mxu0 %v628
    %2689 = vmatprep.subr.mxu0 %v633
    %2690 = vmatpush1.msra.mxu0 %v632
    %2691 = vmatprep.subr.mxu0 %v637
    %2692 = vmatpush1.msra.mxu0 %v636
    %2693 = vmatprep.subr.mxu0 %v641
    %2694 = vmatpush1.msra.mxu0 %v640
    %2695 = vmatprep.subr.mxu0 %v645
    %2696 = vmatpush1.msra.mxu0 %v644
    %2697 = vmatprep.subr.mxu0 %v649
    %2698 = vmatpush1.msra.mxu0 %v648
    %2699 = vmatprep.subr.mxu0 %v653
    %2700 = vmatpush1.msra.mxu0 %v652
    %2701 = vmatprep.subr.mxu0 %v657
    %2702 = vmatpush1.msra.mxu0 %v656
    %2703 = vmatprep.subr.mxu0 %v661
    %2704 = vmatpush1.msra.mxu0 %v660
    %2705 = vmatprep.subr.mxu0 %v665
    %2706 = vmatpush1.msra.mxu0 %v664
    %2707 = vmatprep.subr.mxu0 %v669
    %2708 = vmatpush1.msra.mxu0 %v668
    %2709 = vmatprep.subr.mxu0 %v673
    %2710 = vmatpush1.msra.mxu0 %v672
    %2711 = vmatprep.subr.mxu0 %v677
    %2712 = vmatpush1.msra.mxu0 %v676
    %2713 = vmatprep.subr.mxu0 0.0
    %2714 = vmatpush1.msra.mxu0 0.0
    %2715 = vmatprep.subr.mxu0 0.0
    %2716 = vmatpush1.msra.mxu0 0.0
    %2717 = vmatprep.subr.mxu0 0.0
    %2718 = vmatpush1.msra.mxu0 0.0
    %2719 = vmatprep.subr.mxu0 0.0
    %2720 = vmatpush1.msra.mxu0 0.0
    %2721 = vmatprep.subr.mxu0 0.0
    %2722 = vmatpush1.msra.mxu0 0.0
    %2723 = vmatprep.subr.mxu0 0.0
    %2724 = vmatpush1.msra.mxu0 0.0
    %2725 = vmatprep.subr.mxu0 0.0
    %2726 = vmatpush1.msra.mxu0 0.0
    %2727 = vmatprep.subr.mxu0 0.0
    %2728 = vmatpush1.msra.mxu0 0.0
    %2729 = vmatprep.subr.mxu0 0.0
    %2730 = vmatpush1.msra.mxu0 0.0
    %2731 = vmatprep.subr.mxu0 0.0
    %2732 = vmatpush1.msra.mxu0 0.0
    %2733 = vmatprep.subr.mxu0 0.0
    %2734 = vmatpush1.msra.mxu0 0.0
    %2735 = vmatprep.subr.mxu0 0.0
    %2736 = vmatpush1.msra.mxu0 0.0
    %2737 = vmatprep.subr.mxu0 0.0
    %2738 = vmatpush1.msra.mxu0 0.0
    %2739 = vmatprep.subr.mxu0 0.0
    %2740 = vmatpush1.msra.mxu0 0.0
    %2741 = vmatprep.subr.mxu0 0.0
    %2742 = vmatpush1.msra.mxu0 0.0
    %2743 = vmatprep.subr.mxu0 0.0
    %2744 = vmatpush1.msra.mxu0 0.0
    %2745 = vmatprep.mubr.f32.mxu0 0.0
    %2746 = vmatmul.mubr.f32.gmra.mrb[0].mxu0 %v1992
    %v2747 = vpop.f32.mrb[0].mxu0
    %v2748 = vadd.f32 %v2606, %v2747
    %v2749 = vpop.f32.mrb[0].mxu0
    %v2750 = vadd.f32 %v2608, %v2749
    %2751 = vdwg.mxu0
    %v2752 = vadd.f32 %v2677, %v1310
    %v2753 = vadd.f32 %v2679, %v1314
    %v2754 = vadd.f32 %v2748, %v1318
    %v2755 = vadd.f32 %v2750, %v1322
    %v2756 = vmul.f32 %v2752, 0.5
    %v2757 = vtanh.pop %v2756
    %v2758 = vmul.f32 %v2757, 0.5
    %v2759 = vadd.f32 %v2758, 0.5
    %v2760 = vmul.f32 %v2753, 0.5
    %v2761 = vtanh.pop %v2760
    %v2762 = vmul.f32 %v2761, 0.5
    %v2763 = vadd.f32 %v2762, 0.5
    %v2764 = vtanh.pop %v2754
    %v2765 = vmul.f32 %v2755, 0.5
    %v2766 = vtanh.pop %v2765
    %v2767 = vmul.f32 %v2766, 0.5
    %v2768 = vadd.f32 %v2767, 0.5
    %v2769 = vmul.f32 %v2763, %v2296
    %v2770 = vmul.f32 %v2759, %v2764
    %v2771 = vadd.f32 %v2769, %v2770
    %v2772 = vtanh.pop %v2771
    %v2773 = vmul.f32 %v2768, %v2772
    %2774 = vst [vmem:[#allocation14 + $0x18] sm:$0xff] %v2773
    %v2775 = vld [vmem:[#allocation2 + $0xa0] sm:$0xff]
    %v2776 = vld [vmem:[#allocation2 + $0xa8] sm:$0xff]
    %v2777 = vld [vmem:[#allocation2 + $0xb0] sm:$0xff]
    %v2778 = vld [vmem:[#allocation2 + $0xb8] sm:$0xff]
    %2779 = vmatprep.subr.mxu0 %v486
    %2780 = vmatpush1.msra.mxu0 %v485
    %2781 = vmatprep.subr.mxu0 %v490
    %2782 = vmatpush1.msra.mxu0 %v489
    %2783 = vmatprep.subr.mxu0 %v494
    %2784 = vmatpush1.msra.mxu0 %v493
    %2785 = vmatprep.subr.mxu0 %v498
    %2786 = vmatpush1.msra.mxu0 %v497
    %2787 = vmatprep.subr.mxu0 %v502
    %2788 = vmatpush1.msra.mxu0 %v501
    %2789 = vmatprep.subr.mxu0 %v506
    %2790 = vmatpush1.msra.mxu0 %v505
    %2791 = vmatprep.subr.mxu0 %v510
    %2792 = vmatpush1.msra.mxu0 %v509
    %2793 = vmatprep.subr.mxu0 %v514
    %2794 = vmatpush1.msra.mxu0 %v513
    %2795 = vmatprep.subr.mxu0 %v518
    %2796 = vmatpush1.msra.mxu0 %v517
    %2797 = vmatprep.subr.mxu0 %v522
    %2798 = vmatpush1.msra.mxu0 %v521
    %2799 = vmatprep.subr.mxu0 %v526
    %2800 = vmatpush1.msra.mxu0 %v525
    %2801 = vmatprep.subr.mxu0 %v530
    %2802 = vmatpush1.msra.mxu0 %v529
    %2803 = vmatprep.subr.mxu0 %v534
    %2804 = vmatpush1.msra.mxu0 %v533
    %2805 = vmatprep.subr.mxu0 %v538
    %2806 = vmatpush1.msra.mxu0 %v537
    %2807 = vmatprep.subr.mxu0 %v542
    %2808 = vmatpush1.msra.mxu0 %v541
    %2809 = vmatprep.subr.mxu0 %v546
    %2810 = vmatpush1.msra.mxu0 %v545
    %2811 = vmatprep.subr.mxu0 0.0
    %2812 = vmatpush1.msra.mxu0 0.0
    %2813 = vmatprep.subr.mxu0 0.0
    %2814 = vmatpush1.msra.mxu0 0.0
    %2815 = vmatprep.subr.mxu0 0.0
    %2816 = vmatpush1.msra.mxu0 0.0
    %2817 = vmatprep.subr.mxu0 0.0
    %2818 = vmatpush1.msra.mxu0 0.0
    %2819 = vmatprep.subr.mxu0 0.0
    %2820 = vmatpush1.msra.mxu0 0.0
    %2821 = vmatprep.subr.mxu0 0.0
    %2822 = vmatpush1.msra.mxu0 0.0
    %2823 = vmatprep.subr.mxu0 0.0
    %2824 = vmatpush1.msra.mxu0 0.0
    %2825 = vmatprep.subr.mxu0 0.0
    %2826 = vmatpush1.msra.mxu0 0.0
    %2827 = vmatprep.subr.mxu0 0.0
    %2828 = vmatpush1.msra.mxu0 0.0
    %2829 = vmatprep.subr.mxu0 0.0
    %2830 = vmatpush1.msra.mxu0 0.0
    %2831 = vmatprep.subr.mxu0 0.0
    %2832 = vmatpush1.msra.mxu0 0.0
    %2833 = vmatprep.subr.mxu0 0.0
    %2834 = vmatpush1.msra.mxu0 0.0
    %2835 = vmatprep.subr.mxu0 0.0
    %2836 = vmatpush1.msra.mxu0 0.0
    %2837 = vmatprep.subr.mxu0 0.0
    %2838 = vmatpush1.msra.mxu0 0.0
    %2839 = vmatprep.subr.mxu0 0.0
    %2840 = vmatpush1.msra.mxu0 0.0
    %2841 = vmatprep.subr.mxu0 0.0
    %2842 = vmatpush1.msra.mxu0 0.0
    %2843 = vmatprep.mubr.f32.mxu0 0.0
    %2844 = vmatmul.mubr.f32.gmra.mrb[0].mxu0 %v2467
    %v2845 = vpop.f32.mrb[0].mxu0
    %v2846 = vadd.f32 0.0, %v2845
    %v2847 = vpop.f32.mrb[0].mxu0
    %v2848 = vadd.f32 0.0, %v2847
    %2849 = vdwg.mxu0
    %2850 = vmatprep.subr.mxu0 %v488
    %2851 = vmatpush1.msra.mxu0 %v487
    %2852 = vmatprep.subr.mxu0 %v492
    %2853 = vmatpush1.msra.mxu0 %v491
    %2854 = vmatprep.subr.mxu0 %v496
    %2855 = vmatpush1.msra.mxu0 %v495
    %2856 = vmatprep.subr.mxu0 %v500
    %2857 = vmatpush1.msra.mxu0 %v499
    %2858 = vmatprep.subr.mxu0 %v504
    %2859 = vmatpush1.msra.mxu0 %v503
    %2860 = vmatprep.subr.mxu0 %v508
    %2861 = vmatpush1.msra.mxu0 %v507
    %2862 = vmatprep.subr.mxu0 %v512
    %2863 = vmatpush1.msra.mxu0 %v511
    %2864 = vmatprep.subr.mxu0 %v516
    %2865 = vmatpush1.msra.mxu0 %v515
    %2866 = vmatprep.subr.mxu0 %v520
    %2867 = vmatpush1.msra.mxu0 %v519
    %2868 = vmatprep.subr.mxu0 %v524
    %2869 = vmatpush1.msra.mxu0 %v523
    %2870 = vmatprep.subr.mxu0 %v528
    %2871 = vmatpush1.msra.mxu0 %v527
    %2872 = vmatprep.subr.mxu0 %v532
    %2873 = vmatpush1.msra.mxu0 %v531
    %2874 = vmatprep.subr.mxu0 %v536
    %2875 = vmatpush1.msra.mxu0 %v535
    %2876 = vmatprep.subr.mxu0 %v540
    %2877 = vmatpush1.msra.mxu0 %v539
    %2878 = vmatprep.subr.mxu0 %v544
    %2879 = vmatpush1.msra.mxu0 %v543
    %2880 = vmatprep.subr.mxu0 %v548
    %2881 = vmatpush1.msra.mxu0 %v547
    %2882 = vmatprep.subr.mxu0 0.0
    %2883 = vmatpush1.msra.mxu0 0.0
    %2884 = vmatprep.subr.mxu0 0.0
    %2885 = vmatpush1.msra.mxu0 0.0
    %2886 = vmatprep.subr.mxu0 0.0
    %2887 = vmatpush1.msra.mxu0 0.0
    %2888 = vmatprep.subr.mxu0 0.0
    %2889 = vmatpush1.msra.mxu0 0.0
    %2890 = vmatprep.subr.mxu0 0.0
    %2891 = vmatpush1.msra.mxu0 0.0
    %2892 = vmatprep.subr.mxu0 0.0
    %2893 = vmatpush1.msra.mxu0 0.0
    %2894 = vmatprep.subr.mxu0 0.0
    %2895 = vmatpush1.msra.mxu0 0.0
    %2896 = vmatprep.subr.mxu0 0.0
    %2897 = vmatpush1.msra.mxu0 0.0
    %2898 = vmatprep.subr.mxu0 0.0
    %2899 = vmatpush1.msra.mxu0 0.0
    %2900 = vmatprep.subr.mxu0 0.0
    %2901 = vmatpush1.msra.mxu0 0.0
    %2902 = vmatprep.subr.mxu0 0.0
    %2903 = vmatpush1.msra.mxu0 0.0
    %2904 = vmatprep.subr.mxu0 0.0
    %2905 = vmatpush1.msra.mxu0 0.0
    %2906 = vmatprep.subr.mxu0 0.0
    %2907 = vmatpush1.msra.mxu0 0.0
    %2908 = vmatprep.subr.mxu0 0.0
    %2909 = vmatpush1.msra.mxu0 0.0
    %2910 = vmatprep.subr.mxu0 0.0
    %2911 = vmatpush1.msra.mxu0 0.0
    %2912 = vmatprep.subr.mxu0 0.0
    %2913 = vmatpush1.msra.mxu0 0.0
    %2914 = vmatprep.mubr.f32.mxu0 0.0
    %2915 = vmatmul.mubr.f32.gmra.mrb[0].mxu0 %v2467
    %v2916 = vpop.f32.mrb[0].mxu0
    %v2917 = vadd.f32 0.0, %v2916
    %v2918 = vpop.f32.mrb[0].mxu0
    %v2919 = vadd.f32 0.0, %v2918
    %2920 = vdwg.mxu0
    %v2921 = vadd.f32 %v2775, %v2846
    %v2922 = vadd.f32 %v2776, %v2848
    %v2923 = vadd.f32 %v2777, %v2917
    %v2924 = vadd.f32 %v2778, %v2919
    %v2925 = vmul.f32 %v2921, 0.5
    %v2926 = vtanh.pop %v2925
    %v2927 = vmul.f32 %v2926, 0.5
    %v2928 = vadd.f32 %v2927, 0.5
    %v2929 = vmul.f32 %v2922, 0.5
    %v2930 = vtanh.pop %v2929
    %v2931 = vmul.f32 %v2930, 0.5
    %v2932 = vadd.f32 %v2931, 0.5
    %v2933 = vtanh.pop %v2923
    %v2934 = vmul.f32 %v2924, 0.5
    %v2935 = vtanh.pop %v2934
    %v2936 = vmul.f32 %v2935, 0.5
    %v2937 = vadd.f32 %v2936, 0.5
    %v2938 = vmul.f32 %v2932, %v2465
    %v2939 = vmul.f32 %v2928, %v2933
    %v2940 = vadd.f32 %v2938, %v2939
    %v2941 = vtanh.pop %v2940
    %v2942 = vmul.f32 %v2937, %v2941
    %2943 = vmatprep.subr.mxu0 %v551
    %2944 = vmatpush1.msra.mxu0 %v550
    %2945 = vmatprep.subr.mxu0 %v555
    %2946 = vmatpush1.msra.mxu0 %v554
    %2947 = vmatprep.subr.mxu0 %v559
    %2948 = vmatpush1.msra.mxu0 %v558
    %2949 = vmatprep.subr.mxu0 %v563
    %2950 = vmatpush1.msra.mxu0 %v562
    %2951 = vmatprep.subr.mxu0 %v567
    %2952 = vmatpush1.msra.mxu0 %v566
    %2953 = vmatprep.subr.mxu0 %v571
    %2954 = vmatpush1.msra.mxu0 %v570
    %2955 = vmatprep.subr.mxu0 %v575
    %2956 = vmatpush1.msra.mxu0 %v574
    %2957 = vmatprep.subr.mxu0 %v579
    %2958 = vmatpush1.msra.mxu0 %v578
    %2959 = vmatprep.subr.mxu0 %v583
    %2960 = vmatpush1.msra.mxu0 %v582
    %2961 = vmatprep.subr.mxu0 %v587
    %2962 = vmatpush1.msra.mxu0 %v586
    %2963 = vmatprep.subr.mxu0 %v591
    %2964 = vmatpush1.msra.mxu0 %v590
    %2965 = vmatprep.subr.mxu0 %v595
    %2966 = vmatpush1.msra.mxu0 %v594
    %2967 = vmatprep.subr.mxu0 %v599
    %2968 = vmatpush1.msra.mxu0 %v598
    %2969 = vmatprep.subr.mxu0 %v603
    %2970 = vmatpush1.msra.mxu0 %v602
    %2971 = vmatprep.subr.mxu0 %v607
    %2972 = vmatpush1.msra.mxu0 %v606
    %2973 = vmatprep.subr.mxu0 %v611
    %2974 = vmatpush1.msra.mxu0 %v610
    %2975 = vmatprep.subr.mxu0 0.0
    %2976 = vmatpush1.msra.mxu0 0.0
    %2977 = vmatprep.subr.mxu0 0.0
    %2978 = vmatpush1.msra.mxu0 0.0
    %2979 = vmatprep.subr.mxu0 0.0
    %2980 = vmatpush1.msra.mxu0 0.0
    %2981 = vmatprep.subr.mxu0 0.0
    %2982 = vmatpush1.msra.mxu0 0.0
    %2983 = vmatprep.subr.mxu0 0.0
    %2984 = vmatpush1.msra.mxu0 0.0
    %2985 = vmatprep.subr.mxu0 0.0
    %2986 = vmatpush1.msra.mxu0 0.0
    %2987 = vmatprep.subr.mxu0 0.0
    %2988 = vmatpush1.msra.mxu0 0.0
    %2989 = vmatprep.subr.mxu0 0.0
    %2990 = vmatpush1.msra.mxu0 0.0
    %2991 = vmatprep.subr.mxu0 0.0
    %2992 = vmatpush1.msra.mxu0 0.0
    %2993 = vmatprep.subr.mxu0 0.0
    %2994 = vmatpush1.msra.mxu0 0.0
    %2995 = vmatprep.subr.mxu0 0.0
    %2996 = vmatpush1.msra.mxu0 0.0
    %2997 = vmatprep.subr.mxu0 0.0
    %2998 = vmatpush1.msra.mxu0 0.0
    %2999 = vmatprep.subr.mxu0 0.0
    %3000 = vmatpush1.msra.mxu0 0.0
    %3001 = vmatprep.subr.mxu0 0.0
    %3002 = vmatpush1.msra.mxu0 0.0
    %3003 = vmatprep.subr.mxu0 0.0
    %3004 = vmatpush1.msra.mxu0 0.0
    %3005 = vmatprep.subr.mxu0 0.0
    %3006 = vmatpush1.msra.mxu0 0.0
    %3007 = vmatprep.mubr.f32.mxu0 0.0
    %3008 = vmatmul.mubr.f32.gmra.mrb[0].mxu0 %v2773
    %v3009 = vpop.f32.mrb[0].mxu0
    %v3010 = vadd.f32 0.0, %v3009
    %v3011 = vpop.f32.mrb[0].mxu0
    %v3012 = vadd.f32 0.0, %v3011
    %3013 = vdwg.mxu0
    %3014 = vmatprep.subr.mxu0 %v553
    %3015 = vmatpush1.msra.mxu0 %v552
    %3016 = vmatprep.subr.mxu0 %v557
    %3017 = vmatpush1.msra.mxu0 %v556
    %3018 = vmatprep.subr.mxu0 %v561
    %3019 = vmatpush1.msra.mxu0 %v560
    %3020 = vmatprep.subr.mxu0 %v565
    %3021 = vmatpush1.msra.mxu0 %v564
    %3022 = vmatprep.subr.mxu0 %v569
    %3023 = vmatpush1.msra.mxu0 %v568
    %3024 = vmatprep.subr.mxu0 %v573
    %3025 = vmatpush1.msra.mxu0 %v572
    %3026 = vmatprep.subr.mxu0 %v577
    %3027 = vmatpush1.msra.mxu0 %v576
    %3028 = vmatprep.subr.mxu0 %v581
    %3029 = vmatpush1.msra.mxu0 %v580
    %3030 = vmatprep.subr.mxu0 %v585
    %3031 = vmatpush1.msra.mxu0 %v584
    %3032 = vmatprep.subr.mxu0 %v589
    %3033 = vmatpush1.msra.mxu0 %v588
    %3034 = vmatprep.subr.mxu0 %v593
    %3035 = vmatpush1.msra.mxu0 %v592
    %3036 = vmatprep.subr.mxu0 %v597
    %3037 = vmatpush1.msra.mxu0 %v596
    %3038 = vmatprep.subr.mxu0 %v601
    %3039 = vmatpush1.msra.mxu0 %v600
    %3040 = vmatprep.subr.mxu0 %v605
    %3041 = vmatpush1.msra.mxu0 %v604
    %3042 = vmatprep.subr.mxu0 %v609
    %3043 = vmatpush1.msra.mxu0 %v608
    %3044 = vmatprep.subr.mxu0 %v613
    %3045 = vmatpush1.msra.mxu0 %v612
    %3046 = vmatprep.subr.mxu0 0.0
    %3047 = vmatpush1.msra.mxu0 0.0
    %3048 = vmatprep.subr.mxu0 0.0
    %3049 = vmatpush1.msra.mxu0 0.0
    %3050 = vmatprep.subr.mxu0 0.0
    %3051 = vmatpush1.msra.mxu0 0.0
    %3052 = vmatprep.subr.mxu0 0.0
    %3053 = vmatpush1.msra.mxu0 0.0
    %3054 = vmatprep.subr.mxu0 0.0
    %3055 = vmatpush1.msra.mxu0 0.0
    %3056 = vmatprep.subr.mxu0 0.0
    %3057 = vmatpush1.msra.mxu0 0.0
    %3058 = vmatprep.subr.mxu0 0.0
    %3059 = vmatpush1.msra.mxu0 0.0
    %3060 = vmatprep.subr.mxu0 0.0
    %3061 = vmatpush1.msra.mxu0 0.0
    %3062 = vmatprep.subr.mxu0 0.0
    %3063 = vmatpush1.msra.mxu0 0.0
    %3064 = vmatprep.subr.mxu0 0.0
    %3065 = vmatpush1.msra.mxu0 0.0
    %3066 = vmatprep.subr.mxu0 0.0
    %3067 = vmatpush1.msra.mxu0 0.0
    %3068 = vmatprep.subr.mxu0 0.0
    %3069 = vmatpush1.msra.mxu0 0.0
    %3070 = vmatprep.subr.mxu0 0.0
    %3071 = vmatpush1.msra.mxu0 0.0
    %3072 = vmatprep.subr.mxu0 0.0
    %3073 = vmatpush1.msra.mxu0 0.0
    %3074 = vmatprep.subr.mxu0 0.0
    %3075 = vmatpush1.msra.mxu0 0.0
    %3076 = vmatprep.subr.mxu0 0.0
    %3077 = vmatpush1.msra.mxu0 0.0
    %3078 = vmatprep.mubr.f32.mxu0 0.0
    %3079 = vmatmul.mubr.f32.gmra.mrb[0].mxu0 %v2773
    %v3080 = vpop.f32.mrb[0].mxu0
    %v3081 = vadd.f32 0.0, %v3080
    %v3082 = vpop.f32.mrb[0].mxu0
    %v3083 = vadd.f32 0.0, %v3082
    %3084 = vdwg.mxu0
    %3085 = vmatprep.subr.mxu0 %v615
    %3086 = vmatpush1.msra.mxu0 %v614
    %3087 = vmatprep.subr.mxu0 %v619
    %3088 = vmatpush1.msra.mxu0 %v618
    %3089 = vmatprep.subr.mxu0 %v623
    %3090 = vmatpush1.msra.mxu0 %v622
    %3091 = vmatprep.subr.mxu0 %v627
    %3092 = vmatpush1.msra.mxu0 %v626
    %3093 = vmatprep.subr.mxu0 %v631
    %3094 = vmatpush1.msra.mxu0 %v630
    %3095 = vmatprep.subr.mxu0 %v635
    %3096 = vmatpush1.msra.mxu0 %v634
    %3097 = vmatprep.subr.mxu0 %v639
    %3098 = vmatpush1.msra.mxu0 %v638
    %3099 = vmatprep.subr.mxu0 %v643
    %3100 = vmatpush1.msra.mxu0 %v642
    %3101 = vmatprep.subr.mxu0 %v647
    %3102 = vmatpush1.msra.mxu0 %v646
    %3103 = vmatprep.subr.mxu0 %v651
    %3104 = vmatpush1.msra.mxu0 %v650
    %3105 = vmatprep.subr.mxu0 %v655
    %3106 = vmatpush1.msra.mxu0 %v654
    %3107 = vmatprep.subr.mxu0 %v659
    %3108 = vmatpush1.msra.mxu0 %v658
    %3109 = vmatprep.subr.mxu0 %v663
    %3110 = vmatpush1.msra.mxu0 %v662
    %3111 = vmatprep.subr.mxu0 %v667
    %3112 = vmatpush1.msra.mxu0 %v666
    %3113 = vmatprep.subr.mxu0 %v671
    %3114 = vmatpush1.msra.mxu0 %v670
    %3115 = vmatprep.subr.mxu0 %v675
    %3116 = vmatpush1.msra.mxu0 %v674
    %3117 = vmatprep.subr.mxu0 0.0
    %3118 = vmatpush1.msra.mxu0 0.0
    %3119 = vmatprep.subr.mxu0 0.0
    %3120 = vmatpush1.msra.mxu0 0.0
    %3121 = vmatprep.subr.mxu0 0.0
    %3122 = vmatpush1.msra.mxu0 0.0
    %3123 = vmatprep.subr.mxu0 0.0
    %3124 = vmatpush1.msra.mxu0 0.0
    %3125 = vmatprep.subr.mxu0 0.0
    %3126 = vmatpush1.msra.mxu0 0.0
    %3127 = vmatprep.subr.mxu0 0.0
    %3128 = vmatpush1.msra.mxu0 0.0
    %3129 = vmatprep.subr.mxu0 0.0
    %3130 = vmatpush1.msra.mxu0 0.0
    %3131 = vmatprep.subr.mxu0 0.0
    %3132 = vmatpush1.msra.mxu0 0.0
    %3133 = vmatprep.subr.mxu0 0.0
    %3134 = vmatpush1.msra.mxu0 0.0
    %3135 = vmatprep.subr.mxu0 0.0
    %3136 = vmatpush1.msra.mxu0 0.0
    %3137 = vmatprep.subr.mxu0 0.0
    %3138 = vmatpush1.msra.mxu0 0.0
    %3139 = vmatprep.subr.mxu0 0.0
    %3140 = vmatpush1.msra.mxu0 0.0
    %3141 = vmatprep.subr.mxu0 0.0
    %3142 = vmatpush1.msra.mxu0 0.0
    %3143 = vmatprep.subr.mxu0 0.0
    %3144 = vmatpush1.msra.mxu0 0.0
    %3145 = vmatprep.subr.mxu0 0.0
    %3146 = vmatpush1.msra.mxu0 0.0
    %3147 = vmatprep.subr.mxu0 0.0
    %3148 = vmatpush1.msra.mxu0 0.0
    %3149 = vmatprep.mubr.f32.mxu0 0.0
    %3150 = vmatmul.mubr.f32.gmra.mrb[0].mxu0 %v2467
    %v3151 = vpop.f32.mrb[0].mxu0
    %v3152 = vadd.f32 %v3010, %v3151
    %v3153 = vpop.f32.mrb[0].mxu0
    %v3154 = vadd.f32 %v3012, %v3153
    %3155 = vdwg.mxu0
    %3156 = vmatprep.subr.mxu0 %v617
    %3157 = vmatpush1.msra.mxu0 %v616
    %3158 = vmatprep.subr.mxu0 %v621
    %3159 = vmatpush1.msra.mxu0 %v620
    %3160 = vmatprep.subr.mxu0 %v625
    %3161 = vmatpush1.msra.mxu0 %v624
    %3162 = vmatprep.subr.mxu0 %v629
    %3163 = vmatpush1.msra.mxu0 %v628
    %3164 = vmatprep.subr.mxu0 %v633
    %3165 = vmatpush1.msra.mxu0 %v632
    %3166 = vmatprep.subr.mxu0 %v637
    %3167 = vmatpush1.msra.mxu0 %v636
    %3168 = vmatprep.subr.mxu0 %v641
    %3169 = vmatpush1.msra.mxu0 %v640
    %3170 = vmatprep.subr.mxu0 %v645
    %3171 = vmatpush1.msra.mxu0 %v644
    %3172 = vmatprep.subr.mxu0 %v649
    %3173 = vmatpush1.msra.mxu0 %v648
    %3174 = vmatprep.subr.mxu0 %v653
    %3175 = vmatpush1.msra.mxu0 %v652
    %3176 = vmatprep.subr.mxu0 %v657
    %3177 = vmatpush1.msra.mxu0 %v656
    %3178 = vmatprep.subr.mxu0 %v661
    %3179 = vmatpush1.msra.mxu0 %v660
    %3180 = vmatprep.subr.mxu0 %v665
    %3181 = vmatpush1.msra.mxu0 %v664
    %3182 = vmatprep.subr.mxu0 %v669
    %3183 = vmatpush1.msra.mxu0 %v668
    %3184 = vmatprep.subr.mxu0 %v673
    %3185 = vmatpush1.msra.mxu0 %v672
    %3186 = vmatprep.subr.mxu0 %v677
    %3187 = vmatpush1.msra.mxu0 %v676
    %3188 = vmatprep.subr.mxu0 0.0
    %3189 = vmatpush1.msra.mxu0 0.0
    %3190 = vmatprep.subr.mxu0 0.0
    %3191 = vmatpush1.msra.mxu0 0.0
    %3192 = vmatprep.subr.mxu0 0.0
    %3193 = vmatpush1.msra.mxu0 0.0
    %3194 = vmatprep.subr.mxu0 0.0
    %3195 = vmatpush1.msra.mxu0 0.0
    %3196 = vmatprep.subr.mxu0 0.0
    %3197 = vmatpush1.msra.mxu0 0.0
    %3198 = vmatprep.subr.mxu0 0.0
    %3199 = vmatpush1.msra.mxu0 0.0
    %3200 = vmatprep.subr.mxu0 0.0
    %3201 = vmatpush1.msra.mxu0 0.0
    %3202 = vmatprep.subr.mxu0 0.0
    %3203 = vmatpush1.msra.mxu0 0.0
    %3204 = vmatprep.subr.mxu0 0.0
    %3205 = vmatpush1.msra.mxu0 0.0
    %3206 = vmatprep.subr.mxu0 0.0
    %3207 = vmatpush1.msra.mxu0 0.0
    %3208 = vmatprep.subr.mxu0 0.0
    %3209 = vmatpush1.msra.mxu0 0.0
    %3210 = vmatprep.subr.mxu0 0.0
    %3211 = vmatpush1.msra.mxu0 0.0
    %3212 = vmatprep.subr.mxu0 0.0
    %3213 = vmatpush1.msra.mxu0 0.0
    %3214 = vmatprep.subr.mxu0 0.0
    %3215 = vmatpush1.msra.mxu0 0.0
    %3216 = vmatprep.subr.mxu0 0.0
    %3217 = vmatpush1.msra.mxu0 0.0
    %3218 = vmatprep.subr.mxu0 0.0
    %3219 = vmatpush1.msra.mxu0 0.0
    %3220 = vmatprep.mubr.f32.mxu0 0.0
    %3221 = vmatmul.mubr.f32.gmra.mrb[0].mxu0 %v2467
    %v3222 = vpop.f32.mrb[0].mxu0
    %v3223 = vadd.f32 %v3081, %v3222
    %v3224 = vpop.f32.mrb[0].mxu0
    %v3225 = vadd.f32 %v3083, %v3224
    %3226 = vdwg.mxu0
    %v3227 = vadd.f32 %v3152, %v1310
    %v3228 = vadd.f32 %v3154, %v1314
    %v3229 = vadd.f32 %v3223, %v1318
    %v3230 = vadd.f32 %v3225, %v1322
    %v3231 = vmul.f32 %v3227, 0.5
    %v3232 = vtanh.pop %v3231
    %v3233 = vmul.f32 %v3232, 0.5
    %v3234 = vadd.f32 %v3233, 0.5
    %v3235 = vmul.f32 %v3228, 0.5
    %v3236 = vtanh.pop %v3235
    %v3237 = vmul.f32 %v3236, 0.5
    %v3238 = vadd.f32 %v3237, 0.5
    %v3239 = vtanh.pop %v3229
    %v3240 = vmul.f32 %v3230, 0.5
    %v3241 = vtanh.pop %v3240
    %v3242 = vmul.f32 %v3241, 0.5
    %v3243 = vadd.f32 %v3242, 0.5
    %v3244 = vmul.f32 %v3238, %v2771
    %v3245 = vmul.f32 %v3234, %v3239
    %v3246 = vadd.f32 %v3244, %v3245
    %v3247 = vtanh.pop %v3246
    %v3248 = vmul.f32 %v3243, %v3247
    %3249 = vst [vmem:[#allocation14 + $0x20] sm:$0xff] %v3248
    %v3250 = vld [vmem:[#allocation2 + $0xc0] sm:$0xff]
    %v3251 = vld [vmem:[#allocation2 + $0xc8] sm:$0xff]
    %v3252 = vld [vmem:[#allocation2 + $0xd0] sm:$0xff]
    %v3253 = vld [vmem:[#allocation2 + $0xd8] sm:$0xff]
    %3254 = vmatprep.subr.mxu0 %v486
    %3255 = vmatpush1.msra.mxu0 %v485
    %3256 = vmatprep.subr.mxu0 %v490
    %3257 = vmatpush1.msra.mxu0 %v489
    %3258 = vmatprep.subr.mxu0 %v494
    %3259 = vmatpush1.msra.mxu0 %v493
    %3260 = vmatprep.subr.mxu0 %v498
    %3261 = vmatpush1.msra.mxu0 %v497
    %3262 = vmatprep.subr.mxu0 %v502
    %3263 = vmatpush1.msra.mxu0 %v501
    %3264 = vmatprep.subr.mxu0 %v506
    %3265 = vmatpush1.msra.mxu0 %v505
    %3266 = vmatprep.subr.mxu0 %v510
    %3267 = vmatpush1.msra.mxu0 %v509
    %3268 = vmatprep.subr.mxu0 %v514
    %3269 = vmatpush1.msra.mxu0 %v513
    %3270 = vmatprep.subr.mxu0 %v518
    %3271 = vmatpush1.msra.mxu0 %v517
    %3272 = vmatprep.subr.mxu0 %v522
    %3273 = vmatpush1.msra.mxu0 %v521
    %3274 = vmatprep.subr.mxu0 %v526
    %3275 = vmatpush1.msra.mxu0 %v525
    %3276 = vmatprep.subr.mxu0 %v530
    %3277 = vmatpush1.msra.mxu0 %v529
    %3278 = vmatprep.subr.mxu0 %v534
    %3279 = vmatpush1.msra.mxu0 %v533
    %3280 = vmatprep.subr.mxu0 %v538
    %3281 = vmatpush1.msra.mxu0 %v537
    %3282 = vmatprep.subr.mxu0 %v542
    %3283 = vmatpush1.msra.mxu0 %v541
    %3284 = vmatprep.subr.mxu0 %v546
    %3285 = vmatpush1.msra.mxu0 %v545
    %3286 = vmatprep.subr.mxu0 0.0
    %3287 = vmatpush1.msra.mxu0 0.0
    %3288 = vmatprep.subr.mxu0 0.0
    %3289 = vmatpush1.msra.mxu0 0.0
    %3290 = vmatprep.subr.mxu0 0.0
    %3291 = vmatpush1.msra.mxu0 0.0
    %3292 = vmatprep.subr.mxu0 0.0
    %3293 = vmatpush1.msra.mxu0 0.0
    %3294 = vmatprep.subr.mxu0 0.0
    %3295 = vmatpush1.msra.mxu0 0.0
    %3296 = vmatprep.subr.mxu0 0.0
    %3297 = vmatpush1.msra.mxu0 0.0
    %3298 = vmatprep.subr.mxu0 0.0
    %3299 = vmatpush1.msra.mxu0 0.0
    %3300 = vmatprep.subr.mxu0 0.0
    %3301 = vmatpush1.msra.mxu0 0.0
    %3302 = vmatprep.subr.mxu0 0.0
    %3303 = vmatpush1.msra.mxu0 0.0
    %3304 = vmatprep.subr.mxu0 0.0
    %3305 = vmatpush1.msra.mxu0 0.0
    %3306 = vmatprep.subr.mxu0 0.0
    %3307 = vmatpush1.msra.mxu0 0.0
    %3308 = vmatprep.subr.mxu0 0.0
    %3309 = vmatpush1.msra.mxu0 0.0
    %3310 = vmatprep.subr.mxu0 0.0
    %3311 = vmatpush1.msra.mxu0 0.0
    %3312 = vmatprep.subr.mxu0 0.0
    %3313 = vmatpush1.msra.mxu0 0.0
    %3314 = vmatprep.subr.mxu0 0.0
    %3315 = vmatpush1.msra.mxu0 0.0
    %3316 = vmatprep.subr.mxu0 0.0
    %3317 = vmatpush1.msra.mxu0 0.0
    %3318 = vmatprep.mubr.f32.mxu0 0.0
    %3319 = vmatmul.mubr.f32.gmra.mrb[0].mxu0 %v2942
    %v3320 = vpop.f32.mrb[0].mxu0
    %v3321 = vadd.f32 0.0, %v3320
    %v3322 = vpop.f32.mrb[0].mxu0
    %v3323 = vadd.f32 0.0, %v3322
    %3324 = vdwg.mxu0
    %3325 = vmatprep.subr.mxu0 %v488
    %3326 = vmatpush1.msra.mxu0 %v487
    %3327 = vmatprep.subr.mxu0 %v492
    %3328 = vmatpush1.msra.mxu0 %v491
    %3329 = vmatprep.subr.mxu0 %v496
    %3330 = vmatpush1.msra.mxu0 %v495
    %3331 = vmatprep.subr.mxu0 %v500
    %3332 = vmatpush1.msra.mxu0 %v499
    %3333 = vmatprep.subr.mxu0 %v504
    %3334 = vmatpush1.msra.mxu0 %v503
    %3335 = vmatprep.subr.mxu0 %v508
    %3336 = vmatpush1.msra.mxu0 %v507
    %3337 = vmatprep.subr.mxu0 %v512
    %3338 = vmatpush1.msra.mxu0 %v511
    %3339 = vmatprep.subr.mxu0 %v516
    %3340 = vmatpush1.msra.mxu0 %v515
    %3341 = vmatprep.subr.mxu0 %v520
    %3342 = vmatpush1.msra.mxu0 %v519
    %3343 = vmatprep.subr.mxu0 %v524
    %3344 = vmatpush1.msra.mxu0 %v523
    %3345 = vmatprep.subr.mxu0 %v528
    %3346 = vmatpush1.msra.mxu0 %v527
    %3347 = vmatprep.subr.mxu0 %v532
    %3348 = vmatpush1.msra.mxu0 %v531
    %3349 = vmatprep.subr.mxu0 %v536
    %3350 = vmatpush1.msra.mxu0 %v535
    %3351 = vmatprep.subr.mxu0 %v540
    %3352 = vmatpush1.msra.mxu0 %v539
    %3353 = vmatprep.subr.mxu0 %v544
    %3354 = vmatpush1.msra.mxu0 %v543
    %3355 = vmatprep.subr.mxu0 %v548
    %3356 = vmatpush1.msra.mxu0 %v547
    %3357 = vmatprep.subr.mxu0 0.0
    %3358 = vmatpush1.msra.mxu0 0.0
    %3359 = vmatprep.subr.mxu0 0.0
    %3360 = vmatpush1.msra.mxu0 0.0
    %3361 = vmatprep.subr.mxu0 0.0
    %3362 = vmatpush1.msra.mxu0 0.0
    %3363 = vmatprep.subr.mxu0 0.0
    %3364 = vmatpush1.msra.mxu0 0.0
    %3365 = vmatprep.subr.mxu0 0.0
    %3366 = vmatpush1.msra.mxu0 0.0
    %3367 = vmatprep.subr.mxu0 0.0
    %3368 = vmatpush1.msra.mxu0 0.0
    %3369 = vmatprep.subr.mxu0 0.0
    %3370 = vmatpush1.msra.mxu0 0.0
    %3371 = vmatprep.subr.mxu0 0.0
    %3372 = vmatpush1.msra.mxu0 0.0
    %3373 = vmatprep.subr.mxu0 0.0
    %3374 = vmatpush1.msra.mxu0 0.0
    %3375 = vmatprep.subr.mxu0 0.0
    %3376 = vmatpush1.msra.mxu0 0.0
    %3377 = vmatprep.subr.mxu0 0.0
    %3378 = vmatpush1.msra.mxu0 0.0
    %3379 = vmatprep.subr.mxu0 0.0
    %3380 = vmatpush1.msra.mxu0 0.0
    %3381 = vmatprep.subr.mxu0 0.0
    %3382 = vmatpush1.msra.mxu0 0.0
    %3383 = vmatprep.subr.mxu0 0.0
    %3384 = vmatpush1.msra.mxu0 0.0
    %3385 = vmatprep.subr.mxu0 0.0
    %3386 = vmatpush1.msra.mxu0 0.0
    %3387 = vmatprep.subr.mxu0 0.0
    %3388 = vmatpush1.msra.mxu0 0.0
    %3389 = vmatprep.mubr.f32.mxu0 0.0
    %3390 = vmatmul.mubr.f32.gmra.mrb[0].mxu0 %v2942
    %v3391 = vpop.f32.mrb[0].mxu0
    %v3392 = vadd.f32 0.0, %v3391
    %v3393 = vpop.f32.mrb[0].mxu0
    %v3394 = vadd.f32 0.0, %v3393
    %3395 = vdwg.mxu0
    %v3396 = vadd.f32 %v3250, %v3321
    %v3397 = vadd.f32 %v3251, %v3323
    %v3398 = vadd.f32 %v3252, %v3392
    %v3399 = vadd.f32 %v3253, %v3394
    %v3400 = vmul.f32 %v3396, 0.5
    %v3401 = vtanh.pop %v3400
    %v3402 = vmul.f32 %v3401, 0.5
    %v3403 = vadd.f32 %v3402, 0.5
    %v3404 = vmul.f32 %v3397, 0.5
    %v3405 = vtanh.pop %v3404
    %v3406 = vmul.f32 %v3405, 0.5
    %v3407 = vadd.f32 %v3406, 0.5
    %v3408 = vtanh.pop %v3398
    %v3409 = vmul.f32 %v3399, 0.5
    %v3410 = vtanh.pop %v3409
    %v3411 = vmul.f32 %v3410, 0.5
    %v3412 = vadd.f32 %v3411, 0.5
    %v3413 = vmul.f32 %v3407, %v2940
    %v3414 = vmul.f32 %v3403, %v3408
    %v3415 = vadd.f32 %v3413, %v3414
    %v3416 = vtanh.pop %v3415
    %v3417 = vmul.f32 %v3412, %v3416
    %3418 = vmatprep.subr.mxu0 %v551
    %3419 = vmatpush1.msra.mxu0 %v550
    %3420 = vmatprep.subr.mxu0 %v555
    %3421 = vmatpush1.msra.mxu0 %v554
    %3422 = vmatprep.subr.mxu0 %v559
    %3423 = vmatpush1.msra.mxu0 %v558
    %3424 = vmatprep.subr.mxu0 %v563
    %3425 = vmatpush1.msra.mxu0 %v562
    %3426 = vmatprep.subr.mxu0 %v567
    %3427 = vmatpush1.msra.mxu0 %v566
    %3428 = vmatprep.subr.mxu0 %v571
    %3429 = vmatpush1.msra.mxu0 %v570
    %3430 = vmatprep.subr.mxu0 %v575
    %3431 = vmatpush1.msra.mxu0 %v574
    %3432 = vmatprep.subr.mxu0 %v579
    %3433 = vmatpush1.msra.mxu0 %v578
    %3434 = vmatprep.subr.mxu0 %v583
    %3435 = vmatpush1.msra.mxu0 %v582
    %3436 = vmatprep.subr.mxu0 %v587
    %3437 = vmatpush1.msra.mxu0 %v586
    %3438 = vmatprep.subr.mxu0 %v591
    %3439 = vmatpush1.msra.mxu0 %v590
    %3440 = vmatprep.subr.mxu0 %v595
    %3441 = vmatpush1.msra.mxu0 %v594
    %3442 = vmatprep.subr.mxu0 %v599
    %3443 = vmatpush1.msra.mxu0 %v598
    %3444 = vmatprep.subr.mxu0 %v603
    %3445 = vmatpush1.msra.mxu0 %v602
    %3446 = vmatprep.subr.mxu0 %v607
    %3447 = vmatpush1.msra.mxu0 %v606
    %3448 = vmatprep.subr.mxu0 %v611
    %3449 = vmatpush1.msra.mxu0 %v610
    %3450 = vmatprep.subr.mxu0 0.0
    %3451 = vmatpush1.msra.mxu0 0.0
    %3452 = vmatprep.subr.mxu0 0.0
    %3453 = vmatpush1.msra.mxu0 0.0
    %3454 = vmatprep.subr.mxu0 0.0
    %3455 = vmatpush1.msra.mxu0 0.0
    %3456 = vmatprep.subr.mxu0 0.0
    %3457 = vmatpush1.msra.mxu0 0.0
    %3458 = vmatprep.subr.mxu0 0.0
    %3459 = vmatpush1.msra.mxu0 0.0
    %3460 = vmatprep.subr.mxu0 0.0
    %3461 = vmatpush1.msra.mxu0 0.0
    %3462 = vmatprep.subr.mxu0 0.0
    %3463 = vmatpush1.msra.mxu0 0.0
    %3464 = vmatprep.subr.mxu0 0.0
    %3465 = vmatpush1.msra.mxu0 0.0
    %3466 = vmatprep.subr.mxu0 0.0
    %3467 = vmatpush1.msra.mxu0 0.0
    %3468 = vmatprep.subr.mxu0 0.0
    %3469 = vmatpush1.msra.mxu0 0.0
    %3470 = vmatprep.subr.mxu0 0.0
    %3471 = vmatpush1.msra.mxu0 0.0
    %3472 = vmatprep.subr.mxu0 0.0
    %3473 = vmatpush1.msra.mxu0 0.0
    %3474 = vmatprep.subr.mxu0 0.0
    %3475 = vmatpush1.msra.mxu0 0.0
    %3476 = vmatprep.subr.mxu0 0.0
    %3477 = vmatpush1.msra.mxu0 0.0
    %3478 = vmatprep.subr.mxu0 0.0
    %3479 = vmatpush1.msra.mxu0 0.0
    %3480 = vmatprep.subr.mxu0 0.0
    %3481 = vmatpush1.msra.mxu0 0.0
    %3482 = vmatprep.mubr.f32.mxu0 0.0
    %3483 = vmatmul.mubr.f32.gmra.mrb[0].mxu0 %v3248
    %v3484 = vpop.f32.mrb[0].mxu0
    %v3485 = vadd.f32 0.0, %v3484
    %v3486 = vpop.f32.mrb[0].mxu0
    %v3487 = vadd.f32 0.0, %v3486
    %3488 = vdwg.mxu0
    %3489 = vmatprep.subr.mxu0 %v553
    %3490 = vmatpush1.msra.mxu0 %v552
    %3491 = vmatprep.subr.mxu0 %v557
    %3492 = vmatpush1.msra.mxu0 %v556
    %3493 = vmatprep.subr.mxu0 %v561
    %3494 = vmatpush1.msra.mxu0 %v560
    %3495 = vmatprep.subr.mxu0 %v565
    %3496 = vmatpush1.msra.mxu0 %v564
    %3497 = vmatprep.subr.mxu0 %v569
    %3498 = vmatpush1.msra.mxu0 %v568
    %3499 = vmatprep.subr.mxu0 %v573
    %3500 = vmatpush1.msra.mxu0 %v572
    %3501 = vmatprep.subr.mxu0 %v577
    %3502 = vmatpush1.msra.mxu0 %v576
    %3503 = vmatprep.subr.mxu0 %v581
    %3504 = vmatpush1.msra.mxu0 %v580
    %3505 = vmatprep.subr.mxu0 %v585
    %3506 = vmatpush1.msra.mxu0 %v584
    %3507 = vmatprep.subr.mxu0 %v589
    %3508 = vmatpush1.msra.mxu0 %v588
    %3509 = vmatprep.subr.mxu0 %v593
    %3510 = vmatpush1.msra.mxu0 %v592
    %3511 = vmatprep.subr.mxu0 %v597
    %3512 = vmatpush1.msra.mxu0 %v596
    %3513 = vmatprep.subr.mxu0 %v601
    %3514 = vmatpush1.msra.mxu0 %v600
    %3515 = vmatprep.subr.mxu0 %v605
    %3516 = vmatpush1.msra.mxu0 %v604
    %3517 = vmatprep.subr.mxu0 %v609
    %3518 = vmatpush1.msra.mxu0 %v608
    %3519 = vmatprep.subr.mxu0 %v613
    %3520 = vmatpush1.msra.mxu0 %v612
    %3521 = vmatprep.subr.mxu0 0.0
    %3522 = vmatpush1.msra.mxu0 0.0
    %3523 = vmatprep.subr.mxu0 0.0
    %3524 = vmatpush1.msra.mxu0 0.0
    %3525 = vmatprep.subr.mxu0 0.0
    %3526 = vmatpush1.msra.mxu0 0.0
    %3527 = vmatprep.subr.mxu0 0.0
    %3528 = vmatpush1.msra.mxu0 0.0
    %3529 = vmatprep.subr.mxu0 0.0
    %3530 = vmatpush1.msra.mxu0 0.0
    %3531 = vmatprep.subr.mxu0 0.0
    %3532 = vmatpush1.msra.mxu0 0.0
    %3533 = vmatprep.subr.mxu0 0.0
    %3534 = vmatpush1.msra.mxu0 0.0
    %3535 = vmatprep.subr.mxu0 0.0
    %3536 = vmatpush1.msra.mxu0 0.0
    %3537 = vmatprep.subr.mxu0 0.0
    %3538 = vmatpush1.msra.mxu0 0.0
    %3539 = vmatprep.subr.mxu0 0.0
    %3540 = vmatpush1.msra.mxu0 0.0
    %3541 = vmatprep.subr.mxu0 0.0
    %3542 = vmatpush1.msra.mxu0 0.0
    %3543 = vmatprep.subr.mxu0 0.0
    %3544 = vmatpush1.msra.mxu0 0.0
    %3545 = vmatprep.subr.mxu0 0.0
    %3546 = vmatpush1.msra.mxu0 0.0
    %3547 = vmatprep.subr.mxu0 0.0
    %3548 = vmatpush1.msra.mxu0 0.0
    %3549 = vmatprep.subr.mxu0 0.0
    %3550 = vmatpush1.msra.mxu0 0.0
    %3551 = vmatprep.subr.mxu0 0.0
    %3552 = vmatpush1.msra.mxu0 0.0
    %3553 = vmatprep.mubr.f32.mxu0 0.0
    %3554 = vmatmul.mubr.f32.gmra.mrb[0].mxu0 %v3248
    %v3555 = vpop.f32.mrb[0].mxu0
    %v3556 = vadd.f32 0.0, %v3555
    %v3557 = vpop.f32.mrb[0].mxu0
    %v3558 = vadd.f32 0.0, %v3557
    %3559 = vdwg.mxu0
    %3560 = vmatprep.subr.mxu0 %v615
    %3561 = vmatpush1.msra.mxu0 %v614
    %3562 = vmatprep.subr.mxu0 %v619
    %3563 = vmatpush1.msra.mxu0 %v618
    %3564 = vmatprep.subr.mxu0 %v623
    %3565 = vmatpush1.msra.mxu0 %v622
    %3566 = vmatprep.subr.mxu0 %v627
    %3567 = vmatpush1.msra.mxu0 %v626
    %3568 = vmatprep.subr.mxu0 %v631
    %3569 = vmatpush1.msra.mxu0 %v630
    %3570 = vmatprep.subr.mxu0 %v635
    %3571 = vmatpush1.msra.mxu0 %v634
    %3572 = vmatprep.subr.mxu0 %v639
    %3573 = vmatpush1.msra.mxu0 %v638
    %3574 = vmatprep.subr.mxu0 %v643
    %3575 = vmatpush1.msra.mxu0 %v642
    %3576 = vmatprep.subr.mxu0 %v647
    %3577 = vmatpush1.msra.mxu0 %v646
    %3578 = vmatprep.subr.mxu0 %v651
    %3579 = vmatpush1.msra.mxu0 %v650
    %3580 = vmatprep.subr.mxu0 %v655
    %3581 = vmatpush1.msra.mxu0 %v654
    %3582 = vmatprep.subr.mxu0 %v659
    %3583 = vmatpush1.msra.mxu0 %v658
    %3584 = vmatprep.subr.mxu0 %v663
    %3585 = vmatpush1.msra.mxu0 %v662
    %3586 = vmatprep.subr.mxu0 %v667
    %3587 = vmatpush1.msra.mxu0 %v666
    %3588 = vmatprep.subr.mxu0 %v671
    %3589 = vmatpush1.msra.mxu0 %v670
    %3590 = vmatprep.subr.mxu0 %v675
    %3591 = vmatpush1.msra.mxu0 %v674
    %3592 = vmatprep.subr.mxu0 0.0
    %3593 = vmatpush1.msra.mxu0 0.0
    %3594 = vmatprep.subr.mxu0 0.0
    %3595 = vmatpush1.msra.mxu0 0.0
    %3596 = vmatprep.subr.mxu0 0.0
    %3597 = vmatpush1.msra.mxu0 0.0
    %3598 = vmatprep.subr.mxu0 0.0
    %3599 = vmatpush1.msra.mxu0 0.0
    %3600 = vmatprep.subr.mxu0 0.0
    %3601 = vmatpush1.msra.mxu0 0.0
    %3602 = vmatprep.subr.mxu0 0.0
    %3603 = vmatpush1.msra.mxu0 0.0
    %3604 = vmatprep.subr.mxu0 0.0
    %3605 = vmatpush1.msra.mxu0 0.0
    %3606 = vmatprep.subr.mxu0 0.0
    %3607 = vmatpush1.msra.mxu0 0.0
    %3608 = vmatprep.subr.mxu0 0.0
    %3609 = vmatpush1.msra.mxu0 0.0
    %3610 = vmatprep.subr.mxu0 0.0
    %3611 = vmatpush1.msra.mxu0 0.0
    %3612 = vmatprep.subr.mxu0 0.0
    %3613 = vmatpush1.msra.mxu0 0.0
    %3614 = vmatprep.subr.mxu0 0.0
    %3615 = vmatpush1.msra.mxu0 0.0
    %3616 = vmatprep.subr.mxu0 0.0
    %3617 = vmatpush1.msra.mxu0 0.0
    %3618 = vmatprep.subr.mxu0 0.0
    %3619 = vmatpush1.msra.mxu0 0.0
    %3620 = vmatprep.subr.mxu0 0.0
    %3621 = vmatpush1.msra.mxu0 0.0
    %3622 = vmatprep.subr.mxu0 0.0
    %3623 = vmatpush1.msra.mxu0 0.0
    %3624 = vmatprep.mubr.f32.mxu0 0.0
    %3625 = vmatmul.mubr.f32.gmra.mrb[0].mxu0 %v2942
    %v3626 = vpop.f32.mrb[0].mxu0
    %v3627 = vadd.f32 %v3485, %v3626
    %v3628 = vpop.f32.mrb[0].mxu0
    %v3629 = vadd.f32 %v3487, %v3628
    %3630 = vdwg.mxu0
    %3631 = vmatprep.subr.mxu0 %v617
    %3632 = vmatpush1.msra.mxu0 %v616
    %3633 = vmatprep.subr.mxu0 %v621
    %3634 = vmatpush1.msra.mxu0 %v620
    %3635 = vmatprep.subr.mxu0 %v625
    %3636 = vmatpush1.msra.mxu0 %v624
    %3637 = vmatprep.subr.mxu0 %v629
    %3638 = vmatpush1.msra.mxu0 %v628
    %3639 = vmatprep.subr.mxu0 %v633
    %3640 = vmatpush1.msra.mxu0 %v632
    %3641 = vmatprep.subr.mxu0 %v637
    %3642 = vmatpush1.msra.mxu0 %v636
    %3643 = vmatprep.subr.mxu0 %v641
    %3644 = vmatpush1.msra.mxu0 %v640
    %3645 = vmatprep.subr.mxu0 %v645
    %3646 = vmatpush1.msra.mxu0 %v644
    %3647 = vmatprep.subr.mxu0 %v649
    %3648 = vmatpush1.msra.mxu0 %v648
    %3649 = vmatprep.subr.mxu0 %v653
    %3650 = vmatpush1.msra.mxu0 %v652
    %3651 = vmatprep.subr.mxu0 %v657
    %3652 = vmatpush1.msra.mxu0 %v656
    %3653 = vmatprep.subr.mxu0 %v661
    %3654 = vmatpush1.msra.mxu0 %v660
    %3655 = vmatprep.subr.mxu0 %v665
    %3656 = vmatpush1.msra.mxu0 %v664
    %3657 = vmatprep.subr.mxu0 %v669
    %3658 = vmatpush1.msra.mxu0 %v668
    %3659 = vmatprep.subr.mxu0 %v673
    %3660 = vmatpush1.msra.mxu0 %v672
    %3661 = vmatprep.subr.mxu0 %v677
    %3662 = vmatpush1.msra.mxu0 %v676
    %3663 = vmatprep.subr.mxu0 0.0
    %3664 = vmatpush1.msra.mxu0 0.0
    %3665 = vmatprep.subr.mxu0 0.0
    %3666 = vmatpush1.msra.mxu0 0.0
    %3667 = vmatprep.subr.mxu0 0.0
    %3668 = vmatpush1.msra.mxu0 0.0
    %3669 = vmatprep.subr.mxu0 0.0
    %3670 = vmatpush1.msra.mxu0 0.0
    %3671 = vmatprep.subr.mxu0 0.0
    %3672 = vmatpush1.msra.mxu0 0.0
    %3673 = vmatprep.subr.mxu0 0.0
    %3674 = vmatpush1.msra.mxu0 0.0
    %3675 = vmatprep.subr.mxu0 0.0
    %3676 = vmatpush1.msra.mxu0 0.0
    %3677 = vmatprep.subr.mxu0 0.0
    %3678 = vmatpush1.msra.mxu0 0.0
    %3679 = vmatprep.subr.mxu0 0.0
    %3680 = vmatpush1.msra.mxu0 0.0
    %3681 = vmatprep.subr.mxu0 0.0
    %3682 = vmatpush1.msra.mxu0 0.0
    %3683 = vmatprep.subr.mxu0 0.0
    %3684 = vmatpush1.msra.mxu0 0.0
    %3685 = vmatprep.subr.mxu0 0.0
    %3686 = vmatpush1.msra.mxu0 0.0
    %3687 = vmatprep.subr.mxu0 0.0
    %3688 = vmatpush1.msra.mxu0 0.0
    %3689 = vmatprep.subr.mxu0 0.0
    %3690 = vmatpush1.msra.mxu0 0.0
    %3691 = vmatprep.subr.mxu0 0.0
    %3692 = vmatpush1.msra.mxu0 0.0
    %3693 = vmatprep.subr.mxu0 0.0
    %3694 = vmatpush1.msra.mxu0 0.0
    %3695 = vmatprep.mubr.f32.mxu0 0.0
    %3696 = vmatmul.mubr.f32.gmra.mrb[0].mxu0 %v2942
    %v3697 = vpop.f32.mrb[0].mxu0
    %v3698 = vadd.f32 %v3556, %v3697
    %v3699 = vpop.f32.mrb[0].mxu0
    %v3700 = vadd.f32 %v3558, %v3699
    %3701 = vdwg.mxu0
    %v3702 = vadd.f32 %v3627, %v1310
    %v3703 = vadd.f32 %v3629, %v1314
    %v3704 = vadd.f32 %v3698, %v1318
    %v3705 = vadd.f32 %v3700, %v1322
    %v3706 = vmul.f32 %v3702, 0.5
    %v3707 = vtanh.pop %v3706
    %v3708 = vmul.f32 %v3707, 0.5
    %v3709 = vadd.f32 %v3708, 0.5
    %v3710 = vmul.f32 %v3703, 0.5
    %v3711 = vtanh.pop %v3710
    %v3712 = vmul.f32 %v3711, 0.5
    %v3713 = vadd.f32 %v3712, 0.5
    %v3714 = vtanh.pop %v3704
    %v3715 = vmul.f32 %v3705, 0.5
    %v3716 = vtanh.pop %v3715
    %v3717 = vmul.f32 %v3716, 0.5
    %v3718 = vadd.f32 %v3717, 0.5
    %v3719 = vmul.f32 %v3713, %v3246
    %v3720 = vmul.f32 %v3709, %v3714
    %v3721 = vadd.f32 %v3719, %v3720
    %v3722 = vtanh.pop %v3721
    %v3723 = vmul.f32 %v3718, %v3722
    %3724 = vst [vmem:[#allocation14 + $0x28] sm:$0xff] %v3723
    %v3725 = vld [vmem:[#allocation2 + $0xe0] sm:$0xff]
    %v3726 = vld [vmem:[#allocation2 + $0xe8] sm:$0xff]
    %v3727 = vld [vmem:[#allocation2 + $0xf0] sm:$0xff]
    %v3728 = vld [vmem:[#allocation2 + $0xf8] sm:$0xff]
    %3729 = vmatprep.subr.mxu0 %v486
    %3730 = vmatpush1.msra.mxu0 %v485
    %3731 = vmatprep.subr.mxu0 %v490
    %3732 = vmatpush1.msra.mxu0 %v489
    %3733 = vmatprep.subr.mxu0 %v494
    %3734 = vmatpush1.msra.mxu0 %v493
    %3735 = vmatprep.subr.mxu0 %v498
    %3736 = vmatpush1.msra.mxu0 %v497
    %3737 = vmatprep.subr.mxu0 %v502
    %3738 = vmatpush1.msra.mxu0 %v501
    %3739 = vmatprep.subr.mxu0 %v506
    %3740 = vmatpush1.msra.mxu0 %v505
    %3741 = vmatprep.subr.mxu0 %v510
    %3742 = vmatpush1.msra.mxu0 %v509
    %3743 = vmatprep.subr.mxu0 %v514
    %3744 = vmatpush1.msra.mxu0 %v513
    %3745 = vmatprep.subr.mxu0 %v518
    %3746 = vmatpush1.msra.mxu0 %v517
    %3747 = vmatprep.subr.mxu0 %v522
    %3748 = vmatpush1.msra.mxu0 %v521
    %3749 = vmatprep.subr.mxu0 %v526
    %3750 = vmatpush1.msra.mxu0 %v525
    %3751 = vmatprep.subr.mxu0 %v530
    %3752 = vmatpush1.msra.mxu0 %v529
    %3753 = vmatprep.subr.mxu0 %v534
    %3754 = vmatpush1.msra.mxu0 %v533
    %3755 = vmatprep.subr.mxu0 %v538
    %3756 = vmatpush1.msra.mxu0 %v537
    %3757 = vmatprep.subr.mxu0 %v542
    %3758 = vmatpush1.msra.mxu0 %v541
    %3759 = vmatprep.subr.mxu0 %v546
    %3760 = vmatpush1.msra.mxu0 %v545
    %3761 = vmatprep.subr.mxu0 0.0
    %3762 = vmatpush1.msra.mxu0 0.0
    %3763 = vmatprep.subr.mxu0 0.0
    %3764 = vmatpush1.msra.mxu0 0.0
    %3765 = vmatprep.subr.mxu0 0.0
    %3766 = vmatpush1.msra.mxu0 0.0
    %3767 = vmatprep.subr.mxu0 0.0
    %3768 = vmatpush1.msra.mxu0 0.0
    %3769 = vmatprep.subr.mxu0 0.0
    %3770 = vmatpush1.msra.mxu0 0.0
    %3771 = vmatprep.subr.mxu0 0.0
    %3772 = vmatpush1.msra.mxu0 0.0
    %3773 = vmatprep.subr.mxu0 0.0
    %3774 = vmatpush1.msra.mxu0 0.0
    %3775 = vmatprep.subr.mxu0 0.0
    %3776 = vmatpush1.msra.mxu0 0.0
    %3777 = vmatprep.subr.mxu0 0.0
    %3778 = vmatpush1.msra.mxu0 0.0
    %3779 = vmatprep.subr.mxu0 0.0
    %3780 = vmatpush1.msra.mxu0 0.0
    %3781 = vmatprep.subr.mxu0 0.0
    %3782 = vmatpush1.msra.mxu0 0.0
    %3783 = vmatprep.subr.mxu0 0.0
    %3784 = vmatpush1.msra.mxu0 0.0
    %3785 = vmatprep.subr.mxu0 0.0
    %3786 = vmatpush1.msra.mxu0 0.0
    %3787 = vmatprep.subr.mxu0 0.0
    %3788 = vmatpush1.msra.mxu0 0.0
    %3789 = vmatprep.subr.mxu0 0.0
    %3790 = vmatpush1.msra.mxu0 0.0
    %3791 = vmatprep.subr.mxu0 0.0
    %3792 = vmatpush1.msra.mxu0 0.0
    %3793 = vmatprep.mubr.f32.mxu0 0.0
    %3794 = vmatmul.mubr.f32.gmra.mrb[0].mxu0 %v3417
    %v3795 = vpop.f32.mrb[0].mxu0
    %v3796 = vadd.f32 0.0, %v3795
    %v3797 = vpop.f32.mrb[0].mxu0
    %v3798 = vadd.f32 0.0, %v3797
    %3799 = vdwg.mxu0
    %3800 = vmatprep.subr.mxu0 %v488
    %3801 = vmatpush1.msra.mxu0 %v487
    %3802 = vmatprep.subr.mxu0 %v492
    %3803 = vmatpush1.msra.mxu0 %v491
    %3804 = vmatprep.subr.mxu0 %v496
    %3805 = vmatpush1.msra.mxu0 %v495
    %3806 = vmatprep.subr.mxu0 %v500
    %3807 = vmatpush1.msra.mxu0 %v499
    %3808 = vmatprep.subr.mxu0 %v504
    %3809 = vmatpush1.msra.mxu0 %v503
    %3810 = vmatprep.subr.mxu0 %v508
    %3811 = vmatpush1.msra.mxu0 %v507
    %3812 = vmatprep.subr.mxu0 %v512
    %3813 = vmatpush1.msra.mxu0 %v511
    %3814 = vmatprep.subr.mxu0 %v516
    %3815 = vmatpush1.msra.mxu0 %v515
    %3816 = vmatprep.subr.mxu0 %v520
    %3817 = vmatpush1.msra.mxu0 %v519
    %3818 = vmatprep.subr.mxu0 %v524
    %3819 = vmatpush1.msra.mxu0 %v523
    %3820 = vmatprep.subr.mxu0 %v528
    %3821 = vmatpush1.msra.mxu0 %v527
    %3822 = vmatprep.subr.mxu0 %v532
    %3823 = vmatpush1.msra.mxu0 %v531
    %3824 = vmatprep.subr.mxu0 %v536
    %3825 = vmatpush1.msra.mxu0 %v535
    %3826 = vmatprep.subr.mxu0 %v540
    %3827 = vmatpush1.msra.mxu0 %v539
    %3828 = vmatprep.subr.mxu0 %v544
    %3829 = vmatpush1.msra.mxu0 %v543
    %3830 = vmatprep.subr.mxu0 %v548
    %3831 = vmatpush1.msra.mxu0 %v547
    %3832 = vmatprep.subr.mxu0 0.0
    %3833 = vmatpush1.msra.mxu0 0.0
    %3834 = vmatprep.subr.mxu0 0.0
    %3835 = vmatpush1.msra.mxu0 0.0
    %3836 = vmatprep.subr.mxu0 0.0
    %3837 = vmatpush1.msra.mxu0 0.0
    %3838 = vmatprep.subr.mxu0 0.0
    %3839 = vmatpush1.msra.mxu0 0.0
    %3840 = vmatprep.subr.mxu0 0.0
    %3841 = vmatpush1.msra.mxu0 0.0
    %3842 = vmatprep.subr.mxu0 0.0
    %3843 = vmatpush1.msra.mxu0 0.0
    %3844 = vmatprep.subr.mxu0 0.0
    %3845 = vmatpush1.msra.mxu0 0.0
    %3846 = vmatprep.subr.mxu0 0.0
    %3847 = vmatpush1.msra.mxu0 0.0
    %3848 = vmatprep.subr.mxu0 0.0
    %3849 = vmatpush1.msra.mxu0 0.0
    %3850 = vmatprep.subr.mxu0 0.0
    %3851 = vmatpush1.msra.mxu0 0.0
    %3852 = vmatprep.subr.mxu0 0.0
    %3853 = vmatpush1.msra.mxu0 0.0
    %3854 = vmatprep.subr.mxu0 0.0
    %3855 = vmatpush1.msra.mxu0 0.0
    %3856 = vmatprep.subr.mxu0 0.0
    %3857 = vmatpush1.msra.mxu0 0.0
    %3858 = vmatprep.subr.mxu0 0.0
    %3859 = vmatpush1.msra.mxu0 0.0
    %3860 = vmatprep.subr.mxu0 0.0
    %3861 = vmatpush1.msra.mxu0 0.0
    %3862 = vmatprep.subr.mxu0 0.0
    %3863 = vmatpush1.msra.mxu0 0.0
    %3864 = vmatprep.mubr.f32.mxu0 0.0
    %3865 = vmatmul.mubr.f32.gmra.mrb[0].mxu0 %v3417
    %v3866 = vpop.f32.mrb[0].mxu0
    %v3867 = vadd.f32 0.0, %v3866
    %v3868 = vpop.f32.mrb[0].mxu0
    %v3869 = vadd.f32 0.0, %v3868
    %3870 = vdwg.mxu0
    %v3871 = vadd.f32 %v3725, %v3796
    %v3872 = vadd.f32 %v3726, %v3798
    %v3873 = vadd.f32 %v3727, %v3867
    %v3874 = vadd.f32 %v3728, %v3869
    %v3875 = vmul.f32 %v3871, 0.5
    %v3876 = vtanh.pop %v3875
    %v3877 = vmul.f32 %v3876, 0.5
    %v3878 = vadd.f32 %v3877, 0.5
    %v3879 = vmul.f32 %v3872, 0.5
    %v3880 = vtanh.pop %v3879
    %v3881 = vmul.f32 %v3880, 0.5
    %v3882 = vadd.f32 %v3881, 0.5
    %v3883 = vtanh.pop %v3873
    %v3884 = vmul.f32 %v3874, 0.5
    %v3885 = vtanh.pop %v3884
    %v3886 = vmul.f32 %v3885, 0.5
    %v3887 = vadd.f32 %v3886, 0.5
    %v3888 = vmul.f32 %v3882, %v3415
    %v3889 = vmul.f32 %v3878, %v3883
    %v3890 = vadd.f32 %v3888, %v3889
    %v3891 = vtanh.pop %v3890
    %v3892 = vmul.f32 %v3887, %v3891
    %3893 = vmatprep.subr.mxu0 %v551
    %3894 = vmatpush1.msra.mxu0 %v550
    %3895 = vmatprep.subr.mxu0 %v555
    %3896 = vmatpush1.msra.mxu0 %v554
    %3897 = vmatprep.subr.mxu0 %v559
    %3898 = vmatpush1.msra.mxu0 %v558
    %3899 = vmatprep.subr.mxu0 %v563
    %3900 = vmatpush1.msra.mxu0 %v562
    %3901 = vmatprep.subr.mxu0 %v567
    %3902 = vmatpush1.msra.mxu0 %v566
    %3903 = vmatprep.subr.mxu0 %v571
    %3904 = vmatpush1.msra.mxu0 %v570
    %3905 = vmatprep.subr.mxu0 %v575
    %3906 = vmatpush1.msra.mxu0 %v574
    %3907 = vmatprep.subr.mxu0 %v579
    %3908 = vmatpush1.msra.mxu0 %v578
    %3909 = vmatprep.subr.mxu0 %v583
    %3910 = vmatpush1.msra.mxu0 %v582
    %3911 = vmatprep.subr.mxu0 %v587
    %3912 = vmatpush1.msra.mxu0 %v586
    %3913 = vmatprep.subr.mxu0 %v591
    %3914 = vmatpush1.msra.mxu0 %v590
    %3915 = vmatprep.subr.mxu0 %v595
    %3916 = vmatpush1.msra.mxu0 %v594
    %3917 = vmatprep.subr.mxu0 %v599
    %3918 = vmatpush1.msra.mxu0 %v598
    %3919 = vmatprep.subr.mxu0 %v603
    %3920 = vmatpush1.msra.mxu0 %v602
    %3921 = vmatprep.subr.mxu0 %v607
    %3922 = vmatpush1.msra.mxu0 %v606
    %3923 = vmatprep.subr.mxu0 %v611
    %3924 = vmatpush1.msra.mxu0 %v610
    %3925 = vmatprep.subr.mxu0 0.0
    %3926 = vmatpush1.msra.mxu0 0.0
    %3927 = vmatprep.subr.mxu0 0.0
    %3928 = vmatpush1.msra.mxu0 0.0
    %3929 = vmatprep.subr.mxu0 0.0
    %3930 = vmatpush1.msra.mxu0 0.0
    %3931 = vmatprep.subr.mxu0 0.0
    %3932 = vmatpush1.msra.mxu0 0.0
    %3933 = vmatprep.subr.mxu0 0.0
    %3934 = vmatpush1.msra.mxu0 0.0
    %3935 = vmatprep.subr.mxu0 0.0
    %3936 = vmatpush1.msra.mxu0 0.0
    %3937 = vmatprep.subr.mxu0 0.0
    %3938 = vmatpush1.msra.mxu0 0.0
    %3939 = vmatprep.subr.mxu0 0.0
    %3940 = vmatpush1.msra.mxu0 0.0
    %3941 = vmatprep.subr.mxu0 0.0
    %3942 = vmatpush1.msra.mxu0 0.0
    %3943 = vmatprep.subr.mxu0 0.0
    %3944 = vmatpush1.msra.mxu0 0.0
    %3945 = vmatprep.subr.mxu0 0.0
    %3946 = vmatpush1.msra.mxu0 0.0
    %3947 = vmatprep.subr.mxu0 0.0
    %3948 = vmatpush1.msra.mxu0 0.0
    %3949 = vmatprep.subr.mxu0 0.0
    %3950 = vmatpush1.msra.mxu0 0.0
    %3951 = vmatprep.subr.mxu0 0.0
    %3952 = vmatpush1.msra.mxu0 0.0
    %3953 = vmatprep.subr.mxu0 0.0
    %3954 = vmatpush1.msra.mxu0 0.0
    %3955 = vmatprep.subr.mxu0 0.0
    %3956 = vmatpush1.msra.mxu0 0.0
    %3957 = vmatprep.mubr.f32.mxu0 0.0
    %3958 = vmatmul.mubr.f32.gmra.mrb[0].mxu0 %v3723
    %v3959 = vpop.f32.mrb[0].mxu0
    %v3960 = vadd.f32 0.0, %v3959
    %v3961 = vpop.f32.mrb[0].mxu0
    %v3962 = vadd.f32 0.0, %v3961
    %3963 = vdwg.mxu0
    %3964 = vmatprep.subr.mxu0 %v553
    %3965 = vmatpush1.msra.mxu0 %v552
    %3966 = vmatprep.subr.mxu0 %v557
    %3967 = vmatpush1.msra.mxu0 %v556
    %3968 = vmatprep.subr.mxu0 %v561
    %3969 = vmatpush1.msra.mxu0 %v560
    %3970 = vmatprep.subr.mxu0 %v565
    %3971 = vmatpush1.msra.mxu0 %v564
    %3972 = vmatprep.subr.mxu0 %v569
    %3973 = vmatpush1.msra.mxu0 %v568
    %3974 = vmatprep.subr.mxu0 %v573
    %3975 = vmatpush1.msra.mxu0 %v572
    %3976 = vmatprep.subr.mxu0 %v577
    %3977 = vmatpush1.msra.mxu0 %v576
    %3978 = vmatprep.subr.mxu0 %v581
    %3979 = vmatpush1.msra.mxu0 %v580
    %3980 = vmatprep.subr.mxu0 %v585
    %3981 = vmatpush1.msra.mxu0 %v584
    %3982 = vmatprep.subr.mxu0 %v589
    %3983 = vmatpush1.msra.mxu0 %v588
    %3984 = vmatprep.subr.mxu0 %v593
    %3985 = vmatpush1.msra.mxu0 %v592
    %3986 = vmatprep.subr.mxu0 %v597
    %3987 = vmatpush1.msra.mxu0 %v596
    %3988 = vmatprep.subr.mxu0 %v601
    %3989 = vmatpush1.msra.mxu0 %v600
    %3990 = vmatprep.subr.mxu0 %v605
    %3991 = vmatpush1.msra.mxu0 %v604
    %3992 = vmatprep.subr.mxu0 %v609
    %3993 = vmatpush1.msra.mxu0 %v608
    %3994 = vmatprep.subr.mxu0 %v613
    %3995 = vmatpush1.msra.mxu0 %v612
    %3996 = vmatprep.subr.mxu0 0.0
    %3997 = vmatpush1.msra.mxu0 0.0
    %3998 = vmatprep.subr.mxu0 0.0
    %3999 = vmatpush1.msra.mxu0 0.0
    %4000 = vmatprep.subr.mxu0 0.0
    %4001 = vmatpush1.msra.mxu0 0.0
    %4002 = vmatprep.subr.mxu0 0.0
    %4003 = vmatpush1.msra.mxu0 0.0
    %4004 = vmatprep.subr.mxu0 0.0
    %4005 = vmatpush1.msra.mxu0 0.0
    %4006 = vmatprep.subr.mxu0 0.0
    %4007 = vmatpush1.msra.mxu0 0.0
    %4008 = vmatprep.subr.mxu0 0.0
    %4009 = vmatpush1.msra.mxu0 0.0
    %4010 = vmatprep.subr.mxu0 0.0
    %4011 = vmatpush1.msra.mxu0 0.0
    %4012 = vmatprep.subr.mxu0 0.0
    %4013 = vmatpush1.msra.mxu0 0.0
    %4014 = vmatprep.subr.mxu0 0.0
    %4015 = vmatpush1.msra.mxu0 0.0
    %4016 = vmatprep.subr.mxu0 0.0
    %4017 = vmatpush1.msra.mxu0 0.0
    %4018 = vmatprep.subr.mxu0 0.0
    %4019 = vmatpush1.msra.mxu0 0.0
    %4020 = vmatprep.subr.mxu0 0.0
    %4021 = vmatpush1.msra.mxu0 0.0
    %4022 = vmatprep.subr.mxu0 0.0
    %4023 = vmatpush1.msra.mxu0 0.0
    %4024 = vmatprep.subr.mxu0 0.0
    %4025 = vmatpush1.msra.mxu0 0.0
    %4026 = vmatprep.subr.mxu0 0.0
    %4027 = vmatpush1.msra.mxu0 0.0
    %4028 = vmatprep.mubr.f32.mxu0 0.0
    %4029 = vmatmul.mubr.f32.gmra.mrb[0].mxu0 %v3723
    %v4030 = vpop.f32.mrb[0].mxu0
    %v4031 = vadd.f32 0.0, %v4030
    %v4032 = vpop.f32.mrb[0].mxu0
    %v4033 = vadd.f32 0.0, %v4032
    %4034 = vdwg.mxu0
    %4035 = vmatprep.subr.mxu0 %v615
    %4036 = vmatpush1.msra.mxu0 %v614
    %4037 = vmatprep.subr.mxu0 %v619
    %4038 = vmatpush1.msra.mxu0 %v618
    %4039 = vmatprep.subr.mxu0 %v623
    %4040 = vmatpush1.msra.mxu0 %v622
    %4041 = vmatprep.subr.mxu0 %v627
    %4042 = vmatpush1.msra.mxu0 %v626
    %4043 = vmatprep.subr.mxu0 %v631
    %4044 = vmatpush1.msra.mxu0 %v630
    %4045 = vmatprep.subr.mxu0 %v635
    %4046 = vmatpush1.msra.mxu0 %v634
    %4047 = vmatprep.subr.mxu0 %v639
    %4048 = vmatpush1.msra.mxu0 %v638
    %4049 = vmatprep.subr.mxu0 %v643
    %4050 = vmatpush1.msra.mxu0 %v642
    %4051 = vmatprep.subr.mxu0 %v647
    %4052 = vmatpush1.msra.mxu0 %v646
    %4053 = vmatprep.subr.mxu0 %v651
    %4054 = vmatpush1.msra.mxu0 %v650
    %4055 = vmatprep.subr.mxu0 %v655
    %4056 = vmatpush1.msra.mxu0 %v654
    %4057 = vmatprep.subr.mxu0 %v659
    %4058 = vmatpush1.msra.mxu0 %v658
    %4059 = vmatprep.subr.mxu0 %v663
    %4060 = vmatpush1.msra.mxu0 %v662
    %4061 = vmatprep.subr.mxu0 %v667
    %4062 = vmatpush1.msra.mxu0 %v666
    %4063 = vmatprep.subr.mxu0 %v671
    %4064 = vmatpush1.msra.mxu0 %v670
    %4065 = vmatprep.subr.mxu0 %v675
    %4066 = vmatpush1.msra.mxu0 %v674
    %4067 = vmatprep.subr.mxu0 0.0
    %4068 = vmatpush1.msra.mxu0 0.0
    %4069 = vmatprep.subr.mxu0 0.0
    %4070 = vmatpush1.msra.mxu0 0.0
    %4071 = vmatprep.subr.mxu0 0.0
    %4072 = vmatpush1.msra.mxu0 0.0
    %4073 = vmatprep.subr.mxu0 0.0
    %4074 = vmatpush1.msra.mxu0 0.0
    %4075 = vmatprep.subr.mxu0 0.0
    %4076 = vmatpush1.msra.mxu0 0.0
    %4077 = vmatprep.subr.mxu0 0.0
    %4078 = vmatpush1.msra.mxu0 0.0
    %4079 = vmatprep.subr.mxu0 0.0
    %4080 = vmatpush1.msra.mxu0 0.0
    %4081 = vmatprep.subr.mxu0 0.0
    %4082 = vmatpush1.msra.mxu0 0.0
    %4083 = vmatprep.subr.mxu0 0.0
    %4084 = vmatpush1.msra.mxu0 0.0
    %4085 = vmatprep.subr.mxu0 0.0
    %4086 = vmatpush1.msra.mxu0 0.0
    %4087 = vmatprep.subr.mxu0 0.0
    %4088 = vmatpush1.msra.mxu0 0.0
    %4089 = vmatprep.subr.mxu0 0.0
    %4090 = vmatpush1.msra.mxu0 0.0
    %4091 = vmatprep.subr.mxu0 0.0
    %4092 = vmatpush1.msra.mxu0 0.0
    %4093 = vmatprep.subr.mxu0 0.0
    %4094 = vmatpush1.msra.mxu0 0.0
    %4095 = vmatprep.subr.mxu0 0.0
    %4096 = vmatpush1.msra.mxu0 0.0
    %4097 = vmatprep.subr.mxu0 0.0
    %4098 = vmatpush1.msra.mxu0 0.0
    %4099 = vmatprep.mubr.f32.mxu0 0.0
    %4100 = vmatmul.mubr.f32.gmra.mrb[0].mxu0 %v3417
    %v4101 = vpop.f32.mrb[0].mxu0
    %v4102 = vadd.f32 %v3960, %v4101
    %v4103 = vpop.f32.mrb[0].mxu0
    %v4104 = vadd.f32 %v3962, %v4103
    %4105 = vdwg.mxu0
    %4106 = vmatprep.subr.mxu0 %v617
    %4107 = vmatpush1.msra.mxu0 %v616
    %4108 = vmatprep.subr.mxu0 %v621
    %4109 = vmatpush1.msra.mxu0 %v620
    %4110 = vmatprep.subr.mxu0 %v625
    %4111 = vmatpush1.msra.mxu0 %v624
    %4112 = vmatprep.subr.mxu0 %v629
    %4113 = vmatpush1.msra.mxu0 %v628
    %4114 = vmatprep.subr.mxu0 %v633
    %4115 = vmatpush1.msra.mxu0 %v632
    %4116 = vmatprep.subr.mxu0 %v637
    %4117 = vmatpush1.msra.mxu0 %v636
    %4118 = vmatprep.subr.mxu0 %v641
    %4119 = vmatpush1.msra.mxu0 %v640
    %4120 = vmatprep.subr.mxu0 %v645
    %4121 = vmatpush1.msra.mxu0 %v644
    %4122 = vmatprep.subr.mxu0 %v649
    %4123 = vmatpush1.msra.mxu0 %v648
    %4124 = vmatprep.subr.mxu0 %v653
    %4125 = vmatpush1.msra.mxu0 %v652
    %4126 = vmatprep.subr.mxu0 %v657
    %4127 = vmatpush1.msra.mxu0 %v656
    %4128 = vmatprep.subr.mxu0 %v661
    %4129 = vmatpush1.msra.mxu0 %v660
    %4130 = vmatprep.subr.mxu0 %v665
    %4131 = vmatpush1.msra.mxu0 %v664
    %4132 = vmatprep.subr.mxu0 %v669
    %4133 = vmatpush1.msra.mxu0 %v668
    %4134 = vmatprep.subr.mxu0 %v673
    %4135 = vmatpush1.msra.mxu0 %v672
    %4136 = vmatprep.subr.mxu0 %v677
    %4137 = vmatpush1.msra.mxu0 %v676
    %4138 = vmatprep.subr.mxu0 0.0
    %4139 = vmatpush1.msra.mxu0 0.0
    %4140 = vmatprep.subr.mxu0 0.0
    %4141 = vmatpush1.msra.mxu0 0.0
    %4142 = vmatprep.subr.mxu0 0.0
    %4143 = vmatpush1.msra.mxu0 0.0
    %4144 = vmatprep.subr.mxu0 0.0
    %4145 = vmatpush1.msra.mxu0 0.0
    %4146 = vmatprep.subr.mxu0 0.0
    %4147 = vmatpush1.msra.mxu0 0.0
    %4148 = vmatprep.subr.mxu0 0.0
    %4149 = vmatpush1.msra.mxu0 0.0
    %4150 = vmatprep.subr.mxu0 0.0
    %4151 = vmatpush1.msra.mxu0 0.0
    %4152 = vmatprep.subr.mxu0 0.0
    %4153 = vmatpush1.msra.mxu0 0.0
    %4154 = vmatprep.subr.mxu0 0.0
    %4155 = vmatpush1.msra.mxu0 0.0
    %4156 = vmatprep.subr.mxu0 0.0
    %4157 = vmatpush1.msra.mxu0 0.0
    %4158 = vmatprep.subr.mxu0 0.0
    %4159 = vmatpush1.msra.mxu0 0.0
    %4160 = vmatprep.subr.mxu0 0.0
    %4161 = vmatpush1.msra.mxu0 0.0
    %4162 = vmatprep.subr.mxu0 0.0
    %4163 = vmatpush1.msra.mxu0 0.0
    %4164 = vmatprep.subr.mxu0 0.0
    %4165 = vmatpush1.msra.mxu0 0.0
    %4166 = vmatprep.subr.mxu0 0.0
    %4167 = vmatpush1.msra.mxu0 0.0
    %4168 = vmatprep.subr.mxu0 0.0
    %4169 = vmatpush1.msra.mxu0 0.0
    %4170 = vmatprep.mubr.f32.mxu0 0.0
    %4171 = vmatmul.mubr.f32.gmra.mrb[0].mxu0 %v3417
    %v4172 = vpop.f32.mrb[0].mxu0
    %v4173 = vadd.f32 %v4031, %v4172
    %v4174 = vpop.f32.mrb[0].mxu0
    %v4175 = vadd.f32 %v4033, %v4174
    %4176 = vdwg.mxu0
    %v4177 = vadd.f32 %v4102, %v1310
    %v4178 = vadd.f32 %v4104, %v1314
    %v4179 = vadd.f32 %v4173, %v1318
    %v4180 = vadd.f32 %v4175, %v1322
    %v4181 = vmul.f32 %v4177, 0.5
    %v4182 = vtanh.pop %v4181
    %v4183 = vmul.f32 %v4182, 0.5
    %v4184 = vadd.f32 %v4183, 0.5
    %v4185 = vmul.f32 %v4178, 0.5
    %v4186 = vtanh.pop %v4185
    %v4187 = vmul.f32 %v4186, 0.5
    %v4188 = vadd.f32 %v4187, 0.5
    %v4189 = vtanh.pop %v4179
    %v4190 = vmul.f32 %v4180, 0.5
    %v4191 = vtanh.pop %v4190
    %v4192 = vmul.f32 %v4191, 0.5
    %v4193 = vadd.f32 %v4192, 0.5
    %v4194 = vmul.f32 %v4188, %v3721
    %v4195 = vmul.f32 %v4184, %v4189
    %v4196 = vadd.f32 %v4194, %v4195
    %v4197 = vtanh.pop %v4196
    %v4198 = vmul.f32 %v4193, %v4197
    %4199 = vst [vmem:[#allocation14 + $0x30] sm:$0xff] %v4198
    %4200 = vmatprep.subr.mxu0 %v551
    %4201 = vmatpush1.msra.mxu0 %v550
    %4202 = vmatprep.subr.mxu0 %v555
    %4203 = vmatpush1.msra.mxu0 %v554
    %4204 = vmatprep.subr.mxu0 %v559
    %4205 = vmatpush1.msra.mxu0 %v558
    %4206 = vmatprep.subr.mxu0 %v563
    %4207 = vmatpush1.msra.mxu0 %v562
    %4208 = vmatprep.subr.mxu0 %v567
    %4209 = vmatpush1.msra.mxu0 %v566
    %4210 = vmatprep.subr.mxu0 %v571
    %4211 = vmatpush1.msra.mxu0 %v570
    %4212 = vmatprep.subr.mxu0 %v575
    %4213 = vmatpush1.msra.mxu0 %v574
    %4214 = vmatprep.subr.mxu0 %v579
    %4215 = vmatpush1.msra.mxu0 %v578
    %4216 = vmatprep.subr.mxu0 %v583
    %4217 = vmatpush1.msra.mxu0 %v582
    %4218 = vmatprep.subr.mxu0 %v587
    %4219 = vmatpush1.msra.mxu0 %v586
    %4220 = vmatprep.subr.mxu0 %v591
    %4221 = vmatpush1.msra.mxu0 %v590
    %4222 = vmatprep.subr.mxu0 %v595
    %4223 = vmatpush1.msra.mxu0 %v594
    %4224 = vmatprep.subr.mxu0 %v599
    %4225 = vmatpush1.msra.mxu0 %v598
    %4226 = vmatprep.subr.mxu0 %v603
    %4227 = vmatpush1.msra.mxu0 %v602
    %4228 = vmatprep.subr.mxu0 %v607
    %4229 = vmatpush1.msra.mxu0 %v606
    %4230 = vmatprep.subr.mxu0 %v611
    %4231 = vmatpush1.msra.mxu0 %v610
    %4232 = vmatprep.subr.mxu0 0.0
    %4233 = vmatpush1.msra.mxu0 0.0
    %4234 = vmatprep.subr.mxu0 0.0
    %4235 = vmatpush1.msra.mxu0 0.0
    %4236 = vmatprep.subr.mxu0 0.0
    %4237 = vmatpush1.msra.mxu0 0.0
    %4238 = vmatprep.subr.mxu0 0.0
    %4239 = vmatpush1.msra.mxu0 0.0
    %4240 = vmatprep.subr.mxu0 0.0
    %4241 = vmatpush1.msra.mxu0 0.0
    %4242 = vmatprep.subr.mxu0 0.0
    %4243 = vmatpush1.msra.mxu0 0.0
    %4244 = vmatprep.subr.mxu0 0.0
    %4245 = vmatpush1.msra.mxu0 0.0
    %4246 = vmatprep.subr.mxu0 0.0
    %4247 = vmatpush1.msra.mxu0 0.0
    %4248 = vmatprep.subr.mxu0 0.0
    %4249 = vmatpush1.msra.mxu0 0.0
    %4250 = vmatprep.subr.mxu0 0.0
    %4251 = vmatpush1.msra.mxu0 0.0
    %4252 = vmatprep.subr.mxu0 0.0
    %4253 = vmatpush1.msra.mxu0 0.0
    %4254 = vmatprep.subr.mxu0 0.0
    %4255 = vmatpush1.msra.mxu0 0.0
    %4256 = vmatprep.subr.mxu0 0.0
    %4257 = vmatpush1.msra.mxu0 0.0
    %4258 = vmatprep.subr.mxu0 0.0
    %4259 = vmatpush1.msra.mxu0 0.0
    %4260 = vmatprep.subr.mxu0 0.0
    %4261 = vmatpush1.msra.mxu0 0.0
    %4262 = vmatprep.subr.mxu0 0.0
    %4263 = vmatpush1.msra.mxu0 0.0
    %4264 = vmatprep.mubr.f32.mxu0 0.0
    %4265 = vmatmul.mubr.f32.gmra.mrb[0].mxu0 %v4198
    %v4266 = vpop.f32.mrb[0].mxu0
    %v4267 = vadd.f32 0.0, %v4266
    %v4268 = vpop.f32.mrb[0].mxu0
    %v4269 = vadd.f32 0.0, %v4268
    %4270 = vdwg.mxu0
    %4271 = vmatprep.subr.mxu0 %v553
    %4272 = vmatpush1.msra.mxu0 %v552
    %4273 = vmatprep.subr.mxu0 %v557
    %4274 = vmatpush1.msra.mxu0 %v556
    %4275 = vmatprep.subr.mxu0 %v561
    %4276 = vmatpush1.msra.mxu0 %v560
    %4277 = vmatprep.subr.mxu0 %v565
    %4278 = vmatpush1.msra.mxu0 %v564
    %4279 = vmatprep.subr.mxu0 %v569
    %4280 = vmatpush1.msra.mxu0 %v568
    %4281 = vmatprep.subr.mxu0 %v573
    %4282 = vmatpush1.msra.mxu0 %v572
    %4283 = vmatprep.subr.mxu0 %v577
    %4284 = vmatpush1.msra.mxu0 %v576
    %4285 = vmatprep.subr.mxu0 %v581
    %4286 = vmatpush1.msra.mxu0 %v580
    %4287 = vmatprep.subr.mxu0 %v585
    %4288 = vmatpush1.msra.mxu0 %v584
    %4289 = vmatprep.subr.mxu0 %v589
    %4290 = vmatpush1.msra.mxu0 %v588
    %4291 = vmatprep.subr.mxu0 %v593
    %4292 = vmatpush1.msra.mxu0 %v592
    %4293 = vmatprep.subr.mxu0 %v597
    %4294 = vmatpush1.msra.mxu0 %v596
    %4295 = vmatprep.subr.mxu0 %v601
    %4296 = vmatpush1.msra.mxu0 %v600
    %4297 = vmatprep.subr.mxu0 %v605
    %4298 = vmatpush1.msra.mxu0 %v604
    %4299 = vmatprep.subr.mxu0 %v609
    %4300 = vmatpush1.msra.mxu0 %v608
    %4301 = vmatprep.subr.mxu0 %v613
    %4302 = vmatpush1.msra.mxu0 %v612
    %4303 = vmatprep.subr.mxu0 0.0
    %4304 = vmatpush1.msra.mxu0 0.0
    %4305 = vmatprep.subr.mxu0 0.0
    %4306 = vmatpush1.msra.mxu0 0.0
    %4307 = vmatprep.subr.mxu0 0.0
    %4308 = vmatpush1.msra.mxu0 0.0
    %4309 = vmatprep.subr.mxu0 0.0
    %4310 = vmatpush1.msra.mxu0 0.0
    %4311 = vmatprep.subr.mxu0 0.0
    %4312 = vmatpush1.msra.mxu0 0.0
    %4313 = vmatprep.subr.mxu0 0.0
    %4314 = vmatpush1.msra.mxu0 0.0
    %4315 = vmatprep.subr.mxu0 0.0
    %4316 = vmatpush1.msra.mxu0 0.0
    %4317 = vmatprep.subr.mxu0 0.0
    %4318 = vmatpush1.msra.mxu0 0.0
    %4319 = vmatprep.subr.mxu0 0.0
    %4320 = vmatpush1.msra.mxu0 0.0
    %4321 = vmatprep.subr.mxu0 0.0
    %4322 = vmatpush1.msra.mxu0 0.0
    %4323 = vmatprep.subr.mxu0 0.0
    %4324 = vmatpush1.msra.mxu0 0.0
    %4325 = vmatprep.subr.mxu0 0.0
    %4326 = vmatpush1.msra.mxu0 0.0
    %4327 = vmatprep.subr.mxu0 0.0
    %4328 = vmatpush1.msra.mxu0 0.0
    %4329 = vmatprep.subr.mxu0 0.0
    %4330 = vmatpush1.msra.mxu0 0.0
    %4331 = vmatprep.subr.mxu0 0.0
    %4332 = vmatpush1.msra.mxu0 0.0
    %4333 = vmatprep.subr.mxu0 0.0
    %4334 = vmatpush1.msra.mxu0 0.0
    %4335 = vmatprep.mubr.f32.mxu0 0.0
    %4336 = vmatmul.mubr.f32.gmra.mrb[0].mxu0 %v4198
    %v4337 = vpop.f32.mrb[0].mxu0
    %v4338 = vadd.f32 0.0, %v4337
    %v4339 = vpop.f32.mrb[0].mxu0
    %v4340 = vadd.f32 0.0, %v4339
    %4341 = vdwg.mxu0
    %4342 = vmatprep.subr.mxu0 %v615
    %4343 = vmatpush1.msra.mxu0 %v614
    %4344 = vmatprep.subr.mxu0 %v619
    %4345 = vmatpush1.msra.mxu0 %v618
    %4346 = vmatprep.subr.mxu0 %v623
    %4347 = vmatpush1.msra.mxu0 %v622
    %4348 = vmatprep.subr.mxu0 %v627
    %4349 = vmatpush1.msra.mxu0 %v626
    %4350 = vmatprep.subr.mxu0 %v631
    %4351 = vmatpush1.msra.mxu0 %v630
    %4352 = vmatprep.subr.mxu0 %v635
    %4353 = vmatpush1.msra.mxu0 %v634
    %4354 = vmatprep.subr.mxu0 %v639
    %4355 = vmatpush1.msra.mxu0 %v638
    %4356 = vmatprep.subr.mxu0 %v643
    %4357 = vmatpush1.msra.mxu0 %v642
    %4358 = vmatprep.subr.mxu0 %v647
    %4359 = vmatpush1.msra.mxu0 %v646
    %4360 = vmatprep.subr.mxu0 %v651
    %4361 = vmatpush1.msra.mxu0 %v650
    %4362 = vmatprep.subr.mxu0 %v655
    %4363 = vmatpush1.msra.mxu0 %v654
    %4364 = vmatprep.subr.mxu0 %v659
    %4365 = vmatpush1.msra.mxu0 %v658
    %4366 = vmatprep.subr.mxu0 %v663
    %4367 = vmatpush1.msra.mxu0 %v662
    %4368 = vmatprep.subr.mxu0 %v667
    %4369 = vmatpush1.msra.mxu0 %v666
    %4370 = vmatprep.subr.mxu0 %v671
    %4371 = vmatpush1.msra.mxu0 %v670
    %4372 = vmatprep.subr.mxu0 %v675
    %4373 = vmatpush1.msra.mxu0 %v674
    %4374 = vmatprep.subr.mxu0 0.0
    %4375 = vmatpush1.msra.mxu0 0.0
    %4376 = vmatprep.subr.mxu0 0.0
    %4377 = vmatpush1.msra.mxu0 0.0
    %4378 = vmatprep.subr.mxu0 0.0
    %4379 = vmatpush1.msra.mxu0 0.0
    %4380 = vmatprep.subr.mxu0 0.0
    %4381 = vmatpush1.msra.mxu0 0.0
    %4382 = vmatprep.subr.mxu0 0.0
    %4383 = vmatpush1.msra.mxu0 0.0
    %4384 = vmatprep.subr.mxu0 0.0
    %4385 = vmatpush1.msra.mxu0 0.0
    %4386 = vmatprep.subr.mxu0 0.0
    %4387 = vmatpush1.msra.mxu0 0.0
    %4388 = vmatprep.subr.mxu0 0.0
    %4389 = vmatpush1.msra.mxu0 0.0
    %4390 = vmatprep.subr.mxu0 0.0
    %4391 = vmatpush1.msra.mxu0 0.0
    %4392 = vmatprep.subr.mxu0 0.0
    %4393 = vmatpush1.msra.mxu0 0.0
    %4394 = vmatprep.subr.mxu0 0.0
    %4395 = vmatpush1.msra.mxu0 0.0
    %4396 = vmatprep.subr.mxu0 0.0
    %4397 = vmatpush1.msra.mxu0 0.0
    %4398 = vmatprep.subr.mxu0 0.0
    %4399 = vmatpush1.msra.mxu0 0.0
    %4400 = vmatprep.subr.mxu0 0.0
    %4401 = vmatpush1.msra.mxu0 0.0
    %4402 = vmatprep.subr.mxu0 0.0
    %4403 = vmatpush1.msra.mxu0 0.0
    %4404 = vmatprep.subr.mxu0 0.0
    %4405 = vmatpush1.msra.mxu0 0.0
    %4406 = vmatprep.mubr.f32.mxu0 0.0
    %4407 = vmatmul.mubr.f32.gmra.mrb[0].mxu0 %v3892
    %v4408 = vpop.f32.mrb[0].mxu0
    %v4409 = vadd.f32 %v4267, %v4408
    %v4410 = vpop.f32.mrb[0].mxu0
    %v4411 = vadd.f32 %v4269, %v4410
    %4412 = vdwg.mxu0
    %4413 = vmatprep.subr.mxu0 %v617
    %4414 = vmatpush1.msra.mxu0 %v616
    %4415 = vmatprep.subr.mxu0 %v621
    %4416 = vmatpush1.msra.mxu0 %v620
    %4417 = vmatprep.subr.mxu0 %v625
    %4418 = vmatpush1.msra.mxu0 %v624
    %4419 = vmatprep.subr.mxu0 %v629
    %4420 = vmatpush1.msra.mxu0 %v628
    %4421 = vmatprep.subr.mxu0 %v633
    %4422 = vmatpush1.msra.mxu0 %v632
    %4423 = vmatprep.subr.mxu0 %v637
    %4424 = vmatpush1.msra.mxu0 %v636
    %4425 = vmatprep.subr.mxu0 %v641
    %4426 = vmatpush1.msra.mxu0 %v640
    %4427 = vmatprep.subr.mxu0 %v645
    %4428 = vmatpush1.msra.mxu0 %v644
    %4429 = vmatprep.subr.mxu0 %v649
    %4430 = vmatpush1.msra.mxu0 %v648
    %4431 = vmatprep.subr.mxu0 %v653
    %4432 = vmatpush1.msra.mxu0 %v652
    %4433 = vmatprep.subr.mxu0 %v657
    %4434 = vmatpush1.msra.mxu0 %v656
    %4435 = vmatprep.subr.mxu0 %v661
    %4436 = vmatpush1.msra.mxu0 %v660
    %4437 = vmatprep.subr.mxu0 %v665
    %4438 = vmatpush1.msra.mxu0 %v664
    %4439 = vmatprep.subr.mxu0 %v669
    %4440 = vmatpush1.msra.mxu0 %v668
    %4441 = vmatprep.subr.mxu0 %v673
    %4442 = vmatpush1.msra.mxu0 %v672
    %4443 = vmatprep.subr.mxu0 %v677
    %4444 = vmatpush1.msra.mxu0 %v676
    %4445 = vmatprep.subr.mxu0 0.0
    %4446 = vmatpush1.msra.mxu0 0.0
    %4447 = vmatprep.subr.mxu0 0.0
    %4448 = vmatpush1.msra.mxu0 0.0
    %4449 = vmatprep.subr.mxu0 0.0
    %4450 = vmatpush1.msra.mxu0 0.0
    %4451 = vmatprep.subr.mxu0 0.0
    %4452 = vmatpush1.msra.mxu0 0.0
    %4453 = vmatprep.subr.mxu0 0.0
    %4454 = vmatpush1.msra.mxu0 0.0
    %4455 = vmatprep.subr.mxu0 0.0
    %4456 = vmatpush1.msra.mxu0 0.0
    %4457 = vmatprep.subr.mxu0 0.0
    %4458 = vmatpush1.msra.mxu0 0.0
    %4459 = vmatprep.subr.mxu0 0.0
    %4460 = vmatpush1.msra.mxu0 0.0
    %4461 = vmatprep.subr.mxu0 0.0
    %4462 = vmatpush1.msra.mxu0 0.0
    %4463 = vmatprep.subr.mxu0 0.0
    %4464 = vmatpush1.msra.mxu0 0.0
    %4465 = vmatprep.subr.mxu0 0.0
    %4466 = vmatpush1.msra.mxu0 0.0
    %4467 = vmatprep.subr.mxu0 0.0
    %4468 = vmatpush1.msra.mxu0 0.0
    %4469 = vmatprep.subr.mxu0 0.0
    %4470 = vmatpush1.msra.mxu0 0.0
    %4471 = vmatprep.subr.mxu0 0.0
    %4472 = vmatpush1.msra.mxu0 0.0
    %4473 = vmatprep.subr.mxu0 0.0
    %4474 = vmatpush1.msra.mxu0 0.0
    %4475 = vmatprep.subr.mxu0 0.0
    %4476 = vmatpush1.msra.mxu0 0.0
    %4477 = vmatprep.mubr.f32.mxu0 0.0
    %4478 = vmatmul.mubr.f32.gmra.mrb[0].mxu0 %v3892
    %v4479 = vpop.f32.mrb[0].mxu0
    %v4480 = vadd.f32 %v4338, %v4479
    %v4481 = vpop.f32.mrb[0].mxu0
    %v4482 = vadd.f32 %v4340, %v4481
    %4483 = vdwg.mxu0
    %v4484 = vadd.f32 %v4409, %v1310
    %v4485 = vadd.f32 %v4411, %v1314
    %v4486 = vadd.f32 %v4480, %v1318
    %v4487 = vadd.f32 %v4482, %v1322
    %v4488 = vmul.f32 %v4484, 0.5
    %v4489 = vtanh.pop %v4488
    %v4490 = vmul.f32 %v4489, 0.5
    %v4491 = vadd.f32 %v4490, 0.5
    %v4492 = vmul.f32 %v4485, 0.5
    %v4493 = vtanh.pop %v4492
    %v4494 = vmul.f32 %v4493, 0.5
    %v4495 = vadd.f32 %v4494, 0.5
    %v4496 = vtanh.pop %v4486
    %v4497 = vmul.f32 %v4487, 0.5
    %v4498 = vtanh.pop %v4497
    %v4499 = vmul.f32 %v4498, 0.5
    %v4500 = vadd.f32 %v4499, 0.5
    %v4501 = vmul.f32 %v4495, %v4196
    %v4502 = vmul.f32 %v4491, %v4496
    %v4503 = vadd.f32 %v4501, %v4502
    %v4504 = vtanh.pop %v4503
    %v4505 = vmul.f32 %v4500, %v4504
    %4506 = vst [vmem:[#allocation14 + $0x38] sm:$0xff] %v4505
    %4507 = vst [vmem:[#allocation15] sm:$0xff] %v3892
    %4508 = vst [vmem:[#allocation17] sm:$0xff] %v3890
    %4509 = vst [vmem:[%s681] sm:$0xff] %v4505
    %4510 = vst [vmem:[%s684] sm:$0xff] %v4503
    // Predicated region
    $region58: #{tpu_custom_call.1} parent=1 // pred_check
      _
    $region59: #{tpu_custom_call.1} parent=1 // pred_check_branch
      %4512 = sbr.rel (0) target = $region61
    $region60: #{tpu_custom_call.1} parent=1 // pred_region
      %s4513 = sadd.s32 0, 0
      %s4514 = smul.u32 8, %s4513
      %s4516 = ssub.s32 1024, 1024
      %4517 = vsyncadd [#allocation5], %s4516
      %s4518 = smul.addr %s4514, 128
      %s4519 = scalar_lea.hbm %s7, %s4518
      %s4520 = sshll.u32 [#allocation14], 4
      %s4521 = int_to_ptr.vmem [resolvable:$true] %s4520
      %4526 = dma.vmem_to_hbm [thread:$0]  %s4521, 1024, %s4519, [#allocation5], 128, 128, 8
    $region61: #{tpu_custom_call.1} parent=1 // pred_fallthru
      _
    // Predicated region
    $region62: #{tpu_custom_call.1} parent=1 // pred_check
      _
    $region63: #{tpu_custom_call.1} parent=1 // pred_check_branch
      %4528 = sbr.rel (0) target = $region65
    $region64: #{tpu_custom_call.1} parent=1 // pred_region
      %s4530 = ssub.s32 256, 256
      %4531 = vsyncadd [#allocation16], %s4530
      %s4532 = sshll.u32 [#allocation15], 4
      %s4533 = int_to_ptr.vmem [resolvable:$true] %s4532
      %4538 = dma.vmem_to_hbm [thread:$0]  %s4533, 256, %s8, [#allocation16], 128, 128, 8
    $region65: #{tpu_custom_call.1} parent=1 // pred_fallthru
      _
    // Predicated region
    $region66: #{tpu_custom_call.1} parent=1 // pred_check
      _
    $region67: #{tpu_custom_call.1} parent=1 // pred_check_branch
      %4540 = sbr.rel (0) target = $region69
    $region68: #{tpu_custom_call.1} parent=1 // pred_region
      %s4542 = ssub.s32 256, 256
      %4543 = vsyncadd [#allocation16], %s4542
      %s4544 = sshll.u32 [#allocation17], 4
      %s4545 = int_to_ptr.vmem [resolvable:$true] %s4544
      %4550 = dma.vmem_to_hbm [thread:$0]  %s4545, 256, %s9, [#allocation16], 128, 128, 8
    $region69: #{tpu_custom_call.1} parent=1 // pred_fallthru
      _
    // Predicated region
    $region70: #{tpu_custom_call.1} parent=1 // pred_check
      _
    $region71: #{tpu_custom_call.1} parent=1 // pred_check_branch
      %4552 = sbr.rel (0) target = $region73
    $region72: #{tpu_custom_call.1} parent=1 // pred_region
      %4553 = dma.done [#allocation5], 1024
    $region73: #{tpu_custom_call.1} parent=1 // pred_fallthru
      _
    // Predicated region
    $region74: #{tpu_custom_call.1} parent=1 // pred_check
      _
    $region75: #{tpu_custom_call.1} parent=1 // pred_check_branch
      %4555 = sbr.rel (0) target = $region77
    $region76: #{tpu_custom_call.1} parent=1 // pred_region
      %4556 = dma.done [#allocation16], 256
    $region77: #{tpu_custom_call.1} parent=1 // pred_fallthru
      _
    // Predicated region
    $region78: #{tpu_custom_call.1} parent=1 // pred_check
      _
    $region79: #{tpu_custom_call.1} parent=1 // pred_check_branch
      %4558 = sbr.rel (0) target = $region81
    $region80: #{tpu_custom_call.1} parent=1 // pred_region
      %4559 = dma.done [#allocation16], 256
    $region81: #{tpu_custom_call.1} parent=1 // pred_fallthru
      _
    %4560 = vsyncpa [#allocation4], 1
    %4561 = vsyncpa [#allocation7], 1
    %4562 = vsyncpa [#allocation10], 1
    %4563 = vsyncpa [#allocation13], 1
    %4564 = vsyncpa [#allocation5], 1
    %4565 = vsyncpa [#allocation16], 1

</llo_original>
